<compile_context>
chip_gen: v7x
topology: tpu7x:2x2x1
jax: 0.10.0
libtpu: 0.0.40
codegen_flags: <defaults>
</compile_context>

<pallas_src>
import functools

import jax
import jax.numpy as jnp
from jax import lax
from jax.experimental import pallas as pl
from jax.experimental.pallas import tpu as pltpu


# ----------------------------- Pallas kernel ------------------------------- #

def mgd_kernel(x_ref, nf_ref, s_ref,
               wext_ref, bext_ref,
               wwf_ref, wwb_ref, bw_ref,
               wuf_ref, bu_ref,
               lng_ref, lnb_ref,
               out_ref,
               *scratch,
               num_layers, total_iters, alpha, eps, rescale, residual,
               h_real, s_resident, row_tile, n_slots):
    n, hp = out_ref.shape
    inv_h = 1.0 / float(h_real)

    nf = nf_ref[...]                                     # (N, 1), bcast at use
    # extractor: Linear(in_channels -> hidden_channels), padded to Hp lanes.
    x = (jnp.dot(x_ref[...], wext_ref[...], preferred_element_type=jnp.float32)
         + bext_ref[...])                                # (N, Hp) f32

    # Mask of the real hidden channels (padded lanes must stay exactly zero).
    lane = lax.broadcasted_iota(jnp.int32, (1, hp), 1)
    lane_mask = lane < h_real

    if s_resident:
        # Iteration-invariant x-projection hoisted out of the fixed-point loop
        # (b_w folded in). Only hoisted when VMEM is plentiful (S resident).
        xu = [jnp.dot(x, wuf_ref[l], preferred_element_type=jnp.float32)
              + bu_ref[l] + bw_ref[l] for l in range(num_layers)]
    else:
        sbuf_ref, sem_ref = scratch
        nt = n // row_tile

        def tile_copy(t, slot):
            start = t * row_tile
            if not isinstance(t, int):
                start = pl.multiple_of(start, row_tile)
            return pltpu.make_async_copy(
                s_ref.at[pl.ds(start, row_tile), :],
                sbuf_ref.at[slot], sem_ref.at[slot])

    # Fixed-point diffusion; it/l loops are tiny & static -> fully unrolled.
    for it in range(total_iters):
        for l in range(num_layers):
            first = (it == 0 and l == 0)

            if not s_resident:
                # Keep the DMA engine busy through the dense per-node block:
                # pre-issue up to n_slots S row tiles before any compute.
                # (All DMAs of the previous layer step were already waited.)
                for t in range(min(n_slots, nt)):
                    tile_copy(t, t).start()

            if s_resident:
                xproj = xu[l]
            else:
                xproj = (jnp.dot(x, wuf_ref[l],
                                 preferred_element_type=jnp.float32)
                         + bu_ref[l] + bw_ref[l])

            if first:
                a = xproj                                # z == 0 -> skip z @ W
            else:
                z = out_ref[...]
                zh = nf * z if rescale else z
                a = jnp.dot(zh, wwf_ref[l],
                            preferred_element_type=jnp.float32) + xproj

            # LayerNorm over the real h channels: masked two-pass variance
            # (padded lanes forced to zero, no E[a^2]-mu^2 cancellation).
            mu = jnp.sum(a, axis=-1, keepdims=True) * inv_h
            c = jnp.where(lane_mask, a - mu, 0.0)
            var = jnp.sum(c * c, axis=-1, keepdims=True) * inv_h
            a = c * lax.rsqrt(var + eps) * lng_ref[l] + lnb_ref[l]
            a = jnp.tanh(a)

            # weight-tied back-projection, then optional rescale.
            g = jnp.dot(a, wwb_ref[l], preferred_element_type=jnp.float32)
            if rescale:
                g = nf * g
            g_mx = g.astype(s_ref.dtype)                 # bf16 MXU operand

            if s_resident:
                # S resident in VMEM: single propagation matmul per step.
                p = jnp.dot(s_ref[...], g_mx,
                            preferred_element_type=jnp.float32)
                if first:
                    out_ref[...] = alpha * p
                else:
                    out_ref[...] = (1.0 - alpha) * out_ref[...] + alpha * p
            else:
                # Streamed, double-buffered graph propagation p = S @ g.
                # In-place z update in out_ref is safe: g was fully computed
                # from the old z above.
                def r_body(r, carry, _first=first):
                    slot = r % n_slots
                    # Tiles are issued strictly in order, so the pending DMA in
                    # `slot` is exactly tile r -> descriptor matches its start.
                    tile_copy(r, slot).wait()
                    p = jnp.dot(sbuf_ref[slot], g_mx,
                                preferred_element_type=jnp.float32)
                    rows = pl.ds(pl.multiple_of(r * row_tile, row_tile),
                                 row_tile)
                    if _first:
                        out_ref[rows, :] = alpha * p
                    else:
                        out_ref[rows, :] = ((1.0 - alpha) * out_ref[rows, :]
                                            + alpha * p)

                    # Refill the slot we just consumed with the next tile
                    # (issued after the matmul's reads -> no WAR hazard).
                    @pl.when(r + n_slots < nt)
                    def _():
                        tile_copy(r + n_slots, slot).start()
                    return carry

                lax.fori_loop(0, nt, r_body, 0)

    # Epilogue fused into the resident output buffer (z lives in out_ref).
    if residual:
        if rescale:
            out_ref[...] = nf * out_ref[...] + x
        else:
            out_ref[...] = out_ref[...] + x


# ------------------------------- wrapper ------------------------------------ #

def mgd_forward(x, s, nf, params, *, num_layers, total_iters, alpha,
                rescale=True, residual=True, eps=1e-5,
                prop_dtype=jnp.bfloat16,
                force_stream=False, stream_row_tile=None):
    n, c_in = x.shape
    h = params["w_ext"].shape[1]
    hp = -(-h // 128) * 128                 # pad hidden axis to full 128 lanes
    itemsize = jnp.dtype(prop_dtype).itemsize

    def round_up(v, m):
        return -(-v // m) * m

    # Generation-aware VMEM capacity (v5e/v6e 128 MiB, v7x 64 MiB); fall back
    # to the conservative v7x value if the query is unavailable.
    try:
        vmem_cap = int(pltpu.get_tpu_info().vmem_capacity_bytes)
    except Exception:
        vmem_cap = 64 * 2**20
    budget = int(0.70 * vmem_cap)

    # Rough resident-VMEM estimate: z(in out), x-hidden, a/c/g/p temps, input,
    # padded parameters, optional hoisted xu[l].
    def state_bytes(n_rows, hoist_xu):
        per = n_rows * hp * 4
        b = per * (2 + 4 + (num_layers if hoist_xu else 0))
        b += n_rows * c_in * 4
        b += (c_in * hp + hp + 3 * num_layers * hp * hp
              + 4 * num_layers * hp) * 4
        return b

    s_res_bytes = round_up(n, 16) * round_up(n, 128) * itemsize
    s_resident = (not force_stream) and \
        (state_bytes(n, True) + s_res_bytes <= budget)

    if s_resident:
        n_pad, row_tile, n_slots = n, 0, 0
        need = state_bytes(n, True) + s_res_bytes
    else:
        n_slots = 2
        if stream_row_tile is not None:
            row_tile = int(stream_row_tile)
        else:
            row_tile = 256                  # >= bf16 sublane pack, MXU-friendly
            while row_tile > 16 and (
                    state_bytes(round_up(n, row_tile), False)
                    + n_slots * row_tile * round_up(n, row_tile) * itemsize
                    > budget):
                row_tile //= 2
        n_pad = round_up(n, row_tile)       # pad N instead of row_tile=N fallback
        need = (state_bytes(n_pad, False)
                + n_slots * row_tile * n_pad * itemsize)

    vmem_limit = int(min(max(int(1.5 * need), 32 * 2**20),
                         int(0.92 * vmem_cap)))

    def pad_rows(a):
        return jnp.pad(a, ((0, n_pad - a.shape[0]),) + ((0, 0),) * (a.ndim - 1))

    def pad_last(a):
        return jnp.pad(a, [(0, 0)] * (a.ndim - 1) + [(0, hp - a.shape[-1])])

    def pad_hh(a):                          # (L, H, H) -> (L, Hp, Hp), zero pad
        return jnp.pad(a, ((0, 0), (0, hp - a.shape[1]), (0, hp - a.shape[2])))

    x_p = pad_rows(x.astype(jnp.float32))
    nf_p = pad_rows(nf.astype(jnp.float32))
    s_p = s if n_pad == n else jnp.pad(s, ((0, n_pad - n), (0, n_pad - n)))
    s_mx = s_p.astype(prop_dtype)           # bf16 adjacency (f32 accumulation)

    w_ext = pad_last(params["w_ext"])
    b_ext = pad_last(params["b_ext"])
    ww_fwd = pad_hh(params["ww_fwd"])
    ww_bwd = pad_hh(params["ww_bwd"])
    wu_fwd = pad_hh(params["wu_fwd"])
    b_w = pad_last(params["b_w"])
    b_u = pad_last(params["b_u"])
    ln_g = pad_last(params["ln_g"])         # padded gamma/beta == 0 -> padded
    ln_b = pad_last(params["ln_b"])         # lanes stay exactly zero after LN

    kernel = functools.partial(
        mgd_kernel,
        num_layers=num_layers, total_iters=total_iters, alpha=float(alpha),
        eps=float(eps), rescale=rescale, residual=residual, h_real=h,
        s_resident=s_resident, row_tile=row_tile, n_slots=n_slots)

    vmem = pl.BlockSpec(memory_space=pltpu.MemorySpace.VMEM)
    s_spec = vmem if s_resident else pl.BlockSpec(memory_space=pl.ANY)
    scratch = []
    if not s_resident:
        scratch = [pltpu.VMEM((n_slots, row_tile, n_pad), prop_dtype),
                   pltpu.SemaphoreType.DMA((n_slots,))]

    out = pl.pallas_call(
        kernel,
        out_shape=jax.ShapeDtypeStruct((n_pad, hp), jnp.float32),
        in_specs=[vmem, vmem, s_spec] + [vmem] * 9,
        out_specs=vmem,
        scratch_shapes=scratch,
        compiler_params=pltpu.CompilerParams(vmem_limit_bytes=vmem_limit),
    )(x_p, nf_p, s_mx,
      w_ext, b_ext, ww_fwd, ww_bwd, b_w, wu_fwd, b_u, ln_g, ln_b)
    return out[:n, :h]


# ------------------------- plain-JAX reference ------------------------------ #

def mgd_reference(x, s, nf, params, *, num_layers, total_iters, alpha,
                  rescale=True, residual=True, eps=1e-5):
    xh = x @ params["w_ext"] + params["b_ext"]
    z = jnp.zeros_like(xh)
    for _ in range(total_iters):
        for l in range(num_layers):
            zh = nf * z if rescale else z
            a = (zh @ params["ww_fwd"][l] + params["b_w"][l]
                 + xh @ params["wu_fwd"][l] + params["b_u"][l])
            mu = a.mean(-1, keepdims=True)
            var = ((a - mu) ** 2).mean(-1, keepdims=True)
            a = (a - mu) / jnp.sqrt(var + eps) * params["ln_g"][l] + params["ln_b"][l]
            a = jnp.tanh(a)
            g = a @ params["ww_bwd"][l]
            if rescale:
                g = nf * g
            z = (1.0 - alpha) * z + alpha * (s @ g)
    if residual:
        return (nf * z + xh) if rescale else (z + xh)
    return z


# --------------------------------- main -------------------------------------- #

if __name__ == "__main__":
    # Small config consistent with the module signature.
    N = 64            # number of graph nodes
    C_IN = 16         # in_channels
    HID = 32          # hidden_channels
    NUM_LAYERS = 2    # num_layers
    ALPHA = 0.5       # alpha
    ITER_NUMS = (4, 2)                 # (total_num, grad_num)
    TOTAL_ITERS = ITER_NUMS[0]         # no_grad + grad iterations run in forward

    key = jax.random.PRNGKey(0)
    ks = jax.random.split(key, 4)

    # Node features.
    x = jax.random.normal(ks[0], (N, C_IN), dtype=jnp.float32)

    # Synthetic undirected ring graph -> dense symmetric-normalized adjacency.
    idx = jnp.arange(N)
    adj = jnp.zeros((N, N), dtype=jnp.float32)
    adj = adj.at[idx, (idx + 1) % N].set(1.0)
    adj = adj.at[(idx + 1) % N, idx].set(1.0)
    deg = adj.sum(axis=1)
    d_inv_sqrt = 1.0 / jnp.sqrt(jnp.maximum(deg, 1.0))
    s = adj * d_inv_sqrt[:, None] * d_inv_sqrt[None, :]          # (N, N)
    norm_factor = d_inv_sqrt[:, None].astype(jnp.float32)        # (N, 1)

    # Deterministic parameter init (kaiming_normal_ style, zero bias, LN gamma=1).
    def kaiming(k, fan_in, shape):
        return (jax.random.normal(k, shape, dtype=jnp.float32)
                * jnp.sqrt(2.0 / fan_in))

    w_ext = kaiming(ks[1], C_IN, (C_IN, HID))                    # x @ w_ext
    ww_torch = kaiming(ks[2], HID, (NUM_LAYERS, HID, HID))       # torch (out, in)
    wu_torch = kaiming(ks[3], HID, (NUM_LAYERS, HID, HID))
    params = dict(
        w_ext=w_ext, b_ext=jnp.zeros((1, HID), jnp.float32),
        ww_fwd=jnp.transpose(ww_torch, (0, 2, 1)),   # z @ W.T
        ww_bwd=ww_torch,                             # a @ W   (weight tying)
        b_w=jnp.zeros((NUM_LAYERS, 1, HID), jnp.float32),
        wu_fwd=jnp.transpose(wu_torch, (0, 2, 1)),
        b_u=jnp.zeros((NUM_LAYERS, 1, HID), jnp.float32),
        ln_g=jnp.ones((NUM_LAYERS, 1, HID), jnp.float32),
        ln_b=jnp.zeros((NUM_LAYERS, 1, HID), jnp.float32),
    )

    ref = mgd_reference(x, s, norm_factor, params,
                        num_layers=NUM_LAYERS, total_iters=TOTAL_ITERS,
                        alpha=ALPHA, rescale=True, residual=True)

    # Tolerance relaxed vs the pure-f32 reference because the S @ g propagation
    # runs in bf16 (f32 accumulation) inside the fixed-point iteration.
    TOL = 3e-2

    # 1) VMEM-resident-S fast path (small graphs / plenty of VMEM).
    out = mgd_forward(x, s, norm_factor, params,
                      num_layers=NUM_LAYERS, total_iters=TOTAL_ITERS,
                      alpha=ALPHA, rescale=True, residual=True)
    out = jax.block_until_ready(out)
    assert out.shape == (N, HID)
    assert jnp.allclose(out, ref, rtol=TOL, atol=TOL), float(
        jnp.max(jnp.abs(out - ref)))

    # 2) Streamed, double-buffered-S path (large graphs), exercised here at a
    #    small row tile so the manual DMA pipeline (pre-issue + refill) runs.
    out_s = mgd_forward(x, s, norm_factor, params,
                        num_layers=NUM_LAYERS, total_iters=TOTAL_ITERS,
                        alpha=ALPHA, rescale=True, residual=True,
                        force_stream=True, stream_row_tile=16)
    out_s = jax.block_until_ready(out_s)
    assert out_s.shape == (N, HID)
    assert jnp.allclose(out_s, ref, rtol=TOL, atol=TOL), float(
        jnp.max(jnp.abs(out_s - ref)))

    print("KERNEL_OK")
</pallas_src>

<mosaic_0001>
module attributes {stable_mosaic.version = 11 : i64} {
  func.func @mgd_kernel(%arg0: memref<64x16xf32, #tpu.memory_space<vmem>>, %arg1: memref<64x1xf32, #tpu.memory_space<vmem>>, %arg2: memref<64x64xbf16, #tpu.memory_space<vmem>>, %arg3: memref<16x128xf32, #tpu.memory_space<vmem>>, %arg4: memref<1x128xf32, #tpu.memory_space<vmem>>, %arg5: memref<2x128x128xf32, #tpu.memory_space<vmem>>, %arg6: memref<2x128x128xf32, #tpu.memory_space<vmem>>, %arg7: memref<2x1x128xf32, #tpu.memory_space<vmem>>, %arg8: memref<2x128x128xf32, #tpu.memory_space<vmem>>, %arg9: memref<2x1x128xf32, #tpu.memory_space<vmem>>, %arg10: memref<2x1x128xf32, #tpu.memory_space<vmem>>, %arg11: memref<2x1x128xf32, #tpu.memory_space<vmem>>, %arg12: memref<64x128xf32, #tpu.memory_space<vmem>>) attributes {dimension_semantics = [], scalar_prefetch = 0 : i64, scratch_operands = 0 : i64, tpu.core_type = #tpu.core_type<tc>} {
    %c0 = arith.constant 0 : index
    %c0_0 = arith.constant 0 : index
    %0 = vector.load %arg1[%c0, %c0_0] : memref<64x1xf32, #tpu.memory_space<vmem>>, vector<64x1xf32>
    %c0_1 = arith.constant 0 : index
    %c0_2 = arith.constant 0 : index
    %1 = vector.load %arg0[%c0_1, %c0_2] : memref<64x16xf32, #tpu.memory_space<vmem>>, vector<64x16xf32>
    %c0_3 = arith.constant 0 : index
    %c0_4 = arith.constant 0 : index
    %2 = vector.load %arg3[%c0_3, %c0_4] : memref<16x128xf32, #tpu.memory_space<vmem>>, vector<16x128xf32>
    %cst = arith.constant dense<0.000000e+00> : vector<64x128xf32>
    %3 = tpu.matmul %1, %2, %cst {dimension_numbers = #tpu.dot_dimension_numbers<[1], [0], [0], [1], [0, 0, 1, 1], [], []>} : vector<64x16xf32>, vector<16x128xf32>, vector<64x128xf32> -> vector<64x128xf32>
    %c0_5 = arith.constant 0 : index
    %c0_6 = arith.constant 0 : index
    %4 = vector.load %arg4[%c0_5, %c0_6] : memref<1x128xf32, #tpu.memory_space<vmem>>, vector<1x128xf32>
    %5 = vector.broadcast %4 : vector<1x128xf32> to vector<64x128xf32>
    %6 = arith.addf %3, %5 : vector<64x128xf32>
    %7 = tpu.iota {dimensions = array<i32: 1>} : vector<1x128xi32>
    %c32_i32 = arith.constant 32 : i32
    %8 = vector.broadcast %c32_i32 : i32 to vector<1x128xi32>
    %9 = arith.cmpi slt, %7, %8 : vector<1x128xi32>
    %c0_7 = arith.constant 0 : index
    %c0_8 = arith.constant 0 : index
    %c0_9 = arith.constant 0 : index
    %10 = vector.load %arg8[%c0_7, %c0_8, %c0_9] : memref<2x128x128xf32, #tpu.memory_space<vmem>>, vector<1x128x128xf32>
    %11 = vector.shape_cast %10 : vector<1x128x128xf32> to vector<128x128xf32>
    %cst_10 = arith.constant dense<0.000000e+00> : vector<64x128xf32>
    %12 = tpu.matmul %6, %11, %cst_10 {dimension_numbers = #tpu.dot_dimension_numbers<[1], [0], [0], [1], [0, 0, 1, 1], [], []>} : vector<64x128xf32>, vector<128x128xf32>, vector<64x128xf32> -> vector<64x128xf32>
    %c0_11 = arith.constant 0 : index
    %c0_12 = arith.constant 0 : index
    %c0_13 = arith.constant 0 : index
    %13 = vector.load %arg9[%c0_11, %c0_12, %c0_13] : memref<2x1x128xf32, #tpu.memory_space<vmem>>, vector<1x1x128xf32>
    %14 = vector.shape_cast %13 : vector<1x1x128xf32> to vector<1x128xf32>
    %15 = vector.broadcast %14 : vector<1x128xf32> to vector<64x128xf32>
    %16 = arith.addf %12, %15 : vector<64x128xf32>
    %c0_14 = arith.constant 0 : index
    %c0_15 = arith.constant 0 : index
    %c0_16 = arith.constant 0 : index
    %17 = vector.load %arg7[%c0_14, %c0_15, %c0_16] : memref<2x1x128xf32, #tpu.memory_space<vmem>>, vector<1x1x128xf32>
    %18 = vector.shape_cast %17 : vector<1x1x128xf32> to vector<1x128xf32>
    %19 = vector.broadcast %18 : vector<1x128xf32> to vector<64x128xf32>
    %20 = arith.addf %16, %19 : vector<64x128xf32>
    %c1 = arith.constant 1 : index
    %c0_17 = arith.constant 0 : index
    %c0_18 = arith.constant 0 : index
    %21 = vector.load %arg8[%c1, %c0_17, %c0_18] : memref<2x128x128xf32, #tpu.memory_space<vmem>>, vector<1x128x128xf32>
    %22 = vector.shape_cast %21 : vector<1x128x128xf32> to vector<128x128xf32>
    %cst_19 = arith.constant dense<0.000000e+00> : vector<64x128xf32>
    %23 = tpu.matmul %6, %22, %cst_19 {dimension_numbers = #tpu.dot_dimension_numbers<[1], [0], [0], [1], [0, 0, 1, 1], [], []>} : vector<64x128xf32>, vector<128x128xf32>, vector<64x128xf32> -> vector<64x128xf32>
    %c1_20 = arith.constant 1 : index
    %c0_21 = arith.constant 0 : index
    %c0_22 = arith.constant 0 : index
    %24 = vector.load %arg9[%c1_20, %c0_21, %c0_22] : memref<2x1x128xf32, #tpu.memory_space<vmem>>, vector<1x1x128xf32>
    %25 = vector.shape_cast %24 : vector<1x1x128xf32> to vector<1x128xf32>
    %26 = vector.broadcast %25 : vector<1x128xf32> to vector<64x128xf32>
    %27 = arith.addf %23, %26 : vector<64x128xf32>
    %c1_23 = arith.constant 1 : index
    %c0_24 = arith.constant 0 : index
    %c0_25 = arith.constant 0 : index
    %28 = vector.load %arg7[%c1_23, %c0_24, %c0_25] : memref<2x1x128xf32, #tpu.memory_space<vmem>>, vector<1x1x128xf32>
    %29 = vector.shape_cast %28 : vector<1x1x128xf32> to vector<1x128xf32>
    %30 = vector.broadcast %29 : vector<1x128xf32> to vector<64x128xf32>
    %31 = arith.addf %27, %30 : vector<64x128xf32>
    %cst_26 = arith.constant dense<0.000000e+00> : vector<64xf32>
    %32 = vector.multi_reduction <add>, %20, %cst_26 [1] : vector<64x128xf32> to vector<64xf32>
    %33 = vector.shape_cast %32 : vector<64xf32> to vector<64x1xf32>
    %cst_27 = arith.constant 3.125000e-02 : f32
    %34 = vector.broadcast %cst_27 : f32 to vector<64x1xf32>
    %35 = arith.mulf %33, %34 : vector<64x1xf32>
    %36 = vector.broadcast %35 : vector<64x1xf32> to vector<64x128xf32>
    %37 = arith.subf %20, %36 : vector<64x128xf32>
    %cst_28 = arith.constant 0.000000e+00 : f32
    %38 = vector.shape_cast %9 : vector<1x128xi1> to vector<1x128xi1>
    %39 = vector.broadcast %38 : vector<1x128xi1> to vector<64x128xi1>
    %40 = vector.broadcast %cst_28 : f32 to vector<64x128xf32>
    %41 = arith.select %39, %37, %40 : vector<64x128xi1>, vector<64x128xf32>
    %42 = arith.mulf %41, %41 : vector<64x128xf32>
    %cst_29 = arith.constant dense<0.000000e+00> : vector<64xf32>
    %43 = vector.multi_reduction <add>, %42, %cst_29 [1] : vector<64x128xf32> to vector<64xf32>
    %44 = vector.shape_cast %43 : vector<64xf32> to vector<64x1xf32>
    %cst_30 = arith.constant 3.125000e-02 : f32
    %45 = vector.broadcast %cst_30 : f32 to vector<64x1xf32>
    %46 = arith.mulf %44, %45 : vector<64x1xf32>
    %cst_31 = arith.constant 9.99999974E-6 : f32
    %47 = vector.broadcast %cst_31 : f32 to vector<64x1xf32>
    %48 = arith.addf %46, %47 : vector<64x1xf32>
    %49 = math.rsqrt %48 : vector<64x1xf32>
    %50 = vector.broadcast %49 : vector<64x1xf32> to vector<64x128xf32>
    %51 = arith.mulf %41, %50 : vector<64x128xf32>
    %c0_32 = arith.constant 0 : index
    %c0_33 = arith.constant 0 : index
    %c0_34 = arith.constant 0 : index
    %52 = vector.load %arg10[%c0_32, %c0_33, %c0_34] : memref<2x1x128xf32, #tpu.memory_space<vmem>>, vector<1x1x128xf32>
    %53 = vector.shape_cast %52 : vector<1x1x128xf32> to vector<1x128xf32>
    %54 = vector.broadcast %53 : vector<1x128xf32> to vector<64x128xf32>
    %55 = arith.mulf %51, %54 : vector<64x128xf32>
    %c0_35 = arith.constant 0 : index
    %c0_36 = arith.constant 0 : index
    %c0_37 = arith.constant 0 : index
    %56 = vector.load %arg11[%c0_35, %c0_36, %c0_37] : memref<2x1x128xf32, #tpu.memory_space<vmem>>, vector<1x1x128xf32>
    %57 = vector.shape_cast %56 : vector<1x1x128xf32> to vector<1x128xf32>
    %58 = vector.broadcast %57 : vector<1x128xf32> to vector<64x128xf32>
    %59 = arith.addf %55, %58 : vector<64x128xf32>
    %60 = math.tanh %59 : vector<64x128xf32>
    %c0_38 = arith.constant 0 : index
    %c0_39 = arith.constant 0 : index
    %c0_40 = arith.constant 0 : index
    %61 = vector.load %arg6[%c0_38, %c0_39, %c0_40] : memref<2x128x128xf32, #tpu.memory_space<vmem>>, vector<1x128x128xf32>
    %62 = vector.shape_cast %61 : vector<1x128x128xf32> to vector<128x128xf32>
    %cst_41 = arith.constant dense<0.000000e+00> : vector<64x128xf32>
    %63 = tpu.matmul %60, %62, %cst_41 {dimension_numbers = #tpu.dot_dimension_numbers<[1], [0], [0], [1], [0, 0, 1, 1], [], []>} : vector<64x128xf32>, vector<128x128xf32>, vector<64x128xf32> -> vector<64x128xf32>
    %64 = vector.broadcast %0 : vector<64x1xf32> to vector<64x128xf32>
    %65 = arith.mulf %64, %63 : vector<64x128xf32>
    %66 = arith.truncf %65 : vector<64x128xf32> to vector<64x128xbf16>
    %c0_42 = arith.constant 0 : index
    %c0_43 = arith.constant 0 : index
    %67 = vector.load %arg2[%c0_42, %c0_43] : memref<64x64xbf16, #tpu.memory_space<vmem>>, vector<64x64xbf16>
    %cst_44 = arith.constant dense<0.000000e+00> : vector<64x128xf32>
    %68 = tpu.matmul %67, %66, %cst_44 {dimension_numbers = #tpu.dot_dimension_numbers<[1], [0], [0], [1], [0, 0, 1, 1], [], []>} : vector<64x64xbf16>, vector<64x128xbf16>, vector<64x128xf32> -> vector<64x128xf32>
    %cst_45 = arith.constant 5.000000e-01 : f32
    %69 = vector.broadcast %cst_45 : f32 to vector<64x128xf32>
    %70 = arith.mulf %69, %68 : vector<64x128xf32>
    %c0_46 = arith.constant 0 : index
    %c0_47 = arith.constant 0 : index
    %71 = vector.load %arg12[%c0_46, %c0_47] : memref<64x128xf32, #tpu.memory_space<vmem>>, vector<64x128xf32>
    tpu.vector_store %arg12[%c0_46, %c0_47], %70 {strides = array<i32>} : memref<64x128xf32, #tpu.memory_space<vmem>>, vector<64x128xf32>,
    %c0_48 = arith.constant 0 : index
    %c0_49 = arith.constant 0 : index
    %72 = vector.load %arg12[%c0_48, %c0_49] : memref<64x128xf32, #tpu.memory_space<vmem>>, vector<64x128xf32>
    %73 = vector.broadcast %0 : vector<64x1xf32> to vector<64x128xf32>
    %74 = arith.mulf %73, %72 : vector<64x128xf32>
    %c1_50 = arith.constant 1 : index
    %c0_51 = arith.constant 0 : index
    %c0_52 = arith.constant 0 : index
    %75 = vector.load %arg5[%c1_50, %c0_51, %c0_52] : memref<2x128x128xf32, #tpu.memory_space<vmem>>, vector<1x128x128xf32>
    %76 = vector.shape_cast %75 : vector<1x128x128xf32> to vector<128x128xf32>
    %cst_53 = arith.constant dense<0.000000e+00> : vector<64x128xf32>
    %77 = tpu.matmul %74, %76, %cst_53 {dimension_numbers = #tpu.dot_dimension_numbers<[1], [0], [0], [1], [0, 0, 1, 1], [], []>} : vector<64x128xf32>, vector<128x128xf32>, vector<64x128xf32> -> vector<64x128xf32>
    %78 = arith.addf %77, %31 : vector<64x128xf32>
    %cst_54 = arith.constant dense<0.000000e+00> : vector<64xf32>
    %79 = vector.multi_reduction <add>, %78, %cst_54 [1] : vector<64x128xf32> to vector<64xf32>
    %80 = vector.shape_cast %79 : vector<64xf32> to vector<64x1xf32>
    %cst_55 = arith.constant 3.125000e-02 : f32
    %81 = vector.broadcast %cst_55 : f32 to vector<64x1xf32>
    %82 = arith.mulf %80, %81 : vector<64x1xf32>
    %83 = vector.broadcast %82 : vector<64x1xf32> to vector<64x128xf32>
    %84 = arith.subf %78, %83 : vector<64x128xf32>
    %cst_56 = arith.constant 0.000000e+00 : f32
    %85 = vector.shape_cast %9 : vector<1x128xi1> to vector<1x128xi1>
    %86 = vector.broadcast %85 : vector<1x128xi1> to vector<64x128xi1>
    %87 = vector.broadcast %cst_56 : f32 to vector<64x128xf32>
    %88 = arith.select %86, %84, %87 : vector<64x128xi1>, vector<64x128xf32>
    %89 = arith.mulf %88, %88 : vector<64x128xf32>
    %cst_57 = arith.constant dense<0.000000e+00> : vector<64xf32>
    %90 = vector.multi_reduction <add>, %89, %cst_57 [1] : vector<64x128xf32> to vector<64xf32>
    %91 = vector.shape_cast %90 : vector<64xf32> to vector<64x1xf32>
    %cst_58 = arith.constant 3.125000e-02 : f32
    %92 = vector.broadcast %cst_58 : f32 to vector<64x1xf32>
    %93 = arith.mulf %91, %92 : vector<64x1xf32>
    %cst_59 = arith.constant 9.99999974E-6 : f32
    %94 = vector.broadcast %cst_59 : f32 to vector<64x1xf32>
    %95 = arith.addf %93, %94 : vector<64x1xf32>
    %96 = math.rsqrt %95 : vector<64x1xf32>
    %97 = vector.broadcast %96 : vector<64x1xf32> to vector<64x128xf32>
    %98 = arith.mulf %88, %97 : vector<64x128xf32>
    %c1_60 = arith.constant 1 : index
    %c0_61 = arith.constant 0 : index
    %c0_62 = arith.constant 0 : index
    %99 = vector.load %arg10[%c1_60, %c0_61, %c0_62] : memref<2x1x128xf32, #tpu.memory_space<vmem>>, vector<1x1x128xf32>
    %100 = vector.shape_cast %99 : vector<1x1x128xf32> to vector<1x128xf32>
    %101 = vector.broadcast %100 : vector<1x128xf32> to vector<64x128xf32>
    %102 = arith.mulf %98, %101 : vector<64x128xf32>
    %c1_63 = arith.constant 1 : index
    %c0_64 = arith.constant 0 : index
    %c0_65 = arith.constant 0 : index
    %103 = vector.load %arg11[%c1_63, %c0_64, %c0_65] : memref<2x1x128xf32, #tpu.memory_space<vmem>>, vector<1x1x128xf32>
    %104 = vector.shape_cast %103 : vector<1x1x128xf32> to vector<1x128xf32>
    %105 = vector.broadcast %104 : vector<1x128xf32> to vector<64x128xf32>
    %106 = arith.addf %102, %105 : vector<64x128xf32>
    %107 = math.tanh %106 : vector<64x128xf32>
    %c1_66 = arith.constant 1 : index
    %c0_67 = arith.constant 0 : index
    %c0_68 = arith.constant 0 : index
    %108 = vector.load %arg6[%c1_66, %c0_67, %c0_68] : memref<2x128x128xf32, #tpu.memory_space<vmem>>, vector<1x128x128xf32>
    %109 = vector.shape_cast %108 : vector<1x128x128xf32> to vector<128x128xf32>
    %cst_69 = arith.constant dense<0.000000e+00> : vector<64x128xf32>
    %110 = tpu.matmul %107, %109, %cst_69 {dimension_numbers = #tpu.dot_dimension_numbers<[1], [0], [0], [1], [0, 0, 1, 1], [], []>} : vector<64x128xf32>, vector<128x128xf32>, vector<64x128xf32> -> vector<64x128xf32>
    %111 = vector.broadcast %0 : vector<64x1xf32> to vector<64x128xf32>
    %112 = arith.mulf %111, %110 : vector<64x128xf32>
    %113 = arith.truncf %112 : vector<64x128xf32> to vector<64x128xbf16>
    %c0_70 = arith.constant 0 : index
    %c0_71 = arith.constant 0 : index
    %114 = vector.load %arg2[%c0_70, %c0_71] : memref<64x64xbf16, #tpu.memory_space<vmem>>, vector<64x64xbf16>
    %cst_72 = arith.constant dense<0.000000e+00> : vector<64x128xf32>
    %115 = tpu.matmul %114, %113, %cst_72 {dimension_numbers = #tpu.dot_dimension_numbers<[1], [0], [0], [1], [0, 0, 1, 1], [], []>} : vector<64x64xbf16>, vector<64x128xbf16>, vector<64x128xf32> -> vector<64x128xf32>
    %c0_73 = arith.constant 0 : index
    %c0_74 = arith.constant 0 : index
    %116 = vector.load %arg12[%c0_73, %c0_74] : memref<64x128xf32, #tpu.memory_space<vmem>>, vector<64x128xf32>
    %cst_75 = arith.constant 5.000000e-01 : f32
    %117 = vector.broadcast %cst_75 : f32 to vector<64x128xf32>
    %118 = arith.mulf %117, %116 : vector<64x128xf32>
    %cst_76 = arith.constant 5.000000e-01 : f32
    %119 = vector.broadcast %cst_76 : f32 to vector<64x128xf32>
    %120 = arith.mulf %119, %115 : vector<64x128xf32>
    %121 = arith.addf %118, %120 : vector<64x128xf32>
    %c0_77 = arith.constant 0 : index
    %c0_78 = arith.constant 0 : index
    %122 = vector.load %arg12[%c0_77, %c0_78] : memref<64x128xf32, #tpu.memory_space<vmem>>, vector<64x128xf32>
    tpu.vector_store %arg12[%c0_77, %c0_78], %121 {strides = array<i32>} : memref<64x128xf32, #tpu.memory_space<vmem>>, vector<64x128xf32>,
    %c0_79 = arith.constant 0 : index
    %c0_80 = arith.constant 0 : index
    %123 = vector.load %arg12[%c0_79, %c0_80] : memref<64x128xf32, #tpu.memory_space<vmem>>, vector<64x128xf32>
    %124 = vector.broadcast %0 : vector<64x1xf32> to vector<64x128xf32>
    %125 = arith.mulf %124, %123 : vector<64x128xf32>
    %c0_81 = arith.constant 0 : index
    %c0_82 = arith.constant 0 : index
    %c0_83 = arith.constant 0 : index
    %126 = vector.load %arg5[%c0_81, %c0_82, %c0_83] : memref<2x128x128xf32, #tpu.memory_space<vmem>>, vector<1x128x128xf32>
    %127 = vector.shape_cast %126 : vector<1x128x128xf32> to vector<128x128xf32>
    %cst_84 = arith.constant dense<0.000000e+00> : vector<64x128xf32>
    %128 = tpu.matmul %125, %127, %cst_84 {dimension_numbers = #tpu.dot_dimension_numbers<[1], [0], [0], [1], [0, 0, 1, 1], [], []>} : vector<64x128xf32>, vector<128x128xf32>, vector<64x128xf32> -> vector<64x128xf32>
    %129 = arith.addf %128, %20 : vector<64x128xf32>
    %cst_85 = arith.constant dense<0.000000e+00> : vector<64xf32>
    %130 = vector.multi_reduction <add>, %129, %cst_85 [1] : vector<64x128xf32> to vector<64xf32>
    %131 = vector.shape_cast %130 : vector<64xf32> to vector<64x1xf32>
    %cst_86 = arith.constant 3.125000e-02 : f32
    %132 = vector.broadcast %cst_86 : f32 to vector<64x1xf32>
    %133 = arith.mulf %131, %132 : vector<64x1xf32>
    %134 = vector.broadcast %133 : vector<64x1xf32> to vector<64x128xf32>
    %135 = arith.subf %129, %134 : vector<64x128xf32>
    %cst_87 = arith.constant 0.000000e+00 : f32
    %136 = vector.shape_cast %9 : vector<1x128xi1> to vector<1x128xi1>
    %137 = vector.broadcast %136 : vector<1x128xi1> to vector<64x128xi1>
    %138 = vector.broadcast %cst_87 : f32 to vector<64x128xf32>
    %139 = arith.select %137, %135, %138 : vector<64x128xi1>, vector<64x128xf32>
    %140 = arith.mulf %139, %139 : vector<64x128xf32>
    %cst_88 = arith.constant dense<0.000000e+00> : vector<64xf32>
    %141 = vector.multi_reduction <add>, %140, %cst_88 [1] : vector<64x128xf32> to vector<64xf32>
    %142 = vector.shape_cast %141 : vector<64xf32> to vector<64x1xf32>
    %cst_89 = arith.constant 3.125000e-02 : f32
    %143 = vector.broadcast %cst_89 : f32 to vector<64x1xf32>
    %144 = arith.mulf %142, %143 : vector<64x1xf32>
    %cst_90 = arith.constant 9.99999974E-6 : f32
    %145 = vector.broadcast %cst_90 : f32 to vector<64x1xf32>
    %146 = arith.addf %144, %145 : vector<64x1xf32>
    %147 = math.rsqrt %146 : vector<64x1xf32>
    %148 = vector.broadcast %147 : vector<64x1xf32> to vector<64x128xf32>
    %149 = arith.mulf %139, %148 : vector<64x128xf32>
    %c0_91 = arith.constant 0 : index
    %c0_92 = arith.constant 0 : index
    %c0_93 = arith.constant 0 : index
    %150 = vector.load %arg10[%c0_91, %c0_92, %c0_93] : memref<2x1x128xf32, #tpu.memory_space<vmem>>, vector<1x1x128xf32>
    %151 = vector.shape_cast %150 : vector<1x1x128xf32> to vector<1x128xf32>
    %152 = vector.broadcast %151 : vector<1x128xf32> to vector<64x128xf32>
    %153 = arith.mulf %149, %152 : vector<64x128xf32>
    %c0_94 = arith.constant 0 : index
    %c0_95 = arith.constant 0 : index
    %c0_96 = arith.constant 0 : index
    %154 = vector.load %arg11[%c0_94, %c0_95, %c0_96] : memref<2x1x128xf32, #tpu.memory_space<vmem>>, vector<1x1x128xf32>
    %155 = vector.shape_cast %154 : vector<1x1x128xf32> to vector<1x128xf32>
    %156 = vector.broadcast %155 : vector<1x128xf32> to vector<64x128xf32>
    %157 = arith.addf %153, %156 : vector<64x128xf32>
    %158 = math.tanh %157 : vector<64x128xf32>
    %c0_97 = arith.constant 0 : index
    %c0_98 = arith.constant 0 : index
    %c0_99 = arith.constant 0 : index
    %159 = vector.load %arg6[%c0_97, %c0_98, %c0_99] : memref<2x128x128xf32, #tpu.memory_space<vmem>>, vector<1x128x128xf32>
    %160 = vector.shape_cast %159 : vector<1x128x128xf32> to vector<128x128xf32>
    %cst_100 = arith.constant dense<0.000000e+00> : vector<64x128xf32>
    %161 = tpu.matmul %158, %160, %cst_100 {dimension_numbers = #tpu.dot_dimension_numbers<[1], [0], [0], [1], [0, 0, 1, 1], [], []>} : vector<64x128xf32>, vector<128x128xf32>, vector<64x128xf32> -> vector<64x128xf32>
    %162 = vector.broadcast %0 : vector<64x1xf32> to vector<64x128xf32>
    %163 = arith.mulf %162, %161 : vector<64x128xf32>
    %164 = arith.truncf %163 : vector<64x128xf32> to vector<64x128xbf16>
    %c0_101 = arith.constant 0 : index
    %c0_102 = arith.constant 0 : index
    %165 = vector.load %arg2[%c0_101, %c0_102] : memref<64x64xbf16, #tpu.memory_space<vmem>>, vector<64x64xbf16>
    %cst_103 = arith.constant dense<0.000000e+00> : vector<64x128xf32>
    %166 = tpu.matmul %165, %164, %cst_103 {dimension_numbers = #tpu.dot_dimension_numbers<[1], [0], [0], [1], [0, 0, 1, 1], [], []>} : vector<64x64xbf16>, vector<64x128xbf16>, vector<64x128xf32> -> vector<64x128xf32>
    %c0_104 = arith.constant 0 : index
    %c0_105 = arith.constant 0 : index
    %167 = vector.load %arg12[%c0_104, %c0_105] : memref<64x128xf32, #tpu.memory_space<vmem>>, vector<64x128xf32>
    %cst_106 = arith.constant 5.000000e-01 : f32
    %168 = vector.broadcast %cst_106 : f32 to vector<64x128xf32>
    %169 = arith.mulf %168, %167 : vector<64x128xf32>
    %cst_107 = arith.constant 5.000000e-01 : f32
    %170 = vector.broadcast %cst_107 : f32 to vector<64x128xf32>
    %171 = arith.mulf %170, %166 : vector<64x128xf32>
    %172 = arith.addf %169, %171 : vector<64x128xf32>
    %c0_108 = arith.constant 0 : index
    %c0_109 = arith.constant 0 : index
    %173 = vector.load %arg12[%c0_108, %c0_109] : memref<64x128xf32, #tpu.memory_space<vmem>>, vector<64x128xf32>
    tpu.vector_store %arg12[%c0_108, %c0_109], %172 {strides = array<i32>} : memref<64x128xf32, #tpu.memory_space<vmem>>, vector<64x128xf32>,
    %c0_110 = arith.constant 0 : index
    %c0_111 = arith.constant 0 : index
    %174 = vector.load %arg12[%c0_110, %c0_111] : memref<64x128xf32, #tpu.memory_space<vmem>>, vector<64x128xf32>
    %175 = vector.broadcast %0 : vector<64x1xf32> to vector<64x128xf32>
    %176 = arith.mulf %175, %174 : vector<64x128xf32>
    %c1_112 = arith.constant 1 : index
    %c0_113 = arith.constant 0 : index
    %c0_114 = arith.constant 0 : index
    %177 = vector.load %arg5[%c1_112, %c0_113, %c0_114] : memref<2x128x128xf32, #tpu.memory_space<vmem>>, vector<1x128x128xf32>
    %178 = vector.shape_cast %177 : vector<1x128x128xf32> to vector<128x128xf32>
    %cst_115 = arith.constant dense<0.000000e+00> : vector<64x128xf32>
    %179 = tpu.matmul %176, %178, %cst_115 {dimension_numbers = #tpu.dot_dimension_numbers<[1], [0], [0], [1], [0, 0, 1, 1], [], []>} : vector<64x128xf32>, vector<128x128xf32>, vector<64x128xf32> -> vector<64x128xf32>
    %180 = arith.addf %179, %31 : vector<64x128xf32>
    %cst_116 = arith.constant dense<0.000000e+00> : vector<64xf32>
    %181 = vector.multi_reduction <add>, %180, %cst_116 [1] : vector<64x128xf32> to vector<64xf32>
    %182 = vector.shape_cast %181 : vector<64xf32> to vector<64x1xf32>
    %cst_117 = arith.constant 3.125000e-02 : f32
    %183 = vector.broadcast %cst_117 : f32 to vector<64x1xf32>
    %184 = arith.mulf %182, %183 : vector<64x1xf32>
    %185 = vector.broadcast %184 : vector<64x1xf32> to vector<64x128xf32>
    %186 = arith.subf %180, %185 : vector<64x128xf32>
    %cst_118 = arith.constant 0.000000e+00 : f32
    %187 = vector.shape_cast %9 : vector<1x128xi1> to vector<1x128xi1>
    %188 = vector.broadcast %187 : vector<1x128xi1> to vector<64x128xi1>
    %189 = vector.broadcast %cst_118 : f32 to vector<64x128xf32>
    %190 = arith.select %188, %186, %189 : vector<64x128xi1>, vector<64x128xf32>
    %191 = arith.mulf %190, %190 : vector<64x128xf32>
    %cst_119 = arith.constant dense<0.000000e+00> : vector<64xf32>
    %192 = vector.multi_reduction <add>, %191, %cst_119 [1] : vector<64x128xf32> to vector<64xf32>
    %193 = vector.shape_cast %192 : vector<64xf32> to vector<64x1xf32>
    %cst_120 = arith.constant 3.125000e-02 : f32
    %194 = vector.broadcast %cst_120 : f32 to vector<64x1xf32>
    %195 = arith.mulf %193, %194 : vector<64x1xf32>
    %cst_121 = arith.constant 9.99999974E-6 : f32
    %196 = vector.broadcast %cst_121 : f32 to vector<64x1xf32>
    %197 = arith.addf %195, %196 : vector<64x1xf32>
    %198 = math.rsqrt %197 : vector<64x1xf32>
    %199 = vector.broadcast %198 : vector<64x1xf32> to vector<64x128xf32>
    %200 = arith.mulf %190, %199 : vector<64x128xf32>
    %c1_122 = arith.constant 1 : index
    %c0_123 = arith.constant 0 : index
    %c0_124 = arith.constant 0 : index
    %201 = vector.load %arg10[%c1_122, %c0_123, %c0_124] : memref<2x1x128xf32, #tpu.memory_space<vmem>>, vector<1x1x128xf32>
    %202 = vector.shape_cast %201 : vector<1x1x128xf32> to vector<1x128xf32>
    %203 = vector.broadcast %202 : vector<1x128xf32> to vector<64x128xf32>
    %204 = arith.mulf %200, %203 : vector<64x128xf32>
    %c1_125 = arith.constant 1 : index
    %c0_126 = arith.constant 0 : index
    %c0_127 = arith.constant 0 : index
    %205 = vector.load %arg11[%c1_125, %c0_126, %c0_127] : memref<2x1x128xf32, #tpu.memory_space<vmem>>, vector<1x1x128xf32>
    %206 = vector.shape_cast %205 : vector<1x1x128xf32> to vector<1x128xf32>
    %207 = vector.broadcast %206 : vector<1x128xf32> to vector<64x128xf32>
    %208 = arith.addf %204, %207 : vector<64x128xf32>
    %209 = math.tanh %208 : vector<64x128xf32>
    %c1_128 = arith.constant 1 : index
    %c0_129 = arith.constant 0 : index
    %c0_130 = arith.constant 0 : index
    %210 = vector.load %arg6[%c1_128, %c0_129, %c0_130] : memref<2x128x128xf32, #tpu.memory_space<vmem>>, vector<1x128x128xf32>
    %211 = vector.shape_cast %210 : vector<1x128x128xf32> to vector<128x128xf32>
    %cst_131 = arith.constant dense<0.000000e+00> : vector<64x128xf32>
    %212 = tpu.matmul %209, %211, %cst_131 {dimension_numbers = #tpu.dot_dimension_numbers<[1], [0], [0], [1], [0, 0, 1, 1], [], []>} : vector<64x128xf32>, vector<128x128xf32>, vector<64x128xf32> -> vector<64x128xf32>
    %213 = vector.broadcast %0 : vector<64x1xf32> to vector<64x128xf32>
    %214 = arith.mulf %213, %212 : vector<64x128xf32>
    %215 = arith.truncf %214 : vector<64x128xf32> to vector<64x128xbf16>
    %c0_132 = arith.constant 0 : index
    %c0_133 = arith.constant 0 : index
    %216 = vector.load %arg2[%c0_132, %c0_133] : memref<64x64xbf16, #tpu.memory_space<vmem>>, vector<64x64xbf16>
    %cst_134 = arith.constant dense<0.000000e+00> : vector<64x128xf32>
    %217 = tpu.matmul %216, %215, %cst_134 {dimension_numbers = #tpu.dot_dimension_numbers<[1], [0], [0], [1], [0, 0, 1, 1], [], []>} : vector<64x64xbf16>, vector<64x128xbf16>, vector<64x128xf32> -> vector<64x128xf32>
    %c0_135 = arith.constant 0 : index
    %c0_136 = arith.constant 0 : index
    %218 = vector.load %arg12[%c0_135, %c0_136] : memref<64x128xf32, #tpu.memory_space<vmem>>, vector<64x128xf32>
    %cst_137 = arith.constant 5.000000e-01 : f32
    %219 = vector.broadcast %cst_137 : f32 to vector<64x128xf32>
    %220 = arith.mulf %219, %218 : vector<64x128xf32>
    %cst_138 = arith.constant 5.000000e-01 : f32
    %221 = vector.broadcast %cst_138 : f32 to vector<64x128xf32>
    %222 = arith.mulf %221, %217 : vector<64x128xf32>
    %223 = arith.addf %220, %222 : vector<64x128xf32>
    %c0_139 = arith.constant 0 : index
    %c0_140 = arith.constant 0 : index
    %224 = vector.load %arg12[%c0_139, %c0_140] : memref<64x128xf32, #tpu.memory_space<vmem>>, vector<64x128xf32>
    tpu.vector_store %arg12[%c0_139, %c0_140], %223 {strides = array<i32>} : memref<64x128xf32, #tpu.memory_space<vmem>>, vector<64x128xf32>,
    %c0_141 = arith.constant 0 : index
    %c0_142 = arith.constant 0 : index
    %225 = vector.load %arg12[%c0_141, %c0_142] : memref<64x128xf32, #tpu.memory_space<vmem>>, vector<64x128xf32>
    %226 = vector.broadcast %0 : vector<64x1xf32> to vector<64x128xf32>
    %227 = arith.mulf %226, %225 : vector<64x128xf32>
    %c0_143 = arith.constant 0 : index
    %c0_144 = arith.constant 0 : index
    %c0_145 = arith.constant 0 : index
    %228 = vector.load %arg5[%c0_143, %c0_144, %c0_145] : memref<2x128x128xf32, #tpu.memory_space<vmem>>, vector<1x128x128xf32>
    %229 = vector.shape_cast %228 : vector<1x128x128xf32> to vector<128x128xf32>
    %cst_146 = arith.constant dense<0.000000e+00> : vector<64x128xf32>
    %230 = tpu.matmul %227, %229, %cst_146 {dimension_numbers = #tpu.dot_dimension_numbers<[1], [0], [0], [1], [0, 0, 1, 1], [], []>} : vector<64x128xf32>, vector<128x128xf32>, vector<64x128xf32> -> vector<64x128xf32>
    %231 = arith.addf %230, %20 : vector<64x128xf32>
    %cst_147 = arith.constant dense<0.000000e+00> : vector<64xf32>
    %232 = vector.multi_reduction <add>, %231, %cst_147 [1] : vector<64x128xf32> to vector<64xf32>
    %233 = vector.shape_cast %232 : vector<64xf32> to vector<64x1xf32>
    %cst_148 = arith.constant 3.125000e-02 : f32
    %234 = vector.broadcast %cst_148 : f32 to vector<64x1xf32>
    %235 = arith.mulf %233, %234 : vector<64x1xf32>
    %236 = vector.broadcast %235 : vector<64x1xf32> to vector<64x128xf32>
    %237 = arith.subf %231, %236 : vector<64x128xf32>
    %cst_149 = arith.constant 0.000000e+00 : f32
    %238 = vector.shape_cast %9 : vector<1x128xi1> to vector<1x128xi1>
    %239 = vector.broadcast %238 : vector<1x128xi1> to vector<64x128xi1>
    %240 = vector.broadcast %cst_149 : f32 to vector<64x128xf32>
    %241 = arith.select %239, %237, %240 : vector<64x128xi1>, vector<64x128xf32>
    %242 = arith.mulf %241, %241 : vector<64x128xf32>
    %cst_150 = arith.constant dense<0.000000e+00> : vector<64xf32>
    %243 = vector.multi_reduction <add>, %242, %cst_150 [1] : vector<64x128xf32> to vector<64xf32>
    %244 = vector.shape_cast %243 : vector<64xf32> to vector<64x1xf32>
    %cst_151 = arith.constant 3.125000e-02 : f32
    %245 = vector.broadcast %cst_151 : f32 to vector<64x1xf32>
    %246 = arith.mulf %244, %245 : vector<64x1xf32>
    %cst_152 = arith.constant 9.99999974E-6 : f32
    %247 = vector.broadcast %cst_152 : f32 to vector<64x1xf32>
    %248 = arith.addf %246, %247 : vector<64x1xf32>
    %249 = math.rsqrt %248 : vector<64x1xf32>
    %250 = vector.broadcast %249 : vector<64x1xf32> to vector<64x128xf32>
    %251 = arith.mulf %241, %250 : vector<64x128xf32>
    %c0_153 = arith.constant 0 : index
    %c0_154 = arith.constant 0 : index
    %c0_155 = arith.constant 0 : index
    %252 = vector.load %arg10[%c0_153, %c0_154, %c0_155] : memref<2x1x128xf32, #tpu.memory_space<vmem>>, vector<1x1x128xf32>
    %253 = vector.shape_cast %252 : vector<1x1x128xf32> to vector<1x128xf32>
    %254 = vector.broadcast %253 : vector<1x128xf32> to vector<64x128xf32>
    %255 = arith.mulf %251, %254 : vector<64x128xf32>
    %c0_156 = arith.constant 0 : index
    %c0_157 = arith.constant 0 : index
    %c0_158 = arith.constant 0 : index
    %256 = vector.load %arg11[%c0_156, %c0_157, %c0_158] : memref<2x1x128xf32, #tpu.memory_space<vmem>>, vector<1x1x128xf32>
    %257 = vector.shape_cast %256 : vector<1x1x128xf32> to vector<1x128xf32>
    %258 = vector.broadcast %257 : vector<1x128xf32> to vector<64x128xf32>
    %259 = arith.addf %255, %258 : vector<64x128xf32>
    %260 = math.tanh %259 : vector<64x128xf32>
    %c0_159 = arith.constant 0 : index
    %c0_160 = arith.constant 0 : index
    %c0_161 = arith.constant 0 : index
    %261 = vector.load %arg6[%c0_159, %c0_160, %c0_161] : memref<2x128x128xf32, #tpu.memory_space<vmem>>, vector<1x128x128xf32>
    %262 = vector.shape_cast %261 : vector<1x128x128xf32> to vector<128x128xf32>
    %cst_162 = arith.constant dense<0.000000e+00> : vector<64x128xf32>
    %263 = tpu.matmul %260, %262, %cst_162 {dimension_numbers = #tpu.dot_dimension_numbers<[1], [0], [0], [1], [0, 0, 1, 1], [], []>} : vector<64x128xf32>, vector<128x128xf32>, vector<64x128xf32> -> vector<64x128xf32>
    %264 = vector.broadcast %0 : vector<64x1xf32> to vector<64x128xf32>
    %265 = arith.mulf %264, %263 : vector<64x128xf32>
    %266 = arith.truncf %265 : vector<64x128xf32> to vector<64x128xbf16>
    %c0_163 = arith.constant 0 : index
    %c0_164 = arith.constant 0 : index
    %267 = vector.load %arg2[%c0_163, %c0_164] : memref<64x64xbf16, #tpu.memory_space<vmem>>, vector<64x64xbf16>
    %cst_165 = arith.constant dense<0.000000e+00> : vector<64x128xf32>
    %268 = tpu.matmul %267, %266, %cst_165 {dimension_numbers = #tpu.dot_dimension_numbers<[1], [0], [0], [1], [0, 0, 1, 1], [], []>} : vector<64x64xbf16>, vector<64x128xbf16>, vector<64x128xf32> -> vector<64x128xf32>
    %c0_166 = arith.constant 0 : index
    %c0_167 = arith.constant 0 : index
    %269 = vector.load %arg12[%c0_166, %c0_167] : memref<64x128xf32, #tpu.memory_space<vmem>>, vector<64x128xf32>
    %cst_168 = arith.constant 5.000000e-01 : f32
    %270 = vector.broadcast %cst_168 : f32 to vector<64x128xf32>
    %271 = arith.mulf %270, %269 : vector<64x128xf32>
    %cst_169 = arith.constant 5.000000e-01 : f32
    %272 = vector.broadcast %cst_169 : f32 to vector<64x128xf32>
    %273 = arith.mulf %272, %268 : vector<64x128xf32>
    %274 = arith.addf %271, %273 : vector<64x128xf32>
    %c0_170 = arith.constant 0 : index
    %c0_171 = arith.constant 0 : index
    %275 = vector.load %arg12[%c0_170, %c0_171] : memref<64x128xf32, #tpu.memory_space<vmem>>, vector<64x128xf32>
    tpu.vector_store %arg12[%c0_170, %c0_171], %274 {strides = array<i32>} : memref<64x128xf32, #tpu.memory_space<vmem>>, vector<64x128xf32>,
    %c0_172 = arith.constant 0 : index
    %c0_173 = arith.constant 0 : index
    %276 = vector.load %arg12[%c0_172, %c0_173] : memref<64x128xf32, #tpu.memory_space<vmem>>, vector<64x128xf32>
    %277 = vector.broadcast %0 : vector<64x1xf32> to vector<64x128xf32>
    %278 = arith.mulf %277, %276 : vector<64x128xf32>
    %c1_174 = arith.constant 1 : index
    %c0_175 = arith.constant 0 : index
    %c0_176 = arith.constant 0 : index
    %279 = vector.load %arg5[%c1_174, %c0_175, %c0_176] : memref<2x128x128xf32, #tpu.memory_space<vmem>>, vector<1x128x128xf32>
    %280 = vector.shape_cast %279 : vector<1x128x128xf32> to vector<128x128xf32>
    %cst_177 = arith.constant dense<0.000000e+00> : vector<64x128xf32>
    %281 = tpu.matmul %278, %280, %cst_177 {dimension_numbers = #tpu.dot_dimension_numbers<[1], [0], [0], [1], [0, 0, 1, 1], [], []>} : vector<64x128xf32>, vector<128x128xf32>, vector<64x128xf32> -> vector<64x128xf32>
    %282 = arith.addf %281, %31 : vector<64x128xf32>
    %cst_178 = arith.constant dense<0.000000e+00> : vector<64xf32>
    %283 = vector.multi_reduction <add>, %282, %cst_178 [1] : vector<64x128xf32> to vector<64xf32>
    %284 = vector.shape_cast %283 : vector<64xf32> to vector<64x1xf32>
    %cst_179 = arith.constant 3.125000e-02 : f32
    %285 = vector.broadcast %cst_179 : f32 to vector<64x1xf32>
    %286 = arith.mulf %284, %285 : vector<64x1xf32>
    %287 = vector.broadcast %286 : vector<64x1xf32> to vector<64x128xf32>
    %288 = arith.subf %282, %287 : vector<64x128xf32>
    %cst_180 = arith.constant 0.000000e+00 : f32
    %289 = vector.shape_cast %9 : vector<1x128xi1> to vector<1x128xi1>
    %290 = vector.broadcast %289 : vector<1x128xi1> to vector<64x128xi1>
    %291 = vector.broadcast %cst_180 : f32 to vector<64x128xf32>
    %292 = arith.select %290, %288, %291 : vector<64x128xi1>, vector<64x128xf32>
    %293 = arith.mulf %292, %292 : vector<64x128xf32>
    %cst_181 = arith.constant dense<0.000000e+00> : vector<64xf32>
    %294 = vector.multi_reduction <add>, %293, %cst_181 [1] : vector<64x128xf32> to vector<64xf32>
    %295 = vector.shape_cast %294 : vector<64xf32> to vector<64x1xf32>
    %cst_182 = arith.constant 3.125000e-02 : f32
    %296 = vector.broadcast %cst_182 : f32 to vector<64x1xf32>
    %297 = arith.mulf %295, %296 : vector<64x1xf32>
    %cst_183 = arith.constant 9.99999974E-6 : f32
    %298 = vector.broadcast %cst_183 : f32 to vector<64x1xf32>
    %299 = arith.addf %297, %298 : vector<64x1xf32>
    %300 = math.rsqrt %299 : vector<64x1xf32>
    %301 = vector.broadcast %300 : vector<64x1xf32> to vector<64x128xf32>
    %302 = arith.mulf %292, %301 : vector<64x128xf32>
    %c1_184 = arith.constant 1 : index
    %c0_185 = arith.constant 0 : index
    %c0_186 = arith.constant 0 : index
    %303 = vector.load %arg10[%c1_184, %c0_185, %c0_186] : memref<2x1x128xf32, #tpu.memory_space<vmem>>, vector<1x1x128xf32>
    %304 = vector.shape_cast %303 : vector<1x1x128xf32> to vector<1x128xf32>
    %305 = vector.broadcast %304 : vector<1x128xf32> to vector<64x128xf32>
    %306 = arith.mulf %302, %305 : vector<64x128xf32>
    %c1_187 = arith.constant 1 : index
    %c0_188 = arith.constant 0 : index
    %c0_189 = arith.constant 0 : index
    %307 = vector.load %arg11[%c1_187, %c0_188, %c0_189] : memref<2x1x128xf32, #tpu.memory_space<vmem>>, vector<1x1x128xf32>
    %308 = vector.shape_cast %307 : vector<1x1x128xf32> to vector<1x128xf32>
    %309 = vector.broadcast %308 : vector<1x128xf32> to vector<64x128xf32>
    %310 = arith.addf %306, %309 : vector<64x128xf32>
    %311 = math.tanh %310 : vector<64x128xf32>
    %c1_190 = arith.constant 1 : index
    %c0_191 = arith.constant 0 : index
    %c0_192 = arith.constant 0 : index
    %312 = vector.load %arg6[%c1_190, %c0_191, %c0_192] : memref<2x128x128xf32, #tpu.memory_space<vmem>>, vector<1x128x128xf32>
    %313 = vector.shape_cast %312 : vector<1x128x128xf32> to vector<128x128xf32>
    %cst_193 = arith.constant dense<0.000000e+00> : vector<64x128xf32>
    %314 = tpu.matmul %311, %313, %cst_193 {dimension_numbers = #tpu.dot_dimension_numbers<[1], [0], [0], [1], [0, 0, 1, 1], [], []>} : vector<64x128xf32>, vector<128x128xf32>, vector<64x128xf32> -> vector<64x128xf32>
    %315 = vector.broadcast %0 : vector<64x1xf32> to vector<64x128xf32>
    %316 = arith.mulf %315, %314 : vector<64x128xf32>
    %317 = arith.truncf %316 : vector<64x128xf32> to vector<64x128xbf16>
    %c0_194 = arith.constant 0 : index
    %c0_195 = arith.constant 0 : index
    %318 = vector.load %arg2[%c0_194, %c0_195] : memref<64x64xbf16, #tpu.memory_space<vmem>>, vector<64x64xbf16>
    %cst_196 = arith.constant dense<0.000000e+00> : vector<64x128xf32>
    %319 = tpu.matmul %318, %317, %cst_196 {dimension_numbers = #tpu.dot_dimension_numbers<[1], [0], [0], [1], [0, 0, 1, 1], [], []>} : vector<64x64xbf16>, vector<64x128xbf16>, vector<64x128xf32> -> vector<64x128xf32>
    %c0_197 = arith.constant 0 : index
    %c0_198 = arith.constant 0 : index
    %320 = vector.load %arg12[%c0_197, %c0_198] : memref<64x128xf32, #tpu.memory_space<vmem>>, vector<64x128xf32>
    %cst_199 = arith.constant 5.000000e-01 : f32
    %321 = vector.broadcast %cst_199 : f32 to vector<64x128xf32>
    %322 = arith.mulf %321, %320 : vector<64x128xf32>
    %cst_200 = arith.constant 5.000000e-01 : f32
    %323 = vector.broadcast %cst_200 : f32 to vector<64x128xf32>
    %324 = arith.mulf %323, %319 : vector<64x128xf32>
    %325 = arith.addf %322, %324 : vector<64x128xf32>
    %c0_201 = arith.constant 0 : index
    %c0_202 = arith.constant 0 : index
    %326 = vector.load %arg12[%c0_201, %c0_202] : memref<64x128xf32, #tpu.memory_space<vmem>>, vector<64x128xf32>
    tpu.vector_store %arg12[%c0_201, %c0_202], %325 {strides = array<i32>} : memref<64x128xf32, #tpu.memory_space<vmem>>, vector<64x128xf32>,
    %c0_203 = arith.constant 0 : index
    %c0_204 = arith.constant 0 : index
    %327 = vector.load %arg12[%c0_203, %c0_204] : memref<64x128xf32, #tpu.memory_space<vmem>>, vector<64x128xf32>
    %328 = vector.broadcast %0 : vector<64x1xf32> to vector<64x128xf32>
    %329 = arith.mulf %328, %327 : vector<64x128xf32>
    %c0_205 = arith.constant 0 : index
    %c0_206 = arith.constant 0 : index
    %c0_207 = arith.constant 0 : index
    %330 = vector.load %arg5[%c0_205, %c0_206, %c0_207] : memref<2x128x128xf32, #tpu.memory_space<vmem>>, vector<1x128x128xf32>
    %331 = vector.shape_cast %330 : vector<1x128x128xf32> to vector<128x128xf32>
    %cst_208 = arith.constant dense<0.000000e+00> : vector<64x128xf32>
    %332 = tpu.matmul %329, %331, %cst_208 {dimension_numbers = #tpu.dot_dimension_numbers<[1], [0], [0], [1], [0, 0, 1, 1], [], []>} : vector<64x128xf32>, vector<128x128xf32>, vector<64x128xf32> -> vector<64x128xf32>
    %333 = arith.addf %332, %20 : vector<64x128xf32>
    %cst_209 = arith.constant dense<0.000000e+00> : vector<64xf32>
    %334 = vector.multi_reduction <add>, %333, %cst_209 [1] : vector<64x128xf32> to vector<64xf32>
    %335 = vector.shape_cast %334 : vector<64xf32> to vector<64x1xf32>
    %cst_210 = arith.constant 3.125000e-02 : f32
    %336 = vector.broadcast %cst_210 : f32 to vector<64x1xf32>
    %337 = arith.mulf %335, %336 : vector<64x1xf32>
    %338 = vector.broadcast %337 : vector<64x1xf32> to vector<64x128xf32>
    %339 = arith.subf %333, %338 : vector<64x128xf32>
    %cst_211 = arith.constant 0.000000e+00 : f32
    %340 = vector.shape_cast %9 : vector<1x128xi1> to vector<1x128xi1>
    %341 = vector.broadcast %340 : vector<1x128xi1> to vector<64x128xi1>
    %342 = vector.broadcast %cst_211 : f32 to vector<64x128xf32>
    %343 = arith.select %341, %339, %342 : vector<64x128xi1>, vector<64x128xf32>
    %344 = arith.mulf %343, %343 : vector<64x128xf32>
    %cst_212 = arith.constant dense<0.000000e+00> : vector<64xf32>
    %345 = vector.multi_reduction <add>, %344, %cst_212 [1] : vector<64x128xf32> to vector<64xf32>
    %346 = vector.shape_cast %345 : vector<64xf32> to vector<64x1xf32>
    %cst_213 = arith.constant 3.125000e-02 : f32
    %347 = vector.broadcast %cst_213 : f32 to vector<64x1xf32>
    %348 = arith.mulf %346, %347 : vector<64x1xf32>
    %cst_214 = arith.constant 9.99999974E-6 : f32
    %349 = vector.broadcast %cst_214 : f32 to vector<64x1xf32>
    %350 = arith.addf %348, %349 : vector<64x1xf32>
    %351 = math.rsqrt %350 : vector<64x1xf32>
    %352 = vector.broadcast %351 : vector<64x1xf32> to vector<64x128xf32>
    %353 = arith.mulf %343, %352 : vector<64x128xf32>
    %c0_215 = arith.constant 0 : index
    %c0_216 = arith.constant 0 : index
    %c0_217 = arith.constant 0 : index
    %354 = vector.load %arg10[%c0_215, %c0_216, %c0_217] : memref<2x1x128xf32, #tpu.memory_space<vmem>>, vector<1x1x128xf32>
    %355 = vector.shape_cast %354 : vector<1x1x128xf32> to vector<1x128xf32>
    %356 = vector.broadcast %355 : vector<1x128xf32> to vector<64x128xf32>
    %357 = arith.mulf %353, %356 : vector<64x128xf32>
    %c0_218 = arith.constant 0 : index
    %c0_219 = arith.constant 0 : index
    %c0_220 = arith.constant 0 : index
    %358 = vector.load %arg11[%c0_218, %c0_219, %c0_220] : memref<2x1x128xf32, #tpu.memory_space<vmem>>, vector<1x1x128xf32>
    %359 = vector.shape_cast %358 : vector<1x1x128xf32> to vector<1x128xf32>
    %360 = vector.broadcast %359 : vector<1x128xf32> to vector<64x128xf32>
    %361 = arith.addf %357, %360 : vector<64x128xf32>
    %362 = math.tanh %361 : vector<64x128xf32>
    %c0_221 = arith.constant 0 : index
    %c0_222 = arith.constant 0 : index
    %c0_223 = arith.constant 0 : index
    %363 = vector.load %arg6[%c0_221, %c0_222, %c0_223] : memref<2x128x128xf32, #tpu.memory_space<vmem>>, vector<1x128x128xf32>
    %364 = vector.shape_cast %363 : vector<1x128x128xf32> to vector<128x128xf32>
    %cst_224 = arith.constant dense<0.000000e+00> : vector<64x128xf32>
    %365 = tpu.matmul %362, %364, %cst_224 {dimension_numbers = #tpu.dot_dimension_numbers<[1], [0], [0], [1], [0, 0, 1, 1], [], []>} : vector<64x128xf32>, vector<128x128xf32>, vector<64x128xf32> -> vector<64x128xf32>
    %366 = vector.broadcast %0 : vector<64x1xf32> to vector<64x128xf32>
    %367 = arith.mulf %366, %365 : vector<64x128xf32>
    %368 = arith.truncf %367 : vector<64x128xf32> to vector<64x128xbf16>
    %c0_225 = arith.constant 0 : index
    %c0_226 = arith.constant 0 : index
    %369 = vector.load %arg2[%c0_225, %c0_226] : memref<64x64xbf16, #tpu.memory_space<vmem>>, vector<64x64xbf16>
    %cst_227 = arith.constant dense<0.000000e+00> : vector<64x128xf32>
    %370 = tpu.matmul %369, %368, %cst_227 {dimension_numbers = #tpu.dot_dimension_numbers<[1], [0], [0], [1], [0, 0, 1, 1], [], []>} : vector<64x64xbf16>, vector<64x128xbf16>, vector<64x128xf32> -> vector<64x128xf32>
    %c0_228 = arith.constant 0 : index
    %c0_229 = arith.constant 0 : index
    %371 = vector.load %arg12[%c0_228, %c0_229] : memref<64x128xf32, #tpu.memory_space<vmem>>, vector<64x128xf32>
    %cst_230 = arith.constant 5.000000e-01 : f32
    %372 = vector.broadcast %cst_230 : f32 to vector<64x128xf32>
    %373 = arith.mulf %372, %371 : vector<64x128xf32>
    %cst_231 = arith.constant 5.000000e-01 : f32
    %374 = vector.broadcast %cst_231 : f32 to vector<64x128xf32>
    %375 = arith.mulf %374, %370 : vector<64x128xf32>
    %376 = arith.addf %373, %375 : vector<64x128xf32>
    %c0_232 = arith.constant 0 : index
    %c0_233 = arith.constant 0 : index
    %377 = vector.load %arg12[%c0_232, %c0_233] : memref<64x128xf32, #tpu.memory_space<vmem>>, vector<64x128xf32>
    tpu.vector_store %arg12[%c0_232, %c0_233], %376 {strides = array<i32>} : memref<64x128xf32, #tpu.memory_space<vmem>>, vector<64x128xf32>,
    %c0_234 = arith.constant 0 : index
    %c0_235 = arith.constant 0 : index
    %378 = vector.load %arg12[%c0_234, %c0_235] : memref<64x128xf32, #tpu.memory_space<vmem>>, vector<64x128xf32>
    %379 = vector.broadcast %0 : vector<64x1xf32> to vector<64x128xf32>
    %380 = arith.mulf %379, %378 : vector<64x128xf32>
    %c1_236 = arith.constant 1 : index
    %c0_237 = arith.constant 0 : index
    %c0_238 = arith.constant 0 : index
    %381 = vector.load %arg5[%c1_236, %c0_237, %c0_238] : memref<2x128x128xf32, #tpu.memory_space<vmem>>, vector<1x128x128xf32>
    %382 = vector.shape_cast %381 : vector<1x128x128xf32> to vector<128x128xf32>
    %cst_239 = arith.constant dense<0.000000e+00> : vector<64x128xf32>
    %383 = tpu.matmul %380, %382, %cst_239 {dimension_numbers = #tpu.dot_dimension_numbers<[1], [0], [0], [1], [0, 0, 1, 1], [], []>} : vector<64x128xf32>, vector<128x128xf32>, vector<64x128xf32> -> vector<64x128xf32>
    %384 = arith.addf %383, %31 : vector<64x128xf32>
    %cst_240 = arith.constant dense<0.000000e+00> : vector<64xf32>
    %385 = vector.multi_reduction <add>, %384, %cst_240 [1] : vector<64x128xf32> to vector<64xf32>
    %386 = vector.shape_cast %385 : vector<64xf32> to vector<64x1xf32>
    %cst_241 = arith.constant 3.125000e-02 : f32
    %387 = vector.broadcast %cst_241 : f32 to vector<64x1xf32>
    %388 = arith.mulf %386, %387 : vector<64x1xf32>
    %389 = vector.broadcast %388 : vector<64x1xf32> to vector<64x128xf32>
    %390 = arith.subf %384, %389 : vector<64x128xf32>
    %cst_242 = arith.constant 0.000000e+00 : f32
    %391 = vector.shape_cast %9 : vector<1x128xi1> to vector<1x128xi1>
    %392 = vector.broadcast %391 : vector<1x128xi1> to vector<64x128xi1>
    %393 = vector.broadcast %cst_242 : f32 to vector<64x128xf32>
    %394 = arith.select %392, %390, %393 : vector<64x128xi1>, vector<64x128xf32>
    %395 = arith.mulf %394, %394 : vector<64x128xf32>
    %cst_243 = arith.constant dense<0.000000e+00> : vector<64xf32>
    %396 = vector.multi_reduction <add>, %395, %cst_243 [1] : vector<64x128xf32> to vector<64xf32>
    %397 = vector.shape_cast %396 : vector<64xf32> to vector<64x1xf32>
    %cst_244 = arith.constant 3.125000e-02 : f32
    %398 = vector.broadcast %cst_244 : f32 to vector<64x1xf32>
    %399 = arith.mulf %397, %398 : vector<64x1xf32>
    %cst_245 = arith.constant 9.99999974E-6 : f32
    %400 = vector.broadcast %cst_245 : f32 to vector<64x1xf32>
    %401 = arith.addf %399, %400 : vector<64x1xf32>
    %402 = math.rsqrt %401 : vector<64x1xf32>
    %403 = vector.broadcast %402 : vector<64x1xf32> to vector<64x128xf32>
    %404 = arith.mulf %394, %403 : vector<64x128xf32>
    %c1_246 = arith.constant 1 : index
    %c0_247 = arith.constant 0 : index
    %c0_248 = arith.constant 0 : index
    %405 = vector.load %arg10[%c1_246, %c0_247, %c0_248] : memref<2x1x128xf32, #tpu.memory_space<vmem>>, vector<1x1x128xf32>
    %406 = vector.shape_cast %405 : vector<1x1x128xf32> to vector<1x128xf32>
    %407 = vector.broadcast %406 : vector<1x128xf32> to vector<64x128xf32>
    %408 = arith.mulf %404, %407 : vector<64x128xf32>
    %c1_249 = arith.constant 1 : index
    %c0_250 = arith.constant 0 : index
    %c0_251 = arith.constant 0 : index
    %409 = vector.load %arg11[%c1_249, %c0_250, %c0_251] : memref<2x1x128xf32, #tpu.memory_space<vmem>>, vector<1x1x128xf32>
    %410 = vector.shape_cast %409 : vector<1x1x128xf32> to vector<1x128xf32>
    %411 = vector.broadcast %410 : vector<1x128xf32> to vector<64x128xf32>
    %412 = arith.addf %408, %411 : vector<64x128xf32>
    %413 = math.tanh %412 : vector<64x128xf32>
    %c1_252 = arith.constant 1 : index
    %c0_253 = arith.constant 0 : index
    %c0_254 = arith.constant 0 : index
    %414 = vector.load %arg6[%c1_252, %c0_253, %c0_254] : memref<2x128x128xf32, #tpu.memory_space<vmem>>, vector<1x128x128xf32>
    %415 = vector.shape_cast %414 : vector<1x128x128xf32> to vector<128x128xf32>
    %cst_255 = arith.constant dense<0.000000e+00> : vector<64x128xf32>
    %416 = tpu.matmul %413, %415, %cst_255 {dimension_numbers = #tpu.dot_dimension_numbers<[1], [0], [0], [1], [0, 0, 1, 1], [], []>} : vector<64x128xf32>, vector<128x128xf32>, vector<64x128xf32> -> vector<64x128xf32>
    %417 = vector.broadcast %0 : vector<64x1xf32> to vector<64x128xf32>
    %418 = arith.mulf %417, %416 : vector<64x128xf32>
    %419 = arith.truncf %418 : vector<64x128xf32> to vector<64x128xbf16>
    %c0_256 = arith.constant 0 : index
    %c0_257 = arith.constant 0 : index
    %420 = vector.load %arg2[%c0_256, %c0_257] : memref<64x64xbf16, #tpu.memory_space<vmem>>, vector<64x64xbf16>
    %cst_258 = arith.constant dense<0.000000e+00> : vector<64x128xf32>
    %421 = tpu.matmul %420, %419, %cst_258 {dimension_numbers = #tpu.dot_dimension_numbers<[1], [0], [0], [1], [0, 0, 1, 1], [], []>} : vector<64x64xbf16>, vector<64x128xbf16>, vector<64x128xf32> -> vector<64x128xf32>
    %c0_259 = arith.constant 0 : index
    %c0_260 = arith.constant 0 : index
    %422 = vector.load %arg12[%c0_259, %c0_260] : memref<64x128xf32, #tpu.memory_space<vmem>>, vector<64x128xf32>
    %cst_261 = arith.constant 5.000000e-01 : f32
    %423 = vector.broadcast %cst_261 : f32 to vector<64x128xf32>
    %424 = arith.mulf %423, %422 : vector<64x128xf32>
    %cst_262 = arith.constant 5.000000e-01 : f32
    %425 = vector.broadcast %cst_262 : f32 to vector<64x128xf32>
    %426 = arith.mulf %425, %421 : vector<64x128xf32>
    %427 = arith.addf %424, %426 : vector<64x128xf32>
    %c0_263 = arith.constant 0 : index
    %c0_264 = arith.constant 0 : index
    %428 = vector.load %arg12[%c0_263, %c0_264] : memref<64x128xf32, #tpu.memory_space<vmem>>, vector<64x128xf32>
    tpu.vector_store %arg12[%c0_263, %c0_264], %427 {strides = array<i32>} : memref<64x128xf32, #tpu.memory_space<vmem>>, vector<64x128xf32>,
    %c0_265 = arith.constant 0 : index
    %c0_266 = arith.constant 0 : index
    %429 = vector.load %arg12[%c0_265, %c0_266] : memref<64x128xf32, #tpu.memory_space<vmem>>, vector<64x128xf32>
    %430 = vector.broadcast %0 : vector<64x1xf32> to vector<64x128xf32>
    %431 = arith.mulf %430, %429 : vector<64x128xf32>
    %432 = arith.addf %431, %6 : vector<64x128xf32>
    %c0_267 = arith.constant 0 : index
    %c0_268 = arith.constant 0 : index
    %433 = vector.load %arg12[%c0_267, %c0_268] : memref<64x128xf32, #tpu.memory_space<vmem>>, vector<64x128xf32>
    tpu.vector_store %arg12[%c0_267, %c0_268], %432 {strides = array<i32>} : memref<64x128xf32, #tpu.memory_space<vmem>>, vector<64x128xf32>,
    return
  }
}

</mosaic_0001>

<llo_original>
// kernel: tpu_custom_call.1
$region0: #{tpu_custom_call.1}
  #allocation0 [shape = 'u32[]', space=smem, size = 0x4, offset = 0x4, fixed_abs, tag = 'smem constant byte address 0x4 - core index']
  #allocation1 [shape = 'u32[144,128]{1,0:T(1,128)}', space=vmem, size = 0x12000, scoped, tag = 'internal scratch']
  %s0 = inlined_call_operand.vmem [shape: f32[64,16], index: 0, kind: input, shape index: {}]
  %s1 = inlined_call_operand.vmem [shape: f32[64,1], index: 1, kind: input, shape index: {}]
  %s2 = inlined_call_operand.vmem [shape: bf16[64,64], index: 2, kind: input, shape index: {}]
  %s3 = inlined_call_operand.vmem [shape: f32[16,128], index: 3, kind: input, shape index: {}]
  %s4 = inlined_call_operand.vmem [shape: f32[1,128], index: 4, kind: input, shape index: {}]
  %s5 = inlined_call_operand.hbm [shape: f32[2,128,128], index: 5, kind: input, shape index: {}]
  %s6 = inlined_call_operand.hbm [shape: f32[2,128,128], index: 6, kind: input, shape index: {}]
  %s7 = inlined_call_operand.vmem [shape: f32[2,1,128], index: 7, kind: input, shape index: {}]
  %s8 = inlined_call_operand.hbm [shape: f32[2,128,128], index: 8, kind: input, shape index: {}]
  %s9 = inlined_call_operand.vmem [shape: f32[2,1,128], index: 9, kind: input, shape index: {}]
  %s10 = inlined_call_operand.vmem [shape: f32[2,1,128], index: 10, kind: input, shape index: {}]
  %s11 = inlined_call_operand.vmem [shape: f32[2,1,128], index: 11, kind: input, shape index: {}]
  %s12 = inlined_call_operand.hbm [shape: f32[64,128], index: 12, kind: output, shape index: {}]
  %s13 = sld [smem:[#allocation0]]
  $region70: #{tpu_custom_call.1} parent=0
    _
  %s15 = ssub.s32 1, %s13
  %s16 = scalar_select 0, %s15, %s13
  $region1: #{tpu_custom_call.1} parent=0
    #allocation2 [shape = 'u8[131072]{0}', space=vmem, size = 0x20000, scoped, tag = 'input window, operand 5, single buffered']
    #allocation3 [shape = 's32[1]{0}', space=sflag, size = 0x4, scoped, tag = 'scoped memory for tpu_custom_call.1']
    #allocation4 [shape = 's32[1]{0}', space=sflag, size = 0x4, scoped, tag = 'scoped memory for tpu_custom_call.1']
    #allocation5 [shape = 'u8[131072]{0}', space=vmem, size = 0x20000, scoped, tag = 'input window, operand 6, single buffered']
    #allocation6 [shape = 's32[1]{0}', space=sflag, size = 0x4, scoped, tag = 'scoped memory for tpu_custom_call.1']
    #allocation7 [shape = 'u8[131072]{0}', space=vmem, size = 0x20000, scoped, tag = 'input window, operand 8, single buffered']
    #allocation8 [shape = 'u8[32768]{0}', space=vmem, size = 0x8000, scoped, tag = 'output window, operand 0, single buffered']
    %17 = vsyncpa [#allocation3], 0
    %18 = vsyncpa [#allocation6], 0
    %19 = vsyncpa [#allocation4], 0
    // Predicated region
    $region2: #{tpu_custom_call.1} parent=1 // pred_check
      _
    $region3: #{tpu_custom_call.1} parent=1 // pred_check_branch
      %21 = sbr.rel (0) target = $region5
    $region4: #{tpu_custom_call.1} parent=1 // pred_region
      _
    $region5: #{tpu_custom_call.1} parent=1 // pred_fallthru
      _
    // Predicated region
    $region6: #{tpu_custom_call.1} parent=1 // pred_check
      _
    $region7: #{tpu_custom_call.1} parent=1 // pred_check_branch
      %23 = sbr.rel (0) target = $region9
    $region8: #{tpu_custom_call.1} parent=1 // pred_region
      _
    $region9: #{tpu_custom_call.1} parent=1 // pred_fallthru
      _
    // Predicated region
    $region10: #{tpu_custom_call.1} parent=1 // pred_check
      _
    $region11: #{tpu_custom_call.1} parent=1 // pred_check_branch
      %25 = sbr.rel (0) target = $region13
    $region12: #{tpu_custom_call.1} parent=1 // pred_region
      _
    $region13: #{tpu_custom_call.1} parent=1 // pred_fallthru
      _
    // Predicated region
    $region14: #{tpu_custom_call.1} parent=1 // pred_check
      _
    $region15: #{tpu_custom_call.1} parent=1 // pred_check_branch
      %27 = sbr.rel (0) target = $region17
    $region16: #{tpu_custom_call.1} parent=1 // pred_region
      _
    $region17: #{tpu_custom_call.1} parent=1 // pred_fallthru
      _
    // Predicated region
    $region18: #{tpu_custom_call.1} parent=1 // pred_check
      _
    $region19: #{tpu_custom_call.1} parent=1 // pred_check_branch
      %29 = sbr.rel (0) target = $region21
    $region20: #{tpu_custom_call.1} parent=1 // pred_region
      _
    $region21: #{tpu_custom_call.1} parent=1 // pred_fallthru
      _
    // Predicated region
    $region22: #{tpu_custom_call.1} parent=1 // pred_check
      _
    $region23: #{tpu_custom_call.1} parent=1 // pred_check_branch
      %31 = sbr.rel (0) target = $region25
    $region24: #{tpu_custom_call.1} parent=1 // pred_region
      %s33 = ssub.s32 4096, 4096
      %34 = vsyncadd [#allocation3], %s33
      %s35 = sshll.u32 [#allocation2], 4
      %s36 = int_to_ptr.vmem [resolvable:$true] %s35
      %41 = dma.hbm_to_vmem [thread:$0]  %s5, 4096, %s36, [#allocation3], 128, 128, 8
    $region25: #{tpu_custom_call.1} parent=1 // pred_fallthru
      _
    // Predicated region
    $region26: #{tpu_custom_call.1} parent=1 // pred_check
      _
    $region27: #{tpu_custom_call.1} parent=1 // pred_check_branch
      %43 = sbr.rel (0) target = $region29
    $region28: #{tpu_custom_call.1} parent=1 // pred_region
      %s45 = ssub.s32 4096, 4096
      %46 = vsyncadd [#allocation6], %s45
      %s47 = sshll.u32 [#allocation5], 4
      %s48 = int_to_ptr.vmem [resolvable:$true] %s47
      %53 = dma.hbm_to_vmem [thread:$0]  %s6, 4096, %s48, [#allocation6], 128, 128, 8
    $region29: #{tpu_custom_call.1} parent=1 // pred_fallthru
      _
    // Predicated region
    $region30: #{tpu_custom_call.1} parent=1 // pred_check
      _
    $region31: #{tpu_custom_call.1} parent=1 // pred_check_branch
      %55 = sbr.rel (0) target = $region33
    $region32: #{tpu_custom_call.1} parent=1 // pred_region
      _
    $region33: #{tpu_custom_call.1} parent=1 // pred_fallthru
      _
    // Predicated region
    $region34: #{tpu_custom_call.1} parent=1 // pred_check
      _
    $region35: #{tpu_custom_call.1} parent=1 // pred_check_branch
      %57 = sbr.rel (0) target = $region37
    $region36: #{tpu_custom_call.1} parent=1 // pred_region
      %s59 = ssub.s32 4096, 4096
      %60 = vsyncadd [#allocation6], %s59
      %s61 = sshll.u32 [#allocation7], 4
      %s62 = int_to_ptr.vmem [resolvable:$true] %s61
      %67 = dma.hbm_to_vmem [thread:$0]  %s8, 4096, %s62, [#allocation6], 128, 128, 8
    $region37: #{tpu_custom_call.1} parent=1 // pred_fallthru
      _
    // Predicated region
    $region38: #{tpu_custom_call.1} parent=1 // pred_check
      _
    $region39: #{tpu_custom_call.1} parent=1 // pred_check_branch
      %69 = sbr.rel (0) target = $region41
    $region40: #{tpu_custom_call.1} parent=1 // pred_region
      _
    $region41: #{tpu_custom_call.1} parent=1 // pred_fallthru
      _
    // Predicated region
    $region42: #{tpu_custom_call.1} parent=1 // pred_check
      _
    $region43: #{tpu_custom_call.1} parent=1 // pred_check_branch
      %71 = sbr.rel (0) target = $region45
    $region44: #{tpu_custom_call.1} parent=1 // pred_region
      _
    $region45: #{tpu_custom_call.1} parent=1 // pred_fallthru
      _
    // Predicated region
    $region46: #{tpu_custom_call.1} parent=1 // pred_check
      _
    $region47: #{tpu_custom_call.1} parent=1 // pred_check_branch
      %73 = sbr.rel (0) target = $region49
    $region48: #{tpu_custom_call.1} parent=1 // pred_region
      _
    $region49: #{tpu_custom_call.1} parent=1 // pred_fallthru
      _
    // Predicated region
    $region50: #{tpu_custom_call.1} parent=1 // pred_check
      _
    $region51: #{tpu_custom_call.1} parent=1 // pred_check_branch
      %75 = sbr.rel (0) target = $region53
    $region52: #{tpu_custom_call.1} parent=1 // pred_region
      %76 = dma.done [#allocation3], 4096
    $region53: #{tpu_custom_call.1} parent=1 // pred_fallthru
      _
    // Predicated region
    $region54: #{tpu_custom_call.1} parent=1 // pred_check
      _
    $region55: #{tpu_custom_call.1} parent=1 // pred_check_branch
      %78 = sbr.rel (0) target = $region57
    $region56: #{tpu_custom_call.1} parent=1 // pred_region
      %79 = dma.done [#allocation6], 4096
    $region57: #{tpu_custom_call.1} parent=1 // pred_fallthru
      _
    // Predicated region
    $region58: #{tpu_custom_call.1} parent=1 // pred_check
      _
    $region59: #{tpu_custom_call.1} parent=1 // pred_check_branch
      %81 = sbr.rel (0) target = $region61
    $region60: #{tpu_custom_call.1} parent=1 // pred_region
      %82 = dma.done [#allocation6], 4096
    $region61: #{tpu_custom_call.1} parent=1 // pred_fallthru
      _
    %v84 = vld [vmem:[%s1] sm:$0xff]
    %v85 = vld [vmem:[%s1 + $0x8] sm:$0xff]
    %v86 = vld [vmem:[%s1 + $0x10] sm:$0xff]
    %v87 = vld [vmem:[%s1 + $0x18] sm:$0xff]
    %v88 = vld [vmem:[%s1 + $0x20] sm:$0xff]
    %v89 = vld [vmem:[%s1 + $0x28] sm:$0xff]
    %v90 = vld [vmem:[%s1 + $0x30] sm:$0xff]
    %v91 = vld [vmem:[%s1 + $0x38] sm:$0xff]
    %v92 = vld [vmem:[%s0] sm:$0xff]
    %v93 = vld [vmem:[%s0 + $0x8] sm:$0xff]
    %v94 = vld [vmem:[%s0 + $0x10] sm:$0xff]
    %v95 = vld [vmem:[%s0 + $0x18] sm:$0xff]
    %v96 = vld [vmem:[%s0 + $0x20] sm:$0xff]
    %v97 = vld [vmem:[%s0 + $0x28] sm:$0xff]
    %v98 = vld [vmem:[%s0 + $0x30] sm:$0xff]
    %v99 = vld [vmem:[%s0 + $0x38] sm:$0xff]
    %v100 = vld [vmem:[%s3] sm:$0xff]
    %v101 = vld [vmem:[%s3 + $0x8] sm:$0xff]
    %v102 = vld [vmem:[%s4] sm:$0x1]
    %v104 = vlaneseq
    %v105 = vshrl.u32 %v104, 7
    %v106 = vsub.s32 0, %v105
    %v107 = vrot.slane %v102, %v106
    %vm109 = vcmask 130048
    %v111 = vsel %vm109, %v92, 0
    %v114 = vsel %vm109, %v93, 0
    %v117 = vsel %vm109, %v94, 0
    %v120 = vsel %vm109, %v95, 0
    %v123 = vsel %vm109, %v96, 0
    %v126 = vsel %vm109, %v97, 0
    %v129 = vsel %vm109, %v98, 0
    %v132 = vsel %vm109, %v99, 0
    %134 = vmatprep.subr.mxu0 0.0
    %135 = vmatpush1.msra.mxu0 %v100
    %136 = vmatprep.subr.mxu0 0.0
    %137 = vmatpush1.msra.mxu0 %v101
    %138 = vmatprep.subr.mxu0 0.0
    %139 = vmatpush1.msra.mxu0 0.0
    %140 = vmatprep.subr.mxu0 0.0
    %141 = vmatpush1.msra.mxu0 0.0
    %142 = vmatprep.subr.mxu0 0.0
    %143 = vmatpush1.msra.mxu0 0.0
    %144 = vmatprep.subr.mxu0 0.0
    %145 = vmatpush1.msra.mxu0 0.0
    %146 = vmatprep.subr.mxu0 0.0
    %147 = vmatpush1.msra.mxu0 0.0
    %148 = vmatprep.subr.mxu0 0.0
    %149 = vmatpush1.msra.mxu0 0.0
    %150 = vmatprep.subr.mxu0 0.0
    %151 = vmatpush1.msra.mxu0 0.0
    %152 = vmatprep.subr.mxu0 0.0
    %153 = vmatpush1.msra.mxu0 0.0
    %154 = vmatprep.subr.mxu0 0.0
    %155 = vmatpush1.msra.mxu0 0.0
    %156 = vmatprep.subr.mxu0 0.0
    %157 = vmatpush1.msra.mxu0 0.0
    %158 = vmatprep.subr.mxu0 0.0
    %159 = vmatpush1.msra.mxu0 0.0
    %160 = vmatprep.subr.mxu0 0.0
    %161 = vmatpush1.msra.mxu0 0.0
    %162 = vmatprep.subr.mxu0 0.0
    %163 = vmatpush1.msra.mxu0 0.0
    %164 = vmatprep.subr.mxu0 0.0
    %165 = vmatpush1.msra.mxu0 0.0
    %166 = vmatprep.subr.mxu0 0.0
    %167 = vmatpush1.msra.mxu0 0.0
    %168 = vmatprep.subr.mxu0 0.0
    %169 = vmatpush1.msra.mxu0 0.0
    %170 = vmatprep.subr.mxu0 0.0
    %171 = vmatpush1.msra.mxu0 0.0
    %172 = vmatprep.subr.mxu0 0.0
    %173 = vmatpush1.msra.mxu0 0.0
    %174 = vmatprep.subr.mxu0 0.0
    %175 = vmatpush1.msra.mxu0 0.0
    %176 = vmatprep.subr.mxu0 0.0
    %177 = vmatpush1.msra.mxu0 0.0
    %178 = vmatprep.subr.mxu0 0.0
    %179 = vmatpush1.msra.mxu0 0.0
    %180 = vmatprep.subr.mxu0 0.0
    %181 = vmatpush1.msra.mxu0 0.0
    %182 = vmatprep.subr.mxu0 0.0
    %183 = vmatpush1.msra.mxu0 0.0
    %184 = vmatprep.subr.mxu0 0.0
    %185 = vmatpush1.msra.mxu0 0.0
    %186 = vmatprep.subr.mxu0 0.0
    %187 = vmatpush1.msra.mxu0 0.0
    %188 = vmatprep.subr.mxu0 0.0
    %189 = vmatpush1.msra.mxu0 0.0
    %190 = vmatprep.subr.mxu0 0.0
    %191 = vmatpush1.msra.mxu0 0.0
    %192 = vmatprep.subr.mxu0 0.0
    %193 = vmatpush1.msra.mxu0 0.0
    %194 = vmatprep.subr.mxu0 0.0
    %195 = vmatpush1.msra.mxu0 0.0
    %196 = vmatprep.subr.mxu0 0.0
    %197 = vmatpush1.msra.mxu0 0.0
    %198 = vmatprep.mubr.f32.mxu0 0.0
    %199 = vmatmul.mubr.f32.gmra.mrb[0].mxu0 %v111
    %v200 = vpop.f32.mrb[0].mxu0
    %v201 = vadd.f32 %v107, %v200
    %v202 = vpop.f32.mrb[0].mxu0
    %203 = vmatprep.mubr.f32.mxu0 0.0
    %204 = vmatmul.mubr.f32.gmra.mrb[0].mxu0 %v114
    %v205 = vpop.f32.mrb[0].mxu0
    %v206 = vadd.f32 %v107, %v205
    %v207 = vpop.f32.mrb[0].mxu0
    %208 = vmatprep.mubr.f32.mxu0 0.0
    %209 = vmatmul.mubr.f32.gmra.mrb[0].mxu0 %v117
    %v210 = vpop.f32.mrb[0].mxu0
    %v211 = vadd.f32 %v107, %v210
    %v212 = vpop.f32.mrb[0].mxu0
    %213 = vmatprep.mubr.f32.mxu0 0.0
    %214 = vmatmul.mubr.f32.gmra.mrb[0].mxu0 %v120
    %v215 = vpop.f32.mrb[0].mxu0
    %v216 = vadd.f32 %v107, %v215
    %v217 = vpop.f32.mrb[0].mxu0
    %218 = vmatprep.mubr.f32.mxu0 0.0
    %219 = vmatmul.mubr.f32.gmra.mrb[0].mxu0 %v123
    %v220 = vpop.f32.mrb[0].mxu0
    %v221 = vadd.f32 %v107, %v220
    %v222 = vpop.f32.mrb[0].mxu0
    %223 = vmatprep.mubr.f32.mxu0 0.0
    %224 = vmatmul.mubr.f32.gmra.mrb[0].mxu0 %v126
    %v225 = vpop.f32.mrb[0].mxu0
    %v226 = vadd.f32 %v107, %v225
    %v227 = vpop.f32.mrb[0].mxu0
    %228 = vmatprep.mubr.f32.mxu0 0.0
    %229 = vmatmul.mubr.f32.gmra.mrb[0].mxu0 %v129
    %v230 = vpop.f32.mrb[0].mxu0
    %v231 = vadd.f32 %v107, %v230
    %v232 = vpop.f32.mrb[0].mxu0
    %233 = vmatprep.mubr.f32.mxu0 0.0
    %234 = vmatmul.mubr.f32.gmra.mrb[0].mxu0 %v132
    %v235 = vpop.f32.mrb[0].mxu0
    %v236 = vadd.f32 %v107, %v235
    %v237 = vpop.f32.mrb[0].mxu0
    %238 = vdwg.mxu0
    %v239 = vlaneseq
    %v240 = vand.u32 %v239, 127
    %vm241 = vcmp.lt.s32.totalorder %v240, 32
    %v242 = vld [vmem:[#allocation7] sm:$0xff]
    %v243 = vld [vmem:[#allocation7 + $0x8] sm:$0xff]
    %v244 = vld [vmem:[#allocation7 + $0x10] sm:$0xff]
    %v245 = vld [vmem:[#allocation7 + $0x18] sm:$0xff]
    %v246 = vld [vmem:[#allocation7 + $0x20] sm:$0xff]
    %v247 = vld [vmem:[#allocation7 + $0x28] sm:$0xff]
    %v248 = vld [vmem:[#allocation7 + $0x30] sm:$0xff]
    %v249 = vld [vmem:[#allocation7 + $0x38] sm:$0xff]
    %v250 = vld [vmem:[#allocation7 + $0x40] sm:$0xff]
    %v251 = vld [vmem:[#allocation7 + $0x48] sm:$0xff]
    %v252 = vld [vmem:[#allocation7 + $0x50] sm:$0xff]
    %v253 = vld [vmem:[#allocation7 + $0x58] sm:$0xff]
    %v254 = vld [vmem:[#allocation7 + $0x60] sm:$0xff]
    %v255 = vld [vmem:[#allocation7 + $0x68] sm:$0xff]
    %v256 = vld [vmem:[#allocation7 + $0x70] sm:$0xff]
    %v257 = vld [vmem:[#allocation7 + $0x78] sm:$0xff]
    %v258 = vld [vmem:[%s9] sm:$0x1]
    %v260 = vlaneseq
    %v261 = vshrl.u32 %v260, 7
    %v262 = vsub.s32 0, %v261
    %v263 = vrot.slane %v258, %v262
    %265 = vmatprep.subr.mxu0 0.0
    %266 = vmatpush1.msra.mxu0 %v242
    %267 = vmatprep.subr.mxu0 0.0
    %268 = vmatpush1.msra.mxu0 %v243
    %269 = vmatprep.subr.mxu0 0.0
    %270 = vmatpush1.msra.mxu0 %v244
    %271 = vmatprep.subr.mxu0 0.0
    %272 = vmatpush1.msra.mxu0 %v245
    %273 = vmatprep.subr.mxu0 0.0
    %274 = vmatpush1.msra.mxu0 %v246
    %275 = vmatprep.subr.mxu0 0.0
    %276 = vmatpush1.msra.mxu0 %v247
    %277 = vmatprep.subr.mxu0 0.0
    %278 = vmatpush1.msra.mxu0 %v248
    %279 = vmatprep.subr.mxu0 0.0
    %280 = vmatpush1.msra.mxu0 %v249
    %281 = vmatprep.subr.mxu0 0.0
    %282 = vmatpush1.msra.mxu0 %v250
    %283 = vmatprep.subr.mxu0 0.0
    %284 = vmatpush1.msra.mxu0 %v251
    %285 = vmatprep.subr.mxu0 0.0
    %286 = vmatpush1.msra.mxu0 %v252
    %287 = vmatprep.subr.mxu0 0.0
    %288 = vmatpush1.msra.mxu0 %v253
    %289 = vmatprep.subr.mxu0 0.0
    %290 = vmatpush1.msra.mxu0 %v254
    %291 = vmatprep.subr.mxu0 0.0
    %292 = vmatpush1.msra.mxu0 %v255
    %293 = vmatprep.subr.mxu0 0.0
    %294 = vmatpush1.msra.mxu0 %v256
    %295 = vmatprep.subr.mxu0 0.0
    %296 = vmatpush1.msra.mxu0 %v257
    %297 = vmatprep.subr.mxu0 0.0
    %298 = vmatpush1.msra.mxu0 0.0
    %299 = vmatprep.subr.mxu0 0.0
    %300 = vmatpush1.msra.mxu0 0.0
    %301 = vmatprep.subr.mxu0 0.0
    %302 = vmatpush1.msra.mxu0 0.0
    %303 = vmatprep.subr.mxu0 0.0
    %304 = vmatpush1.msra.mxu0 0.0
    %305 = vmatprep.subr.mxu0 0.0
    %306 = vmatpush1.msra.mxu0 0.0
    %307 = vmatprep.subr.mxu0 0.0
    %308 = vmatpush1.msra.mxu0 0.0
    %309 = vmatprep.subr.mxu0 0.0
    %310 = vmatpush1.msra.mxu0 0.0
    %311 = vmatprep.subr.mxu0 0.0
    %312 = vmatpush1.msra.mxu0 0.0
    %313 = vmatprep.subr.mxu0 0.0
    %314 = vmatpush1.msra.mxu0 0.0
    %315 = vmatprep.subr.mxu0 0.0
    %316 = vmatpush1.msra.mxu0 0.0
    %317 = vmatprep.subr.mxu0 0.0
    %318 = vmatpush1.msra.mxu0 0.0
    %319 = vmatprep.subr.mxu0 0.0
    %320 = vmatpush1.msra.mxu0 0.0
    %321 = vmatprep.subr.mxu0 0.0
    %322 = vmatpush1.msra.mxu0 0.0
    %323 = vmatprep.subr.mxu0 0.0
    %324 = vmatpush1.msra.mxu0 0.0
    %325 = vmatprep.subr.mxu0 0.0
    %326 = vmatpush1.msra.mxu0 0.0
    %327 = vmatprep.subr.mxu0 0.0
    %328 = vmatpush1.msra.mxu0 0.0
    %329 = vmatprep.mubr.f32.mxu0 0.0
    %330 = vmatmul.mubr.f32.gmra.mrb[0].mxu0 %v201
    %v331 = vpop.f32.mrb[0].mxu0
    %v332 = vadd.f32 %v263, %v331
    %v333 = vpop.f32.mrb[0].mxu0
    %334 = vmatprep.mubr.f32.mxu0 0.0
    %335 = vmatmul.mubr.f32.gmra.mrb[0].mxu0 %v206
    %v336 = vpop.f32.mrb[0].mxu0
    %v337 = vadd.f32 %v263, %v336
    %v338 = vpop.f32.mrb[0].mxu0
    %339 = vmatprep.mubr.f32.mxu0 0.0
    %340 = vmatmul.mubr.f32.gmra.mrb[0].mxu0 %v211
    %v341 = vpop.f32.mrb[0].mxu0
    %v342 = vadd.f32 %v263, %v341
    %v343 = vpop.f32.mrb[0].mxu0
    %344 = vmatprep.mubr.f32.mxu0 0.0
    %345 = vmatmul.mubr.f32.gmra.mrb[0].mxu0 %v216
    %v346 = vpop.f32.mrb[0].mxu0
    %v347 = vadd.f32 %v263, %v346
    %v348 = vpop.f32.mrb[0].mxu0
    %349 = vmatprep.mubr.f32.mxu0 0.0
    %350 = vmatmul.mubr.f32.gmra.mrb[0].mxu0 %v221
    %v351 = vpop.f32.mrb[0].mxu0
    %v352 = vadd.f32 %v263, %v351
    %v353 = vpop.f32.mrb[0].mxu0
    %354 = vmatprep.mubr.f32.mxu0 0.0
    %355 = vmatmul.mubr.f32.gmra.mrb[0].mxu0 %v226
    %v356 = vpop.f32.mrb[0].mxu0
    %v357 = vadd.f32 %v263, %v356
    %v358 = vpop.f32.mrb[0].mxu0
    %359 = vmatprep.mubr.f32.mxu0 0.0
    %360 = vmatmul.mubr.f32.gmra.mrb[0].mxu0 %v231
    %v361 = vpop.f32.mrb[0].mxu0
    %v362 = vadd.f32 %v263, %v361
    %v363 = vpop.f32.mrb[0].mxu0
    %364 = vmatprep.mubr.f32.mxu0 0.0
    %365 = vmatmul.mubr.f32.gmra.mrb[0].mxu0 %v236
    %v366 = vpop.f32.mrb[0].mxu0
    %v367 = vadd.f32 %v263, %v366
    %v368 = vpop.f32.mrb[0].mxu0
    %369 = vdwg.mxu0
    %v370 = vld [vmem:[%s7] sm:$0x1]
    %v372 = vlaneseq
    %v373 = vshrl.u32 %v372, 7
    %v374 = vsub.s32 0, %v373
    %v375 = vrot.slane %v370, %v374
    %v377 = vadd.f32 %v332, %v375
    %v378 = vadd.f32 %v337, %v375
    %v379 = vadd.f32 %v342, %v375
    %v380 = vadd.f32 %v347, %v375
    %v381 = vadd.f32 %v352, %v375
    %v382 = vadd.f32 %v357, %v375
    %v383 = vadd.f32 %v362, %v375
    %v384 = vadd.f32 %v367, %v375
    %s385 = scalar_lea.vmem [#allocation7], 128
    %v386 = vld [vmem:[%s385] sm:$0xff]
    %v387 = vld [vmem:[%s385 + $0x8] sm:$0xff]
    %v388 = vld [vmem:[%s385 + $0x10] sm:$0xff]
    %v389 = vld [vmem:[%s385 + $0x18] sm:$0xff]
    %v390 = vld [vmem:[%s385 + $0x20] sm:$0xff]
    %v391 = vld [vmem:[%s385 + $0x28] sm:$0xff]
    %v392 = vld [vmem:[%s385 + $0x30] sm:$0xff]
    %v393 = vld [vmem:[%s385 + $0x38] sm:$0xff]
    %v394 = vld [vmem:[%s385 + $0x40] sm:$0xff]
    %v395 = vld [vmem:[%s385 + $0x48] sm:$0xff]
    %v396 = vld [vmem:[%s385 + $0x50] sm:$0xff]
    %v397 = vld [vmem:[%s385 + $0x58] sm:$0xff]
    %v398 = vld [vmem:[%s385 + $0x60] sm:$0xff]
    %v399 = vld [vmem:[%s385 + $0x68] sm:$0xff]
    %v400 = vld [vmem:[%s385 + $0x70] sm:$0xff]
    %v401 = vld [vmem:[%s385 + $0x78] sm:$0xff]
    %s402 = scalar_lea.vmem %s9, 1
    %v403 = vld [vmem:[%s402] sm:$0x1]
    %v405 = vlaneseq
    %v406 = vshrl.u32 %v405, 7
    %v407 = vsub.s32 0, %v406
    %v408 = vrot.slane %v403, %v407
    %410 = vmatprep.subr.mxu0 0.0
    %411 = vmatpush1.msra.mxu0 %v386
    %412 = vmatprep.subr.mxu0 0.0
    %413 = vmatpush1.msra.mxu0 %v387
    %414 = vmatprep.subr.mxu0 0.0
    %415 = vmatpush1.msra.mxu0 %v388
    %416 = vmatprep.subr.mxu0 0.0
    %417 = vmatpush1.msra.mxu0 %v389
    %418 = vmatprep.subr.mxu0 0.0
    %419 = vmatpush1.msra.mxu0 %v390
    %420 = vmatprep.subr.mxu0 0.0
    %421 = vmatpush1.msra.mxu0 %v391
    %422 = vmatprep.subr.mxu0 0.0
    %423 = vmatpush1.msra.mxu0 %v392
    %424 = vmatprep.subr.mxu0 0.0
    %425 = vmatpush1.msra.mxu0 %v393
    %426 = vmatprep.subr.mxu0 0.0
    %427 = vmatpush1.msra.mxu0 %v394
    %428 = vmatprep.subr.mxu0 0.0
    %429 = vmatpush1.msra.mxu0 %v395
    %430 = vmatprep.subr.mxu0 0.0
    %431 = vmatpush1.msra.mxu0 %v396
    %432 = vmatprep.subr.mxu0 0.0
    %433 = vmatpush1.msra.mxu0 %v397
    %434 = vmatprep.subr.mxu0 0.0
    %435 = vmatpush1.msra.mxu0 %v398
    %436 = vmatprep.subr.mxu0 0.0
    %437 = vmatpush1.msra.mxu0 %v399
    %438 = vmatprep.subr.mxu0 0.0
    %439 = vmatpush1.msra.mxu0 %v400
    %440 = vmatprep.subr.mxu0 0.0
    %441 = vmatpush1.msra.mxu0 %v401
    %442 = vmatprep.subr.mxu0 0.0
    %443 = vmatpush1.msra.mxu0 0.0
    %444 = vmatprep.subr.mxu0 0.0
    %445 = vmatpush1.msra.mxu0 0.0
    %446 = vmatprep.subr.mxu0 0.0
    %447 = vmatpush1.msra.mxu0 0.0
    %448 = vmatprep.subr.mxu0 0.0
    %449 = vmatpush1.msra.mxu0 0.0
    %450 = vmatprep.subr.mxu0 0.0
    %451 = vmatpush1.msra.mxu0 0.0
    %452 = vmatprep.subr.mxu0 0.0
    %453 = vmatpush1.msra.mxu0 0.0
    %454 = vmatprep.subr.mxu0 0.0
    %455 = vmatpush1.msra.mxu0 0.0
    %456 = vmatprep.subr.mxu0 0.0
    %457 = vmatpush1.msra.mxu0 0.0
    %458 = vmatprep.subr.mxu0 0.0
    %459 = vmatpush1.msra.mxu0 0.0
    %460 = vmatprep.subr.mxu0 0.0
    %461 = vmatpush1.msra.mxu0 0.0
    %462 = vmatprep.subr.mxu0 0.0
    %463 = vmatpush1.msra.mxu0 0.0
    %464 = vmatprep.subr.mxu0 0.0
    %465 = vmatpush1.msra.mxu0 0.0
    %466 = vmatprep.subr.mxu0 0.0
    %467 = vmatpush1.msra.mxu0 0.0
    %468 = vmatprep.subr.mxu0 0.0
    %469 = vmatpush1.msra.mxu0 0.0
    %470 = vmatprep.subr.mxu0 0.0
    %471 = vmatpush1.msra.mxu0 0.0
    %472 = vmatprep.subr.mxu0 0.0
    %473 = vmatpush1.msra.mxu0 0.0
    %474 = vmatprep.mubr.f32.mxu0 0.0
    %475 = vmatmul.mubr.f32.gmra.mrb[0].mxu0 %v201
    %v476 = vpop.f32.mrb[0].mxu0
    %v477 = vadd.f32 %v408, %v476
    %v478 = vpop.f32.mrb[0].mxu0
    %479 = vmatprep.mubr.f32.mxu0 0.0
    %480 = vmatmul.mubr.f32.gmra.mrb[0].mxu0 %v206
    %v481 = vpop.f32.mrb[0].mxu0
    %v482 = vadd.f32 %v408, %v481
    %v483 = vpop.f32.mrb[0].mxu0
    %484 = vmatprep.mubr.f32.mxu0 0.0
    %485 = vmatmul.mubr.f32.gmra.mrb[0].mxu0 %v211
    %v486 = vpop.f32.mrb[0].mxu0
    %v487 = vadd.f32 %v408, %v486
    %v488 = vpop.f32.mrb[0].mxu0
    %489 = vmatprep.mubr.f32.mxu0 0.0
    %490 = vmatmul.mubr.f32.gmra.mrb[0].mxu0 %v216
    %v491 = vpop.f32.mrb[0].mxu0
    %v492 = vadd.f32 %v408, %v491
    %v493 = vpop.f32.mrb[0].mxu0
    %494 = vmatprep.mubr.f32.mxu0 0.0
    %495 = vmatmul.mubr.f32.gmra.mrb[0].mxu0 %v221
    %v496 = vpop.f32.mrb[0].mxu0
    %v497 = vadd.f32 %v408, %v496
    %v498 = vpop.f32.mrb[0].mxu0
    %499 = vmatprep.mubr.f32.mxu0 0.0
    %500 = vmatmul.mubr.f32.gmra.mrb[0].mxu0 %v226
    %v501 = vpop.f32.mrb[0].mxu0
    %v502 = vadd.f32 %v408, %v501
    %v503 = vpop.f32.mrb[0].mxu0
    %504 = vmatprep.mubr.f32.mxu0 0.0
    %505 = vmatmul.mubr.f32.gmra.mrb[0].mxu0 %v231
    %v506 = vpop.f32.mrb[0].mxu0
    %v507 = vadd.f32 %v408, %v506
    %v508 = vpop.f32.mrb[0].mxu0
    %509 = vmatprep.mubr.f32.mxu0 0.0
    %510 = vmatmul.mubr.f32.gmra.mrb[0].mxu0 %v236
    %v511 = vpop.f32.mrb[0].mxu0
    %v512 = vadd.f32 %v408, %v511
    %v513 = vpop.f32.mrb[0].mxu0
    %514 = vdwg.mxu0
    %s515 = scalar_lea.vmem %s7, 1
    %v516 = vld [vmem:[%s515] sm:$0x1]
    %v518 = vlaneseq
    %v519 = vshrl.u32 %v518, 7
    %v520 = vsub.s32 0, %v519
    %v521 = vrot.slane %v516, %v520
    %v523 = vadd.f32 %v477, %v521
    %v524 = vadd.f32 %v482, %v521
    %v525 = vadd.f32 %v487, %v521
    %v526 = vadd.f32 %v492, %v521
    %v527 = vadd.f32 %v497, %v521
    %v528 = vadd.f32 %v502, %v521
    %v529 = vadd.f32 %v507, %v521
    %v530 = vadd.f32 %v512, %v521
    %531 = vadd.xlane.f32.xlu0 %v377
    %v532 = vpop.xlane.xlu0 %531
    %533 = vadd.xlane.f32.xlu0 %v378
    %v534 = vpop.xlane.xlu0 %533
    %535 = vadd.xlane.f32.xlu0 %v379
    %v536 = vpop.xlane.xlu0 %535
    %537 = vadd.xlane.f32.xlu0 %v380
    %v538 = vpop.xlane.xlu0 %537
    %539 = vadd.xlane.f32.xlu0 %v381
    %v540 = vpop.xlane.xlu0 %539
    %541 = vadd.xlane.f32.xlu0 %v382
    %v542 = vpop.xlane.xlu0 %541
    %543 = vadd.xlane.f32.xlu0 %v383
    %v544 = vpop.xlane.xlu0 %543
    %545 = vadd.xlane.f32.xlu0 %v384
    %v546 = vpop.xlane.xlu0 %545
    %v547 = vmul.f32 %v532, 0.03125
    %v548 = vmul.f32 %v534, 0.03125
    %v549 = vmul.f32 %v536, 0.03125
    %v550 = vmul.f32 %v538, 0.03125
    %v551 = vmul.f32 %v540, 0.03125
    %v552 = vmul.f32 %v542, 0.03125
    %v553 = vmul.f32 %v544, 0.03125
    %v554 = vmul.f32 %v546, 0.03125
    %v555 = vsub.f32 %v377, %v547
    %v556 = vsub.f32 %v378, %v548
    %v557 = vsub.f32 %v379, %v549
    %v558 = vsub.f32 %v380, %v550
    %v559 = vsub.f32 %v381, %v551
    %v560 = vsub.f32 %v382, %v552
    %v561 = vsub.f32 %v383, %v553
    %v562 = vsub.f32 %v384, %v554
    %v563 = vsel %vm241, 1, 0
    %vm564 = vcmp.eq.s32.totalorder %v563, 1
    %v565 = vsel %vm564, %v555, 0.0
    %v566 = vsel %vm564, %v556, 0.0
    %v567 = vsel %vm564, %v557, 0.0
    %v568 = vsel %vm564, %v558, 0.0
    %v569 = vsel %vm564, %v559, 0.0
    %v570 = vsel %vm564, %v560, 0.0
    %v571 = vsel %vm564, %v561, 0.0
    %v572 = vsel %vm564, %v562, 0.0
    %v573 = vmul.f32 %v565, %v565
    %v574 = vmul.f32 %v566, %v566
    %v575 = vmul.f32 %v567, %v567
    %v576 = vmul.f32 %v568, %v568
    %v577 = vmul.f32 %v569, %v569
    %v578 = vmul.f32 %v570, %v570
    %v579 = vmul.f32 %v571, %v571
    %v580 = vmul.f32 %v572, %v572
    %581 = vadd.xlane.f32.xlu0 %v573
    %v582 = vpop.xlane.xlu0 %581
    %583 = vadd.xlane.f32.xlu0 %v574
    %v584 = vpop.xlane.xlu0 %583
    %585 = vadd.xlane.f32.xlu0 %v575
    %v586 = vpop.xlane.xlu0 %585
    %587 = vadd.xlane.f32.xlu0 %v576
    %v588 = vpop.xlane.xlu0 %587
    %589 = vadd.xlane.f32.xlu0 %v577
    %v590 = vpop.xlane.xlu0 %589
    %591 = vadd.xlane.f32.xlu0 %v578
    %v592 = vpop.xlane.xlu0 %591
    %593 = vadd.xlane.f32.xlu0 %v579
    %v594 = vpop.xlane.xlu0 %593
    %595 = vadd.xlane.f32.xlu0 %v580
    %v596 = vpop.xlane.xlu0 %595
    %v597 = vmul.f32 %v582, 0.03125
    %v598 = vmul.f32 %v584, 0.03125
    %v599 = vmul.f32 %v586, 0.03125
    %v600 = vmul.f32 %v588, 0.03125
    %v601 = vmul.f32 %v590, 0.03125
    %v602 = vmul.f32 %v592, 0.03125
    %v603 = vmul.f32 %v594, 0.03125
    %v604 = vmul.f32 %v596, 0.03125
    %v605 = vadd.f32 %v597, 1e-05
    %v606 = vadd.f32 %v598, 1e-05
    %v607 = vadd.f32 %v599, 1e-05
    %v608 = vadd.f32 %v600, 1e-05
    %v609 = vadd.f32 %v601, 1e-05
    %v610 = vadd.f32 %v602, 1e-05
    %v611 = vadd.f32 %v603, 1e-05
    %v612 = vadd.f32 %v604, 1e-05
    %v613 = vrsqrt.pop %v605
    %v614 = vrsqrt.pop %v606
    %v615 = vrsqrt.pop %v607
    %v616 = vrsqrt.pop %v608
    %v617 = vrsqrt.pop %v609
    %v618 = vrsqrt.pop %v610
    %v619 = vrsqrt.pop %v611
    %v620 = vrsqrt.pop %v612
    %v621 = vmul.f32 %v565, %v613
    %v622 = vmul.f32 %v566, %v614
    %v623 = vmul.f32 %v567, %v615
    %v624 = vmul.f32 %v568, %v616
    %v625 = vmul.f32 %v569, %v617
    %v626 = vmul.f32 %v570, %v618
    %v627 = vmul.f32 %v571, %v619
    %v628 = vmul.f32 %v572, %v620
    %v629 = vld [vmem:[%s10] sm:$0x1]
    %v631 = vlaneseq
    %v632 = vshrl.u32 %v631, 7
    %v633 = vsub.s32 0, %v632
    %v634 = vrot.slane %v629, %v633
    %v636 = vmul.f32 %v621, %v634
    %v637 = vmul.f32 %v622, %v634
    %v638 = vmul.f32 %v623, %v634
    %v639 = vmul.f32 %v624, %v634
    %v640 = vmul.f32 %v625, %v634
    %v641 = vmul.f32 %v626, %v634
    %v642 = vmul.f32 %v627, %v634
    %v643 = vmul.f32 %v628, %v634
    %v644 = vld [vmem:[%s11] sm:$0x1]
    %v646 = vlaneseq
    %v647 = vshrl.u32 %v646, 7
    %v648 = vsub.s32 0, %v647
    %v649 = vrot.slane %v644, %v648
    %v651 = vadd.f32 %v636, %v649
    %v652 = vadd.f32 %v637, %v649
    %v653 = vadd.f32 %v638, %v649
    %v654 = vadd.f32 %v639, %v649
    %v655 = vadd.f32 %v640, %v649
    %v656 = vadd.f32 %v641, %v649
    %v657 = vadd.f32 %v642, %v649
    %v658 = vadd.f32 %v643, %v649
    %v659 = vtanh.pop %v651
    %v660 = vtanh.pop %v652
    %v661 = vtanh.pop %v653
    %v662 = vtanh.pop %v654
    %v663 = vtanh.pop %v655
    %v664 = vtanh.pop %v656
    %v665 = vtanh.pop %v657
    %v666 = vtanh.pop %v658
    %v667 = vld [vmem:[#allocation5] sm:$0xff]
    %v668 = vld [vmem:[#allocation5 + $0x8] sm:$0xff]
    %v669 = vld [vmem:[#allocation5 + $0x10] sm:$0xff]
    %v670 = vld [vmem:[#allocation5 + $0x18] sm:$0xff]
    %v671 = vld [vmem:[#allocation5 + $0x20] sm:$0xff]
    %v672 = vld [vmem:[#allocation5 + $0x28] sm:$0xff]
    %v673 = vld [vmem:[#allocation5 + $0x30] sm:$0xff]
    %v674 = vld [vmem:[#allocation5 + $0x38] sm:$0xff]
    %v675 = vld [vmem:[#allocation5 + $0x40] sm:$0xff]
    %v676 = vld [vmem:[#allocation5 + $0x48] sm:$0xff]
    %v677 = vld [vmem:[#allocation5 + $0x50] sm:$0xff]
    %v678 = vld [vmem:[#allocation5 + $0x58] sm:$0xff]
    %v679 = vld [vmem:[#allocation5 + $0x60] sm:$0xff]
    %v680 = vld [vmem:[#allocation5 + $0x68] sm:$0xff]
    %v681 = vld [vmem:[#allocation5 + $0x70] sm:$0xff]
    %v682 = vld [vmem:[#allocation5 + $0x78] sm:$0xff]
    %683 = vmatprep.subr.mxu0 0.0
    %684 = vmatpush1.msra.mxu0 %v667
    %685 = vmatprep.subr.mxu0 0.0
    %686 = vmatpush1.msra.mxu0 %v668
    %687 = vmatprep.subr.mxu0 0.0
    %688 = vmatpush1.msra.mxu0 %v669
    %689 = vmatprep.subr.mxu0 0.0
    %690 = vmatpush1.msra.mxu0 %v670
    %691 = vmatprep.subr.mxu0 0.0
    %692 = vmatpush1.msra.mxu0 %v671
    %693 = vmatprep.subr.mxu0 0.0
    %694 = vmatpush1.msra.mxu0 %v672
    %695 = vmatprep.subr.mxu0 0.0
    %696 = vmatpush1.msra.mxu0 %v673
    %697 = vmatprep.subr.mxu0 0.0
    %698 = vmatpush1.msra.mxu0 %v674
    %699 = vmatprep.subr.mxu0 0.0
    %700 = vmatpush1.msra.mxu0 %v675
    %701 = vmatprep.subr.mxu0 0.0
    %702 = vmatpush1.msra.mxu0 %v676
    %703 = vmatprep.subr.mxu0 0.0
    %704 = vmatpush1.msra.mxu0 %v677
    %705 = vmatprep.subr.mxu0 0.0
    %706 = vmatpush1.msra.mxu0 %v678
    %707 = vmatprep.subr.mxu0 0.0
    %708 = vmatpush1.msra.mxu0 %v679
    %709 = vmatprep.subr.mxu0 0.0
    %710 = vmatpush1.msra.mxu0 %v680
    %711 = vmatprep.subr.mxu0 0.0
    %712 = vmatpush1.msra.mxu0 %v681
    %713 = vmatprep.subr.mxu0 0.0
    %714 = vmatpush1.msra.mxu0 %v682
    %715 = vmatprep.subr.mxu0 0.0
    %716 = vmatpush1.msra.mxu0 0.0
    %717 = vmatprep.subr.mxu0 0.0
    %718 = vmatpush1.msra.mxu0 0.0
    %719 = vmatprep.subr.mxu0 0.0
    %720 = vmatpush1.msra.mxu0 0.0
    %721 = vmatprep.subr.mxu0 0.0
    %722 = vmatpush1.msra.mxu0 0.0
    %723 = vmatprep.subr.mxu0 0.0
    %724 = vmatpush1.msra.mxu0 0.0
    %725 = vmatprep.subr.mxu0 0.0
    %726 = vmatpush1.msra.mxu0 0.0
    %727 = vmatprep.subr.mxu0 0.0
    %728 = vmatpush1.msra.mxu0 0.0
    %729 = vmatprep.subr.mxu0 0.0
    %730 = vmatpush1.msra.mxu0 0.0
    %731 = vmatprep.subr.mxu0 0.0
    %732 = vmatpush1.msra.mxu0 0.0
    %733 = vmatprep.subr.mxu0 0.0
    %734 = vmatpush1.msra.mxu0 0.0
    %735 = vmatprep.subr.mxu0 0.0
    %736 = vmatpush1.msra.mxu0 0.0
    %737 = vmatprep.subr.mxu0 0.0
    %738 = vmatpush1.msra.mxu0 0.0
    %739 = vmatprep.subr.mxu0 0.0
    %740 = vmatpush1.msra.mxu0 0.0
    %741 = vmatprep.subr.mxu0 0.0
    %742 = vmatpush1.msra.mxu0 0.0
    %743 = vmatprep.subr.mxu0 0.0
    %744 = vmatpush1.msra.mxu0 0.0
    %745 = vmatprep.subr.mxu0 0.0
    %746 = vmatpush1.msra.mxu0 0.0
    %747 = vmatprep.mubr.f32.mxu0 0.0
    %748 = vmatmul.mubr.f32.gmra.mrb[0].mxu0 %v659
    %v749 = vpop.f32.mrb[0].mxu0
    %v750 = vadd.f32 0.0, %v749
    %v751 = vpop.f32.mrb[0].mxu0
    %752 = vmatprep.mubr.f32.mxu0 0.0
    %753 = vmatmul.mubr.f32.gmra.mrb[0].mxu0 %v660
    %v754 = vpop.f32.mrb[0].mxu0
    %v755 = vadd.f32 0.0, %v754
    %v756 = vpop.f32.mrb[0].mxu0
    %757 = vmatprep.mubr.f32.mxu0 0.0
    %758 = vmatmul.mubr.f32.gmra.mrb[0].mxu0 %v661
    %v759 = vpop.f32.mrb[0].mxu0
    %v760 = vadd.f32 0.0, %v759
    %v761 = vpop.f32.mrb[0].mxu0
    %762 = vmatprep.mubr.f32.mxu0 0.0
    %763 = vmatmul.mubr.f32.gmra.mrb[0].mxu0 %v662
    %v764 = vpop.f32.mrb[0].mxu0
    %v765 = vadd.f32 0.0, %v764
    %v766 = vpop.f32.mrb[0].mxu0
    %767 = vmatprep.mubr.f32.mxu0 0.0
    %768 = vmatmul.mubr.f32.gmra.mrb[0].mxu0 %v663
    %v769 = vpop.f32.mrb[0].mxu0
    %v770 = vadd.f32 0.0, %v769
    %v771 = vpop.f32.mrb[0].mxu0
    %772 = vmatprep.mubr.f32.mxu0 0.0
    %773 = vmatmul.mubr.f32.gmra.mrb[0].mxu0 %v664
    %v774 = vpop.f32.mrb[0].mxu0
    %v775 = vadd.f32 0.0, %v774
    %v776 = vpop.f32.mrb[0].mxu0
    %777 = vmatprep.mubr.f32.mxu0 0.0
    %778 = vmatmul.mubr.f32.gmra.mrb[0].mxu0 %v665
    %v779 = vpop.f32.mrb[0].mxu0
    %v780 = vadd.f32 0.0, %v779
    %v781 = vpop.f32.mrb[0].mxu0
    %782 = vmatprep.mubr.f32.mxu0 0.0
    %783 = vmatmul.mubr.f32.gmra.mrb[0].mxu0 %v666
    %v784 = vpop.f32.mrb[0].mxu0
    %v785 = vadd.f32 0.0, %v784
    %v786 = vpop.f32.mrb[0].mxu0
    %787 = vdwg.mxu0
    %789 = vset.pattern.permute.xlu0 0
    %790 = vperm.xlu0 %789, %v84
    %v791 = vpop.permute.xlu0 %790
    %794 = vset.pattern.permute.xlu0 0
    %795 = vperm.xlu0 %794, %v85
    %v796 = vpop.permute.xlu0 %795
    %799 = vset.pattern.permute.xlu0 0
    %800 = vperm.xlu0 %799, %v86
    %v801 = vpop.permute.xlu0 %800
    %804 = vset.pattern.permute.xlu0 0
    %805 = vperm.xlu0 %804, %v87
    %v806 = vpop.permute.xlu0 %805
    %809 = vset.pattern.permute.xlu0 0
    %810 = vperm.xlu0 %809, %v88
    %v811 = vpop.permute.xlu0 %810
    %814 = vset.pattern.permute.xlu0 0
    %815 = vperm.xlu0 %814, %v89
    %v816 = vpop.permute.xlu0 %815
    %819 = vset.pattern.permute.xlu0 0
    %820 = vperm.xlu0 %819, %v90
    %v821 = vpop.permute.xlu0 %820
    %824 = vset.pattern.permute.xlu0 0
    %825 = vperm.xlu0 %824, %v91
    %v826 = vpop.permute.xlu0 %825
    %v828 = vmul.f32 %v791, %v750
    %v829 = vmul.f32 %v796, %v755
    %v830 = vmul.f32 %v801, %v760
    %v831 = vmul.f32 %v806, %v765
    %v832 = vmul.f32 %v811, %v770
    %v833 = vmul.f32 %v816, %v775
    %v834 = vmul.f32 %v821, %v780
    %v835 = vmul.f32 %v826, %v785
    %v836 = vpack.c.bf16 %v829, %v828
    %v837 = vpack.c.bf16 %v831, %v830
    %v838 = vpack.c.bf16 %v833, %v832
    %v839 = vpack.c.bf16 %v835, %v834
    %v840 = vld [vmem:[%s2] sm:$0xf]
    %v841 = vld [vmem:[%s2 + $0x4] sm:$0xf]
    %v842 = vld [vmem:[%s2 + $0x8] sm:$0xf]
    %v843 = vld [vmem:[%s2 + $0xc] sm:$0xf]
    %v844 = vld [vmem:[%s2 + $0x10] sm:$0xf]
    %v845 = vld [vmem:[%s2 + $0x14] sm:$0xf]
    %v846 = vld [vmem:[%s2 + $0x18] sm:$0xf]
    %v847 = vld [vmem:[%s2 + $0x1c] sm:$0xf]
    %v856 = vunpack.c.l.b16 %v840
    %v857 = vunpack.c.l.b16 %v841
    %v858 = vunpack.c.l.b16 %v842
    %v859 = vunpack.c.l.b16 %v843
    %v860 = vunpack.c.l.b16 %v844
    %v861 = vunpack.c.l.b16 %v845
    %v862 = vunpack.c.l.b16 %v846
    %v863 = vunpack.c.l.b16 %v847
    %v864 = vpack.c.b16 %v857, %v856
    %v865 = vpack.c.b16 %v859, %v858
    %v866 = vpack.c.b16 %v861, %v860
    %v867 = vpack.c.b16 %v863, %v862
    %vm868 = vcmask 523264
    %v870 = vsel %vm868, %v864, 0
    %v873 = vsel %vm868, %v865, 0
    %v876 = vsel %vm868, %v866, 0
    %v879 = vsel %vm868, %v867, 0
    %881 = vmatprep.subr.bf16.mxu0 0
    %882 = vmatpush1.bf16.msra.mxu0 %v836
    %883 = vmatprep.subr.bf16.mxu0 0
    %884 = vmatpush1.bf16.msra.mxu0 %v837
    %885 = vmatprep.subr.bf16.mxu0 0
    %886 = vmatpush1.bf16.msra.mxu0 %v838
    %887 = vmatprep.subr.bf16.mxu0 0
    %888 = vmatpush1.bf16.msra.mxu0 %v839
    %889 = vmatprep.subr.bf16.mxu0 0
    %890 = vmatpush1.bf16.msra.mxu0 0
    %891 = vmatprep.subr.bf16.mxu0 0
    %892 = vmatpush1.bf16.msra.mxu0 0
    %893 = vmatprep.subr.bf16.mxu0 0
    %894 = vmatpush1.bf16.msra.mxu0 0
    %895 = vmatprep.subr.bf16.mxu0 0
    %896 = vmatpush1.bf16.msra.mxu0 0
    %897 = vmatprep.subr.bf16.mxu0 0
    %898 = vmatpush1.bf16.msra.mxu0 0
    %899 = vmatprep.subr.bf16.mxu0 0
    %900 = vmatpush1.bf16.msra.mxu0 0
    %901 = vmatprep.subr.bf16.mxu0 0
    %902 = vmatpush1.bf16.msra.mxu0 0
    %903 = vmatprep.subr.bf16.mxu0 0
    %904 = vmatpush1.bf16.msra.mxu0 0
    %905 = vmatprep.subr.bf16.mxu0 0
    %906 = vmatpush1.bf16.msra.mxu0 0
    %907 = vmatprep.subr.bf16.mxu0 0
    %908 = vmatpush1.bf16.msra.mxu0 0
    %909 = vmatprep.subr.bf16.mxu0 0
    %910 = vmatpush1.bf16.msra.mxu0 0
    %911 = vmatprep.subr.bf16.mxu0 0
    %912 = vmatpush1.bf16.msra.mxu0 0
    %913 = vmatprep.mubr.bf16.mxu0 0
    %914 = vmatmul.mubr.bf16.gmra.mrb[0].mxu0 %v870
    %v915 = vpop.f32.mrb[0].mxu0
    %v916 = vadd.f32 0.0, %v915
    %v917 = vpop.f32.mrb[0].mxu0
    %v918 = vpop.f32.mrb[0].mxu0
    %v919 = vadd.f32 0.0, %v918
    %v920 = vpop.f32.mrb[0].mxu0
    %921 = vmatprep.mubr.bf16.mxu0 0
    %922 = vmatmul.mubr.bf16.gmra.mrb[0].mxu0 %v873
    %v923 = vpop.f32.mrb[0].mxu0
    %v924 = vadd.f32 0.0, %v923
    %v925 = vpop.f32.mrb[0].mxu0
    %v926 = vpop.f32.mrb[0].mxu0
    %v927 = vadd.f32 0.0, %v926
    %v928 = vpop.f32.mrb[0].mxu0
    %929 = vmatprep.mubr.bf16.mxu0 0
    %930 = vmatmul.mubr.bf16.gmra.mrb[0].mxu0 %v876
    %v931 = vpop.f32.mrb[0].mxu0
    %v932 = vadd.f32 0.0, %v931
    %v933 = vpop.f32.mrb[0].mxu0
    %v934 = vpop.f32.mrb[0].mxu0
    %v935 = vadd.f32 0.0, %v934
    %v936 = vpop.f32.mrb[0].mxu0
    %937 = vmatprep.mubr.bf16.mxu0 0
    %938 = vmatmul.mubr.bf16.gmra.mrb[0].mxu0 %v879
    %v939 = vpop.f32.mrb[0].mxu0
    %v940 = vadd.f32 0.0, %v939
    %v941 = vpop.f32.mrb[0].mxu0
    %v942 = vpop.f32.mrb[0].mxu0
    %v943 = vadd.f32 0.0, %v942
    %v944 = vpop.f32.mrb[0].mxu0
    %945 = vdwg.mxu0
    %v946 = vmul.f32 %v916, 0.5
    %v947 = vmul.f32 %v919, 0.5
    %v948 = vmul.f32 %v924, 0.5
    %v949 = vmul.f32 %v927, 0.5
    %v950 = vmul.f32 %v932, 0.5
    %v951 = vmul.f32 %v935, 0.5
    %v952 = vmul.f32 %v940, 0.5
    %v953 = vmul.f32 %v943, 0.5
    %954 = vst [vmem:[#allocation8] sm:$0xff] %v946
    %955 = vst [vmem:[#allocation8 + $0x8] sm:$0xff] %v947
    %956 = vst [vmem:[#allocation8 + $0x10] sm:$0xff] %v948
    %957 = vst [vmem:[#allocation8 + $0x18] sm:$0xff] %v949
    %958 = vst [vmem:[#allocation8 + $0x20] sm:$0xff] %v950
    %959 = vst [vmem:[#allocation8 + $0x28] sm:$0xff] %v951
    %960 = vst [vmem:[#allocation8 + $0x30] sm:$0xff] %v952
    %961 = vst [vmem:[#allocation8 + $0x38] sm:$0xff] %v953
    %v962 = vld [vmem:[#allocation8] sm:$0xff]
    %v963 = vld [vmem:[#allocation8 + $0x8] sm:$0xff]
    %v964 = vld [vmem:[#allocation8 + $0x10] sm:$0xff]
    %v965 = vld [vmem:[#allocation8 + $0x18] sm:$0xff]
    %v966 = vld [vmem:[#allocation8 + $0x20] sm:$0xff]
    %v967 = vld [vmem:[#allocation8 + $0x28] sm:$0xff]
    %v968 = vld [vmem:[#allocation8 + $0x30] sm:$0xff]
    %v969 = vld [vmem:[#allocation8 + $0x38] sm:$0xff]
    %v970 = vmul.f32 %v791, %v962
    %v971 = vmul.f32 %v796, %v963
    %v972 = vmul.f32 %v801, %v964
    %v973 = vmul.f32 %v806, %v965
    %v974 = vmul.f32 %v811, %v966
    %v975 = vmul.f32 %v816, %v967
    %v976 = vmul.f32 %v821, %v968
    %v977 = vmul.f32 %v826, %v969
    %s978 = scalar_lea.vmem [#allocation2], 128
    %v979 = vld [vmem:[%s978] sm:$0xff]
    %v980 = vld [vmem:[%s978 + $0x8] sm:$0xff]
    %v981 = vld [vmem:[%s978 + $0x10] sm:$0xff]
    %v982 = vld [vmem:[%s978 + $0x18] sm:$0xff]
    %v983 = vld [vmem:[%s978 + $0x20] sm:$0xff]
    %v984 = vld [vmem:[%s978 + $0x28] sm:$0xff]
    %v985 = vld [vmem:[%s978 + $0x30] sm:$0xff]
    %v986 = vld [vmem:[%s978 + $0x38] sm:$0xff]
    %v987 = vld [vmem:[%s978 + $0x40] sm:$0xff]
    %v988 = vld [vmem:[%s978 + $0x48] sm:$0xff]
    %v989 = vld [vmem:[%s978 + $0x50] sm:$0xff]
    %v990 = vld [vmem:[%s978 + $0x58] sm:$0xff]
    %v991 = vld [vmem:[%s978 + $0x60] sm:$0xff]
    %v992 = vld [vmem:[%s978 + $0x68] sm:$0xff]
    %v993 = vld [vmem:[%s978 + $0x70] sm:$0xff]
    %v994 = vld [vmem:[%s978 + $0x78] sm:$0xff]
    %995 = vmatprep.subr.mxu0 0.0
    %996 = vmatpush1.msra.mxu0 %v979
    %997 = vmatprep.subr.mxu0 0.0
    %998 = vmatpush1.msra.mxu0 %v980
    %999 = vmatprep.subr.mxu0 0.0
    %1000 = vmatpush1.msra.mxu0 %v981
    %1001 = vmatprep.subr.mxu0 0.0
    %1002 = vmatpush1.msra.mxu0 %v982
    %1003 = vmatprep.subr.mxu0 0.0
    %1004 = vmatpush1.msra.mxu0 %v983
    %1005 = vmatprep.subr.mxu0 0.0
    %1006 = vmatpush1.msra.mxu0 %v984
    %1007 = vmatprep.subr.mxu0 0.0
    %1008 = vmatpush1.msra.mxu0 %v985
    %1009 = vmatprep.subr.mxu0 0.0
    %1010 = vmatpush1.msra.mxu0 %v986
    %1011 = vmatprep.subr.mxu0 0.0
    %1012 = vmatpush1.msra.mxu0 %v987
    %1013 = vmatprep.subr.mxu0 0.0
    %1014 = vmatpush1.msra.mxu0 %v988
    %1015 = vmatprep.subr.mxu0 0.0
    %1016 = vmatpush1.msra.mxu0 %v989
    %1017 = vmatprep.subr.mxu0 0.0
    %1018 = vmatpush1.msra.mxu0 %v990
    %1019 = vmatprep.subr.mxu0 0.0
    %1020 = vmatpush1.msra.mxu0 %v991
    %1021 = vmatprep.subr.mxu0 0.0
    %1022 = vmatpush1.msra.mxu0 %v992
    %1023 = vmatprep.subr.mxu0 0.0
    %1024 = vmatpush1.msra.mxu0 %v993
    %1025 = vmatprep.subr.mxu0 0.0
    %1026 = vmatpush1.msra.mxu0 %v994
    %1027 = vmatprep.subr.mxu0 0.0
    %1028 = vmatpush1.msra.mxu0 0.0
    %1029 = vmatprep.subr.mxu0 0.0
    %1030 = vmatpush1.msra.mxu0 0.0
    %1031 = vmatprep.subr.mxu0 0.0
    %1032 = vmatpush1.msra.mxu0 0.0
    %1033 = vmatprep.subr.mxu0 0.0
    %1034 = vmatpush1.msra.mxu0 0.0
    %1035 = vmatprep.subr.mxu0 0.0
    %1036 = vmatpush1.msra.mxu0 0.0
    %1037 = vmatprep.subr.mxu0 0.0
    %1038 = vmatpush1.msra.mxu0 0.0
    %1039 = vmatprep.subr.mxu0 0.0
    %1040 = vmatpush1.msra.mxu0 0.0
    %1041 = vmatprep.subr.mxu0 0.0
    %1042 = vmatpush1.msra.mxu0 0.0
    %1043 = vmatprep.subr.mxu0 0.0
    %1044 = vmatpush1.msra.mxu0 0.0
    %1045 = vmatprep.subr.mxu0 0.0
    %1046 = vmatpush1.msra.mxu0 0.0
    %1047 = vmatprep.subr.mxu0 0.0
    %1048 = vmatpush1.msra.mxu0 0.0
    %1049 = vmatprep.subr.mxu0 0.0
    %1050 = vmatpush1.msra.mxu0 0.0
    %1051 = vmatprep.subr.mxu0 0.0
    %1052 = vmatpush1.msra.mxu0 0.0
    %1053 = vmatprep.subr.mxu0 0.0
    %1054 = vmatpush1.msra.mxu0 0.0
    %1055 = vmatprep.subr.mxu0 0.0
    %1056 = vmatpush1.msra.mxu0 0.0
    %1057 = vmatprep.subr.mxu0 0.0
    %1058 = vmatpush1.msra.mxu0 0.0
    %1059 = vmatprep.mubr.f32.mxu0 0.0
    %1060 = vmatmul.mubr.f32.gmra.mrb[0].mxu0 %v970
    %v1061 = vpop.f32.mrb[0].mxu0
    %v1062 = vadd.f32 %v523, %v1061
    %v1063 = vpop.f32.mrb[0].mxu0
    %1064 = vmatprep.mubr.f32.mxu0 0.0
    %1065 = vmatmul.mubr.f32.gmra.mrb[0].mxu0 %v971
    %v1066 = vpop.f32.mrb[0].mxu0
    %v1067 = vadd.f32 %v524, %v1066
    %v1068 = vpop.f32.mrb[0].mxu0
    %1069 = vmatprep.mubr.f32.mxu0 0.0
    %1070 = vmatmul.mubr.f32.gmra.mrb[0].mxu0 %v972
    %v1071 = vpop.f32.mrb[0].mxu0
    %v1072 = vadd.f32 %v525, %v1071
    %v1073 = vpop.f32.mrb[0].mxu0
    %1074 = vmatprep.mubr.f32.mxu0 0.0
    %1075 = vmatmul.mubr.f32.gmra.mrb[0].mxu0 %v973
    %v1076 = vpop.f32.mrb[0].mxu0
    %v1077 = vadd.f32 %v526, %v1076
    %v1078 = vpop.f32.mrb[0].mxu0
    %1079 = vmatprep.mubr.f32.mxu0 0.0
    %1080 = vmatmul.mubr.f32.gmra.mrb[0].mxu0 %v974
    %v1081 = vpop.f32.mrb[0].mxu0
    %v1082 = vadd.f32 %v527, %v1081
    %v1083 = vpop.f32.mrb[0].mxu0
    %1084 = vmatprep.mubr.f32.mxu0 0.0
    %1085 = vmatmul.mubr.f32.gmra.mrb[0].mxu0 %v975
    %v1086 = vpop.f32.mrb[0].mxu0
    %v1087 = vadd.f32 %v528, %v1086
    %v1088 = vpop.f32.mrb[0].mxu0
    %1089 = vmatprep.mubr.f32.mxu0 0.0
    %1090 = vmatmul.mubr.f32.gmra.mrb[0].mxu0 %v976
    %v1091 = vpop.f32.mrb[0].mxu0
    %v1092 = vadd.f32 %v529, %v1091
    %v1093 = vpop.f32.mrb[0].mxu0
    %1094 = vmatprep.mubr.f32.mxu0 0.0
    %1095 = vmatmul.mubr.f32.gmra.mrb[0].mxu0 %v977
    %v1096 = vpop.f32.mrb[0].mxu0
    %v1097 = vadd.f32 %v530, %v1096
    %v1098 = vpop.f32.mrb[0].mxu0
    %1099 = vdwg.mxu0
    %1100 = vadd.xlane.f32.xlu0 %v1062
    %v1101 = vpop.xlane.xlu0 %1100
    %1102 = vadd.xlane.f32.xlu0 %v1067
    %v1103 = vpop.xlane.xlu0 %1102
    %1104 = vadd.xlane.f32.xlu0 %v1072
    %v1105 = vpop.xlane.xlu0 %1104
    %1106 = vadd.xlane.f32.xlu0 %v1077
    %v1107 = vpop.xlane.xlu0 %1106
    %1108 = vadd.xlane.f32.xlu0 %v1082
    %v1109 = vpop.xlane.xlu0 %1108
    %1110 = vadd.xlane.f32.xlu0 %v1087
    %v1111 = vpop.xlane.xlu0 %1110
    %1112 = vadd.xlane.f32.xlu0 %v1092
    %v1113 = vpop.xlane.xlu0 %1112
    %1114 = vadd.xlane.f32.xlu0 %v1097
    %v1115 = vpop.xlane.xlu0 %1114
    %v1116 = vmul.f32 %v1101, 0.03125
    %v1117 = vmul.f32 %v1103, 0.03125
    %v1118 = vmul.f32 %v1105, 0.03125
    %v1119 = vmul.f32 %v1107, 0.03125
    %v1120 = vmul.f32 %v1109, 0.03125
    %v1121 = vmul.f32 %v1111, 0.03125
    %v1122 = vmul.f32 %v1113, 0.03125
    %v1123 = vmul.f32 %v1115, 0.03125
    %v1124 = vsub.f32 %v1062, %v1116
    %v1125 = vsub.f32 %v1067, %v1117
    %v1126 = vsub.f32 %v1072, %v1118
    %v1127 = vsub.f32 %v1077, %v1119
    %v1128 = vsub.f32 %v1082, %v1120
    %v1129 = vsub.f32 %v1087, %v1121
    %v1130 = vsub.f32 %v1092, %v1122
    %v1131 = vsub.f32 %v1097, %v1123
    %v1132 = vsel %vm564, %v1124, 0.0
    %v1133 = vsel %vm564, %v1125, 0.0
    %v1134 = vsel %vm564, %v1126, 0.0
    %v1135 = vsel %vm564, %v1127, 0.0
    %v1136 = vsel %vm564, %v1128, 0.0
    %v1137 = vsel %vm564, %v1129, 0.0
    %v1138 = vsel %vm564, %v1130, 0.0
    %v1139 = vsel %vm564, %v1131, 0.0
    %v1140 = vmul.f32 %v1132, %v1132
    %v1141 = vmul.f32 %v1133, %v1133
    %v1142 = vmul.f32 %v1134, %v1134
    %v1143 = vmul.f32 %v1135, %v1135
    %v1144 = vmul.f32 %v1136, %v1136
    %v1145 = vmul.f32 %v1137, %v1137
    %v1146 = vmul.f32 %v1138, %v1138
    %v1147 = vmul.f32 %v1139, %v1139
    %1148 = vadd.xlane.f32.xlu0 %v1140
    %v1149 = vpop.xlane.xlu0 %1148
    %1150 = vadd.xlane.f32.xlu0 %v1141
    %v1151 = vpop.xlane.xlu0 %1150
    %1152 = vadd.xlane.f32.xlu0 %v1142
    %v1153 = vpop.xlane.xlu0 %1152
    %1154 = vadd.xlane.f32.xlu0 %v1143
    %v1155 = vpop.xlane.xlu0 %1154
    %1156 = vadd.xlane.f32.xlu0 %v1144
    %v1157 = vpop.xlane.xlu0 %1156
    %1158 = vadd.xlane.f32.xlu0 %v1145
    %v1159 = vpop.xlane.xlu0 %1158
    %1160 = vadd.xlane.f32.xlu0 %v1146
    %v1161 = vpop.xlane.xlu0 %1160
    %1162 = vadd.xlane.f32.xlu0 %v1147
    %v1163 = vpop.xlane.xlu0 %1162
    %v1164 = vmul.f32 %v1149, 0.03125
    %v1165 = vmul.f32 %v1151, 0.03125
    %v1166 = vmul.f32 %v1153, 0.03125
    %v1167 = vmul.f32 %v1155, 0.03125
    %v1168 = vmul.f32 %v1157, 0.03125
    %v1169 = vmul.f32 %v1159, 0.03125
    %v1170 = vmul.f32 %v1161, 0.03125
    %v1171 = vmul.f32 %v1163, 0.03125
    %v1172 = vadd.f32 %v1164, 1e-05
    %v1173 = vadd.f32 %v1165, 1e-05
    %v1174 = vadd.f32 %v1166, 1e-05
    %v1175 = vadd.f32 %v1167, 1e-05
    %v1176 = vadd.f32 %v1168, 1e-05
    %v1177 = vadd.f32 %v1169, 1e-05
    %v1178 = vadd.f32 %v1170, 1e-05
    %v1179 = vadd.f32 %v1171, 1e-05
    %v1180 = vrsqrt.pop %v1172
    %v1181 = vrsqrt.pop %v1173
    %v1182 = vrsqrt.pop %v1174
    %v1183 = vrsqrt.pop %v1175
    %v1184 = vrsqrt.pop %v1176
    %v1185 = vrsqrt.pop %v1177
    %v1186 = vrsqrt.pop %v1178
    %v1187 = vrsqrt.pop %v1179
    %v1188 = vmul.f32 %v1132, %v1180
    %v1189 = vmul.f32 %v1133, %v1181
    %v1190 = vmul.f32 %v1134, %v1182
    %v1191 = vmul.f32 %v1135, %v1183
    %v1192 = vmul.f32 %v1136, %v1184
    %v1193 = vmul.f32 %v1137, %v1185
    %v1194 = vmul.f32 %v1138, %v1186
    %v1195 = vmul.f32 %v1139, %v1187
    %s1196 = scalar_lea.vmem %s10, 1
    %v1197 = vld [vmem:[%s1196] sm:$0x1]
    %v1199 = vlaneseq
    %v1200 = vshrl.u32 %v1199, 7
    %v1201 = vsub.s32 0, %v1200
    %v1202 = vrot.slane %v1197, %v1201
    %v1204 = vmul.f32 %v1188, %v1202
    %v1205 = vmul.f32 %v1189, %v1202
    %v1206 = vmul.f32 %v1190, %v1202
    %v1207 = vmul.f32 %v1191, %v1202
    %v1208 = vmul.f32 %v1192, %v1202
    %v1209 = vmul.f32 %v1193, %v1202
    %v1210 = vmul.f32 %v1194, %v1202
    %v1211 = vmul.f32 %v1195, %v1202
    %s1212 = scalar_lea.vmem %s11, 1
    %v1213 = vld [vmem:[%s1212] sm:$0x1]
    %v1215 = vlaneseq
    %v1216 = vshrl.u32 %v1215, 7
    %v1217 = vsub.s32 0, %v1216
    %v1218 = vrot.slane %v1213, %v1217
    %v1220 = vadd.f32 %v1204, %v1218
    %v1221 = vadd.f32 %v1205, %v1218
    %v1222 = vadd.f32 %v1206, %v1218
    %v1223 = vadd.f32 %v1207, %v1218
    %v1224 = vadd.f32 %v1208, %v1218
    %v1225 = vadd.f32 %v1209, %v1218
    %v1226 = vadd.f32 %v1210, %v1218
    %v1227 = vadd.f32 %v1211, %v1218
    %v1228 = vtanh.pop %v1220
    %v1229 = vtanh.pop %v1221
    %v1230 = vtanh.pop %v1222
    %v1231 = vtanh.pop %v1223
    %v1232 = vtanh.pop %v1224
    %v1233 = vtanh.pop %v1225
    %v1234 = vtanh.pop %v1226
    %v1235 = vtanh.pop %v1227
    %s1236 = scalar_lea.vmem [#allocation5], 128
    %v1237 = vld [vmem:[%s1236] sm:$0xff]
    %v1238 = vld [vmem:[%s1236 + $0x8] sm:$0xff]
    %v1239 = vld [vmem:[%s1236 + $0x10] sm:$0xff]
    %v1240 = vld [vmem:[%s1236 + $0x18] sm:$0xff]
    %v1241 = vld [vmem:[%s1236 + $0x20] sm:$0xff]
    %v1242 = vld [vmem:[%s1236 + $0x28] sm:$0xff]
    %v1243 = vld [vmem:[%s1236 + $0x30] sm:$0xff]
    %v1244 = vld [vmem:[%s1236 + $0x38] sm:$0xff]
    %v1245 = vld [vmem:[%s1236 + $0x40] sm:$0xff]
    %v1246 = vld [vmem:[%s1236 + $0x48] sm:$0xff]
    %v1247 = vld [vmem:[%s1236 + $0x50] sm:$0xff]
    %v1248 = vld [vmem:[%s1236 + $0x58] sm:$0xff]
    %v1249 = vld [vmem:[%s1236 + $0x60] sm:$0xff]
    %v1250 = vld [vmem:[%s1236 + $0x68] sm:$0xff]
    %v1251 = vld [vmem:[%s1236 + $0x70] sm:$0xff]
    %v1252 = vld [vmem:[%s1236 + $0x78] sm:$0xff]
    %1253 = vmatprep.subr.mxu0 0.0
    %1254 = vmatpush1.msra.mxu0 %v1237
    %1255 = vmatprep.subr.mxu0 0.0
    %1256 = vmatpush1.msra.mxu0 %v1238
    %1257 = vmatprep.subr.mxu0 0.0
    %1258 = vmatpush1.msra.mxu0 %v1239
    %1259 = vmatprep.subr.mxu0 0.0
    %1260 = vmatpush1.msra.mxu0 %v1240
    %1261 = vmatprep.subr.mxu0 0.0
    %1262 = vmatpush1.msra.mxu0 %v1241
    %1263 = vmatprep.subr.mxu0 0.0
    %1264 = vmatpush1.msra.mxu0 %v1242
    %1265 = vmatprep.subr.mxu0 0.0
    %1266 = vmatpush1.msra.mxu0 %v1243
    %1267 = vmatprep.subr.mxu0 0.0
    %1268 = vmatpush1.msra.mxu0 %v1244
    %1269 = vmatprep.subr.mxu0 0.0
    %1270 = vmatpush1.msra.mxu0 %v1245
    %1271 = vmatprep.subr.mxu0 0.0
    %1272 = vmatpush1.msra.mxu0 %v1246
    %1273 = vmatprep.subr.mxu0 0.0
    %1274 = vmatpush1.msra.mxu0 %v1247
    %1275 = vmatprep.subr.mxu0 0.0
    %1276 = vmatpush1.msra.mxu0 %v1248
    %1277 = vmatprep.subr.mxu0 0.0
    %1278 = vmatpush1.msra.mxu0 %v1249
    %1279 = vmatprep.subr.mxu0 0.0
    %1280 = vmatpush1.msra.mxu0 %v1250
    %1281 = vmatprep.subr.mxu0 0.0
    %1282 = vmatpush1.msra.mxu0 %v1251
    %1283 = vmatprep.subr.mxu0 0.0
    %1284 = vmatpush1.msra.mxu0 %v1252
    %1285 = vmatprep.subr.mxu0 0.0
    %1286 = vmatpush1.msra.mxu0 0.0
    %1287 = vmatprep.subr.mxu0 0.0
    %1288 = vmatpush1.msra.mxu0 0.0
    %1289 = vmatprep.subr.mxu0 0.0
    %1290 = vmatpush1.msra.mxu0 0.0
    %1291 = vmatprep.subr.mxu0 0.0
    %1292 = vmatpush1.msra.mxu0 0.0
    %1293 = vmatprep.subr.mxu0 0.0
    %1294 = vmatpush1.msra.mxu0 0.0
    %1295 = vmatprep.subr.mxu0 0.0
    %1296 = vmatpush1.msra.mxu0 0.0
    %1297 = vmatprep.subr.mxu0 0.0
    %1298 = vmatpush1.msra.mxu0 0.0
    %1299 = vmatprep.subr.mxu0 0.0
    %1300 = vmatpush1.msra.mxu0 0.0
    %1301 = vmatprep.subr.mxu0 0.0
    %1302 = vmatpush1.msra.mxu0 0.0
    %1303 = vmatprep.subr.mxu0 0.0
    %1304 = vmatpush1.msra.mxu0 0.0
    %1305 = vmatprep.subr.mxu0 0.0
    %1306 = vmatpush1.msra.mxu0 0.0
    %1307 = vmatprep.subr.mxu0 0.0
    %1308 = vmatpush1.msra.mxu0 0.0
    %1309 = vmatprep.subr.mxu0 0.0
    %1310 = vmatpush1.msra.mxu0 0.0
    %1311 = vmatprep.subr.mxu0 0.0
    %1312 = vmatpush1.msra.mxu0 0.0
    %1313 = vmatprep.subr.mxu0 0.0
    %1314 = vmatpush1.msra.mxu0 0.0
    %1315 = vmatprep.subr.mxu0 0.0
    %1316 = vmatpush1.msra.mxu0 0.0
    %1317 = vmatprep.mubr.f32.mxu0 0.0
    %1318 = vmatmul.mubr.f32.gmra.mrb[0].mxu0 %v1228
    %v1319 = vpop.f32.mrb[0].mxu0
    %v1320 = vadd.f32 0.0, %v1319
    %v1321 = vpop.f32.mrb[0].mxu0
    %1322 = vmatprep.mubr.f32.mxu0 0.0
    %1323 = vmatmul.mubr.f32.gmra.mrb[0].mxu0 %v1229
    %v1324 = vpop.f32.mrb[0].mxu0
    %v1325 = vadd.f32 0.0, %v1324
    %v1326 = vpop.f32.mrb[0].mxu0
    %1327 = vmatprep.mubr.f32.mxu0 0.0
    %1328 = vmatmul.mubr.f32.gmra.mrb[0].mxu0 %v1230
    %v1329 = vpop.f32.mrb[0].mxu0
    %v1330 = vadd.f32 0.0, %v1329
    %v1331 = vpop.f32.mrb[0].mxu0
    %1332 = vmatprep.mubr.f32.mxu0 0.0
    %1333 = vmatmul.mubr.f32.gmra.mrb[0].mxu0 %v1231
    %v1334 = vpop.f32.mrb[0].mxu0
    %v1335 = vadd.f32 0.0, %v1334
    %v1336 = vpop.f32.mrb[0].mxu0
    %1337 = vmatprep.mubr.f32.mxu0 0.0
    %1338 = vmatmul.mubr.f32.gmra.mrb[0].mxu0 %v1232
    %v1339 = vpop.f32.mrb[0].mxu0
    %v1340 = vadd.f32 0.0, %v1339
    %v1341 = vpop.f32.mrb[0].mxu0
    %1342 = vmatprep.mubr.f32.mxu0 0.0
    %1343 = vmatmul.mubr.f32.gmra.mrb[0].mxu0 %v1233
    %v1344 = vpop.f32.mrb[0].mxu0
    %v1345 = vadd.f32 0.0, %v1344
    %v1346 = vpop.f32.mrb[0].mxu0
    %1347 = vmatprep.mubr.f32.mxu0 0.0
    %1348 = vmatmul.mubr.f32.gmra.mrb[0].mxu0 %v1234
    %v1349 = vpop.f32.mrb[0].mxu0
    %v1350 = vadd.f32 0.0, %v1349
    %v1351 = vpop.f32.mrb[0].mxu0
    %1352 = vmatprep.mubr.f32.mxu0 0.0
    %1353 = vmatmul.mubr.f32.gmra.mrb[0].mxu0 %v1235
    %v1354 = vpop.f32.mrb[0].mxu0
    %v1355 = vadd.f32 0.0, %v1354
    %v1356 = vpop.f32.mrb[0].mxu0
    %1357 = vdwg.mxu0
    %v1358 = vmul.f32 %v791, %v1320
    %v1359 = vmul.f32 %v796, %v1325
    %v1360 = vmul.f32 %v801, %v1330
    %v1361 = vmul.f32 %v806, %v1335
    %v1362 = vmul.f32 %v811, %v1340
    %v1363 = vmul.f32 %v816, %v1345
    %v1364 = vmul.f32 %v821, %v1350
    %v1365 = vmul.f32 %v826, %v1355
    %v1366 = vpack.c.bf16 %v1359, %v1358
    %v1367 = vpack.c.bf16 %v1361, %v1360
    %v1368 = vpack.c.bf16 %v1363, %v1362
    %v1369 = vpack.c.bf16 %v1365, %v1364
    %v1370 = vld [vmem:[%s2] sm:$0xf]
    %v1371 = vld [vmem:[%s2 + $0x4] sm:$0xf]
    %v1372 = vld [vmem:[%s2 + $0x8] sm:$0xf]
    %v1373 = vld [vmem:[%s2 + $0xc] sm:$0xf]
    %v1374 = vld [vmem:[%s2 + $0x10] sm:$0xf]
    %v1375 = vld [vmem:[%s2 + $0x14] sm:$0xf]
    %v1376 = vld [vmem:[%s2 + $0x18] sm:$0xf]
    %v1377 = vld [vmem:[%s2 + $0x1c] sm:$0xf]
    %v1386 = vunpack.c.l.b16 %v1370
    %v1387 = vunpack.c.l.b16 %v1371
    %v1388 = vunpack.c.l.b16 %v1372
    %v1389 = vunpack.c.l.b16 %v1373
    %v1390 = vunpack.c.l.b16 %v1374
    %v1391 = vunpack.c.l.b16 %v1375
    %v1392 = vunpack.c.l.b16 %v1376
    %v1393 = vunpack.c.l.b16 %v1377
    %v1394 = vpack.c.b16 %v1387, %v1386
    %v1395 = vpack.c.b16 %v1389, %v1388
    %v1396 = vpack.c.b16 %v1391, %v1390
    %v1397 = vpack.c.b16 %v1393, %v1392
    %v1399 = vsel %vm868, %v1394, 0
    %v1402 = vsel %vm868, %v1395, 0
    %v1405 = vsel %vm868, %v1396, 0
    %v1408 = vsel %vm868, %v1397, 0
    %1410 = vmatprep.subr.bf16.mxu0 0
    %1411 = vmatpush1.bf16.msra.mxu0 %v1366
    %1412 = vmatprep.subr.bf16.mxu0 0
    %1413 = vmatpush1.bf16.msra.mxu0 %v1367
    %1414 = vmatprep.subr.bf16.mxu0 0
    %1415 = vmatpush1.bf16.msra.mxu0 %v1368
    %1416 = vmatprep.subr.bf16.mxu0 0
    %1417 = vmatpush1.bf16.msra.mxu0 %v1369
    %1418 = vmatprep.subr.bf16.mxu0 0
    %1419 = vmatpush1.bf16.msra.mxu0 0
    %1420 = vmatprep.subr.bf16.mxu0 0
    %1421 = vmatpush1.bf16.msra.mxu0 0
    %1422 = vmatprep.subr.bf16.mxu0 0
    %1423 = vmatpush1.bf16.msra.mxu0 0
    %1424 = vmatprep.subr.bf16.mxu0 0
    %1425 = vmatpush1.bf16.msra.mxu0 0
    %1426 = vmatprep.subr.bf16.mxu0 0
    %1427 = vmatpush1.bf16.msra.mxu0 0
    %1428 = vmatprep.subr.bf16.mxu0 0
    %1429 = vmatpush1.bf16.msra.mxu0 0
    %1430 = vmatprep.subr.bf16.mxu0 0
    %1431 = vmatpush1.bf16.msra.mxu0 0
    %1432 = vmatprep.subr.bf16.mxu0 0
    %1433 = vmatpush1.bf16.msra.mxu0 0
    %1434 = vmatprep.subr.bf16.mxu0 0
    %1435 = vmatpush1.bf16.msra.mxu0 0
    %1436 = vmatprep.subr.bf16.mxu0 0
    %1437 = vmatpush1.bf16.msra.mxu0 0
    %1438 = vmatprep.subr.bf16.mxu0 0
    %1439 = vmatpush1.bf16.msra.mxu0 0
    %1440 = vmatprep.subr.bf16.mxu0 0
    %1441 = vmatpush1.bf16.msra.mxu0 0
    %1442 = vmatprep.mubr.bf16.mxu0 0
    %1443 = vmatmul.mubr.bf16.gmra.mrb[0].mxu0 %v1399
    %v1444 = vpop.f32.mrb[0].mxu0
    %v1445 = vadd.f32 0.0, %v1444
    %v1446 = vpop.f32.mrb[0].mxu0
    %v1447 = vpop.f32.mrb[0].mxu0
    %v1448 = vadd.f32 0.0, %v1447
    %v1449 = vpop.f32.mrb[0].mxu0
    %1450 = vmatprep.mubr.bf16.mxu0 0
    %1451 = vmatmul.mubr.bf16.gmra.mrb[0].mxu0 %v1402
    %v1452 = vpop.f32.mrb[0].mxu0
    %v1453 = vadd.f32 0.0, %v1452
    %v1454 = vpop.f32.mrb[0].mxu0
    %v1455 = vpop.f32.mrb[0].mxu0
    %v1456 = vadd.f32 0.0, %v1455
    %v1457 = vpop.f32.mrb[0].mxu0
    %1458 = vmatprep.mubr.bf16.mxu0 0
    %1459 = vmatmul.mubr.bf16.gmra.mrb[0].mxu0 %v1405
    %v1460 = vpop.f32.mrb[0].mxu0
    %v1461 = vadd.f32 0.0, %v1460
    %v1462 = vpop.f32.mrb[0].mxu0
    %v1463 = vpop.f32.mrb[0].mxu0
    %v1464 = vadd.f32 0.0, %v1463
    %v1465 = vpop.f32.mrb[0].mxu0
    %1466 = vmatprep.mubr.bf16.mxu0 0
    %1467 = vmatmul.mubr.bf16.gmra.mrb[0].mxu0 %v1408
    %v1468 = vpop.f32.mrb[0].mxu0
    %v1469 = vadd.f32 0.0, %v1468
    %v1470 = vpop.f32.mrb[0].mxu0
    %v1471 = vpop.f32.mrb[0].mxu0
    %v1472 = vadd.f32 0.0, %v1471
    %v1473 = vpop.f32.mrb[0].mxu0
    %1474 = vdwg.mxu0
    %v1475 = vmul.f32 %v962, 0.5
    %v1476 = vmul.f32 %v963, 0.5
    %v1477 = vmul.f32 %v964, 0.5
    %v1478 = vmul.f32 %v965, 0.5
    %v1479 = vmul.f32 %v966, 0.5
    %v1480 = vmul.f32 %v967, 0.5
    %v1481 = vmul.f32 %v968, 0.5
    %v1482 = vmul.f32 %v969, 0.5
    %v1483 = vmul.f32 %v1445, 0.5
    %v1484 = vmul.f32 %v1448, 0.5
    %v1485 = vmul.f32 %v1453, 0.5
    %v1486 = vmul.f32 %v1456, 0.5
    %v1487 = vmul.f32 %v1461, 0.5
    %v1488 = vmul.f32 %v1464, 0.5
    %v1489 = vmul.f32 %v1469, 0.5
    %v1490 = vmul.f32 %v1472, 0.5
    %v1491 = vadd.f32 %v1475, %v1483
    %v1492 = vadd.f32 %v1476, %v1484
    %v1493 = vadd.f32 %v1477, %v1485
    %v1494 = vadd.f32 %v1478, %v1486
    %v1495 = vadd.f32 %v1479, %v1487
    %v1496 = vadd.f32 %v1480, %v1488
    %v1497 = vadd.f32 %v1481, %v1489
    %v1498 = vadd.f32 %v1482, %v1490
    %1499 = vst [vmem:[#allocation8] sm:$0xff] %v1491
    %1500 = vst [vmem:[#allocation8 + $0x8] sm:$0xff] %v1492
    %1501 = vst [vmem:[#allocation8 + $0x10] sm:$0xff] %v1493
    %1502 = vst [vmem:[#allocation8 + $0x18] sm:$0xff] %v1494
    %1503 = vst [vmem:[#allocation8 + $0x20] sm:$0xff] %v1495
    %1504 = vst [vmem:[#allocation8 + $0x28] sm:$0xff] %v1496
    %1505 = vst [vmem:[#allocation8 + $0x30] sm:$0xff] %v1497
    %1506 = vst [vmem:[#allocation8 + $0x38] sm:$0xff] %v1498
    %v1507 = vld [vmem:[#allocation8] sm:$0xff]
    %v1508 = vld [vmem:[#allocation8 + $0x8] sm:$0xff]
    %v1509 = vld [vmem:[#allocation8 + $0x10] sm:$0xff]
    %v1510 = vld [vmem:[#allocation8 + $0x18] sm:$0xff]
    %v1511 = vld [vmem:[#allocation8 + $0x20] sm:$0xff]
    %v1512 = vld [vmem:[#allocation8 + $0x28] sm:$0xff]
    %v1513 = vld [vmem:[#allocation8 + $0x30] sm:$0xff]
    %v1514 = vld [vmem:[#allocation8 + $0x38] sm:$0xff]
    %v1515 = vmul.f32 %v791, %v1507
    %v1516 = vmul.f32 %v796, %v1508
    %v1517 = vmul.f32 %v801, %v1509
    %v1518 = vmul.f32 %v806, %v1510
    %v1519 = vmul.f32 %v811, %v1511
    %v1520 = vmul.f32 %v816, %v1512
    %v1521 = vmul.f32 %v821, %v1513
    %v1522 = vmul.f32 %v826, %v1514
    %v1523 = vld [vmem:[#allocation2] sm:$0xff]
    %v1524 = vld [vmem:[#allocation2 + $0x8] sm:$0xff]
    %v1525 = vld [vmem:[#allocation2 + $0x10] sm:$0xff]
    %v1526 = vld [vmem:[#allocation2 + $0x18] sm:$0xff]
    %v1527 = vld [vmem:[#allocation2 + $0x20] sm:$0xff]
    %v1528 = vld [vmem:[#allocation2 + $0x28] sm:$0xff]
    %v1529 = vld [vmem:[#allocation2 + $0x30] sm:$0xff]
    %v1530 = vld [vmem:[#allocation2 + $0x38] sm:$0xff]
    %v1531 = vld [vmem:[#allocation2 + $0x40] sm:$0xff]
    %v1532 = vld [vmem:[#allocation2 + $0x48] sm:$0xff]
    %v1533 = vld [vmem:[#allocation2 + $0x50] sm:$0xff]
    %v1534 = vld [vmem:[#allocation2 + $0x58] sm:$0xff]
    %v1535 = vld [vmem:[#allocation2 + $0x60] sm:$0xff]
    %v1536 = vld [vmem:[#allocation2 + $0x68] sm:$0xff]
    %v1537 = vld [vmem:[#allocation2 + $0x70] sm:$0xff]
    %v1538 = vld [vmem:[#allocation2 + $0x78] sm:$0xff]
    %1539 = vmatprep.subr.mxu0 0.0
    %1540 = vmatpush1.msra.mxu0 %v1523
    %1541 = vmatprep.subr.mxu0 0.0
    %1542 = vmatpush1.msra.mxu0 %v1524
    %1543 = vmatprep.subr.mxu0 0.0
    %1544 = vmatpush1.msra.mxu0 %v1525
    %1545 = vmatprep.subr.mxu0 0.0
    %1546 = vmatpush1.msra.mxu0 %v1526
    %1547 = vmatprep.subr.mxu0 0.0
    %1548 = vmatpush1.msra.mxu0 %v1527
    %1549 = vmatprep.subr.mxu0 0.0
    %1550 = vmatpush1.msra.mxu0 %v1528
    %1551 = vmatprep.subr.mxu0 0.0
    %1552 = vmatpush1.msra.mxu0 %v1529
    %1553 = vmatprep.subr.mxu0 0.0
    %1554 = vmatpush1.msra.mxu0 %v1530
    %1555 = vmatprep.subr.mxu0 0.0
    %1556 = vmatpush1.msra.mxu0 %v1531
    %1557 = vmatprep.subr.mxu0 0.0
    %1558 = vmatpush1.msra.mxu0 %v1532
    %1559 = vmatprep.subr.mxu0 0.0
    %1560 = vmatpush1.msra.mxu0 %v1533
    %1561 = vmatprep.subr.mxu0 0.0
    %1562 = vmatpush1.msra.mxu0 %v1534
    %1563 = vmatprep.subr.mxu0 0.0
    %1564 = vmatpush1.msra.mxu0 %v1535
    %1565 = vmatprep.subr.mxu0 0.0
    %1566 = vmatpush1.msra.mxu0 %v1536
    %1567 = vmatprep.subr.mxu0 0.0
    %1568 = vmatpush1.msra.mxu0 %v1537
    %1569 = vmatprep.subr.mxu0 0.0
    %1570 = vmatpush1.msra.mxu0 %v1538
    %1571 = vmatprep.subr.mxu0 0.0
    %1572 = vmatpush1.msra.mxu0 0.0
    %1573 = vmatprep.subr.mxu0 0.0
    %1574 = vmatpush1.msra.mxu0 0.0
    %1575 = vmatprep.subr.mxu0 0.0
    %1576 = vmatpush1.msra.mxu0 0.0
    %1577 = vmatprep.subr.mxu0 0.0
    %1578 = vmatpush1.msra.mxu0 0.0
    %1579 = vmatprep.subr.mxu0 0.0
    %1580 = vmatpush1.msra.mxu0 0.0
    %1581 = vmatprep.subr.mxu0 0.0
    %1582 = vmatpush1.msra.mxu0 0.0
    %1583 = vmatprep.subr.mxu0 0.0
    %1584 = vmatpush1.msra.mxu0 0.0
    %1585 = vmatprep.subr.mxu0 0.0
    %1586 = vmatpush1.msra.mxu0 0.0
    %1587 = vmatprep.subr.mxu0 0.0
    %1588 = vmatpush1.msra.mxu0 0.0
    %1589 = vmatprep.subr.mxu0 0.0
    %1590 = vmatpush1.msra.mxu0 0.0
    %1591 = vmatprep.subr.mxu0 0.0
    %1592 = vmatpush1.msra.mxu0 0.0
    %1593 = vmatprep.subr.mxu0 0.0
    %1594 = vmatpush1.msra.mxu0 0.0
    %1595 = vmatprep.subr.mxu0 0.0
    %1596 = vmatpush1.msra.mxu0 0.0
    %1597 = vmatprep.subr.mxu0 0.0
    %1598 = vmatpush1.msra.mxu0 0.0
    %1599 = vmatprep.subr.mxu0 0.0
    %1600 = vmatpush1.msra.mxu0 0.0
    %1601 = vmatprep.subr.mxu0 0.0
    %1602 = vmatpush1.msra.mxu0 0.0
    %1603 = vmatprep.mubr.f32.mxu0 0.0
    %1604 = vmatmul.mubr.f32.gmra.mrb[0].mxu0 %v1515
    %v1605 = vpop.f32.mrb[0].mxu0
    %v1606 = vadd.f32 %v377, %v1605
    %v1607 = vpop.f32.mrb[0].mxu0
    %1608 = vmatprep.mubr.f32.mxu0 0.0
    %1609 = vmatmul.mubr.f32.gmra.mrb[0].mxu0 %v1516
    %v1610 = vpop.f32.mrb[0].mxu0
    %v1611 = vadd.f32 %v378, %v1610
    %v1612 = vpop.f32.mrb[0].mxu0
    %1613 = vmatprep.mubr.f32.mxu0 0.0
    %1614 = vmatmul.mubr.f32.gmra.mrb[0].mxu0 %v1517
    %v1615 = vpop.f32.mrb[0].mxu0
    %v1616 = vadd.f32 %v379, %v1615
    %v1617 = vpop.f32.mrb[0].mxu0
    %1618 = vmatprep.mubr.f32.mxu0 0.0
    %1619 = vmatmul.mubr.f32.gmra.mrb[0].mxu0 %v1518
    %v1620 = vpop.f32.mrb[0].mxu0
    %v1621 = vadd.f32 %v380, %v1620
    %v1622 = vpop.f32.mrb[0].mxu0
    %1623 = vmatprep.mubr.f32.mxu0 0.0
    %1624 = vmatmul.mubr.f32.gmra.mrb[0].mxu0 %v1519
    %v1625 = vpop.f32.mrb[0].mxu0
    %v1626 = vadd.f32 %v381, %v1625
    %v1627 = vpop.f32.mrb[0].mxu0
    %1628 = vmatprep.mubr.f32.mxu0 0.0
    %1629 = vmatmul.mubr.f32.gmra.mrb[0].mxu0 %v1520
    %v1630 = vpop.f32.mrb[0].mxu0
    %v1631 = vadd.f32 %v382, %v1630
    %v1632 = vpop.f32.mrb[0].mxu0
    %1633 = vmatprep.mubr.f32.mxu0 0.0
    %1634 = vmatmul.mubr.f32.gmra.mrb[0].mxu0 %v1521
    %v1635 = vpop.f32.mrb[0].mxu0
    %v1636 = vadd.f32 %v383, %v1635
    %v1637 = vpop.f32.mrb[0].mxu0
    %1638 = vmatprep.mubr.f32.mxu0 0.0
    %1639 = vmatmul.mubr.f32.gmra.mrb[0].mxu0 %v1522
    %v1640 = vpop.f32.mrb[0].mxu0
    %v1641 = vadd.f32 %v384, %v1640
    %v1642 = vpop.f32.mrb[0].mxu0
    %1643 = vdwg.mxu0
    %1644 = vadd.xlane.f32.xlu0 %v1606
    %v1645 = vpop.xlane.xlu0 %1644
    %1646 = vadd.xlane.f32.xlu0 %v1611
    %v1647 = vpop.xlane.xlu0 %1646
    %1648 = vadd.xlane.f32.xlu0 %v1616
    %v1649 = vpop.xlane.xlu0 %1648
    %1650 = vadd.xlane.f32.xlu0 %v1621
    %v1651 = vpop.xlane.xlu0 %1650
    %1652 = vadd.xlane.f32.xlu0 %v1626
    %v1653 = vpop.xlane.xlu0 %1652
    %1654 = vadd.xlane.f32.xlu0 %v1631
    %v1655 = vpop.xlane.xlu0 %1654
    %1656 = vadd.xlane.f32.xlu0 %v1636
    %v1657 = vpop.xlane.xlu0 %1656
    %1658 = vadd.xlane.f32.xlu0 %v1641
    %v1659 = vpop.xlane.xlu0 %1658
    %v1660 = vmul.f32 %v1645, 0.03125
    %v1661 = vmul.f32 %v1647, 0.03125
    %v1662 = vmul.f32 %v1649, 0.03125
    %v1663 = vmul.f32 %v1651, 0.03125
    %v1664 = vmul.f32 %v1653, 0.03125
    %v1665 = vmul.f32 %v1655, 0.03125
    %v1666 = vmul.f32 %v1657, 0.03125
    %v1667 = vmul.f32 %v1659, 0.03125
    %v1668 = vsub.f32 %v1606, %v1660
    %v1669 = vsub.f32 %v1611, %v1661
    %v1670 = vsub.f32 %v1616, %v1662
    %v1671 = vsub.f32 %v1621, %v1663
    %v1672 = vsub.f32 %v1626, %v1664
    %v1673 = vsub.f32 %v1631, %v1665
    %v1674 = vsub.f32 %v1636, %v1666
    %v1675 = vsub.f32 %v1641, %v1667
    %v1676 = vsel %vm564, %v1668, 0.0
    %v1677 = vsel %vm564, %v1669, 0.0
    %v1678 = vsel %vm564, %v1670, 0.0
    %v1679 = vsel %vm564, %v1671, 0.0
    %v1680 = vsel %vm564, %v1672, 0.0
    %v1681 = vsel %vm564, %v1673, 0.0
    %v1682 = vsel %vm564, %v1674, 0.0
    %v1683 = vsel %vm564, %v1675, 0.0
    %v1684 = vmul.f32 %v1676, %v1676
    %v1685 = vmul.f32 %v1677, %v1677
    %v1686 = vmul.f32 %v1678, %v1678
    %v1687 = vmul.f32 %v1679, %v1679
    %v1688 = vmul.f32 %v1680, %v1680
    %v1689 = vmul.f32 %v1681, %v1681
    %v1690 = vmul.f32 %v1682, %v1682
    %v1691 = vmul.f32 %v1683, %v1683
    %1692 = vadd.xlane.f32.xlu0 %v1684
    %v1693 = vpop.xlane.xlu0 %1692
    %1694 = vadd.xlane.f32.xlu0 %v1685
    %v1695 = vpop.xlane.xlu0 %1694
    %1696 = vadd.xlane.f32.xlu0 %v1686
    %v1697 = vpop.xlane.xlu0 %1696
    %1698 = vadd.xlane.f32.xlu0 %v1687
    %v1699 = vpop.xlane.xlu0 %1698
    %1700 = vadd.xlane.f32.xlu0 %v1688
    %v1701 = vpop.xlane.xlu0 %1700
    %1702 = vadd.xlane.f32.xlu0 %v1689
    %v1703 = vpop.xlane.xlu0 %1702
    %1704 = vadd.xlane.f32.xlu0 %v1690
    %v1705 = vpop.xlane.xlu0 %1704
    %1706 = vadd.xlane.f32.xlu0 %v1691
    %v1707 = vpop.xlane.xlu0 %1706
    %v1708 = vmul.f32 %v1693, 0.03125
    %v1709 = vmul.f32 %v1695, 0.03125
    %v1710 = vmul.f32 %v1697, 0.03125
    %v1711 = vmul.f32 %v1699, 0.03125
    %v1712 = vmul.f32 %v1701, 0.03125
    %v1713 = vmul.f32 %v1703, 0.03125
    %v1714 = vmul.f32 %v1705, 0.03125
    %v1715 = vmul.f32 %v1707, 0.03125
    %v1716 = vadd.f32 %v1708, 1e-05
    %v1717 = vadd.f32 %v1709, 1e-05
    %v1718 = vadd.f32 %v1710, 1e-05
    %v1719 = vadd.f32 %v1711, 1e-05
    %v1720 = vadd.f32 %v1712, 1e-05
    %v1721 = vadd.f32 %v1713, 1e-05
    %v1722 = vadd.f32 %v1714, 1e-05
    %v1723 = vadd.f32 %v1715, 1e-05
    %v1724 = vrsqrt.pop %v1716
    %v1725 = vrsqrt.pop %v1717
    %v1726 = vrsqrt.pop %v1718
    %v1727 = vrsqrt.pop %v1719
    %v1728 = vrsqrt.pop %v1720
    %v1729 = vrsqrt.pop %v1721
    %v1730 = vrsqrt.pop %v1722
    %v1731 = vrsqrt.pop %v1723
    %v1732 = vmul.f32 %v1676, %v1724
    %v1733 = vmul.f32 %v1677, %v1725
    %v1734 = vmul.f32 %v1678, %v1726
    %v1735 = vmul.f32 %v1679, %v1727
    %v1736 = vmul.f32 %v1680, %v1728
    %v1737 = vmul.f32 %v1681, %v1729
    %v1738 = vmul.f32 %v1682, %v1730
    %v1739 = vmul.f32 %v1683, %v1731
    %v1740 = vld [vmem:[%s10] sm:$0x1]
    %v1742 = vlaneseq
    %v1743 = vshrl.u32 %v1742, 7
    %v1744 = vsub.s32 0, %v1743
    %v1745 = vrot.slane %v1740, %v1744
    %v1747 = vmul.f32 %v1732, %v1745
    %v1748 = vmul.f32 %v1733, %v1745
    %v1749 = vmul.f32 %v1734, %v1745
    %v1750 = vmul.f32 %v1735, %v1745
    %v1751 = vmul.f32 %v1736, %v1745
    %v1752 = vmul.f32 %v1737, %v1745
    %v1753 = vmul.f32 %v1738, %v1745
    %v1754 = vmul.f32 %v1739, %v1745
    %v1755 = vld [vmem:[%s11] sm:$0x1]
    %v1757 = vlaneseq
    %v1758 = vshrl.u32 %v1757, 7
    %v1759 = vsub.s32 0, %v1758
    %v1760 = vrot.slane %v1755, %v1759
    %v1762 = vadd.f32 %v1747, %v1760
    %v1763 = vadd.f32 %v1748, %v1760
    %v1764 = vadd.f32 %v1749, %v1760
    %v1765 = vadd.f32 %v1750, %v1760
    %v1766 = vadd.f32 %v1751, %v1760
    %v1767 = vadd.f32 %v1752, %v1760
    %v1768 = vadd.f32 %v1753, %v1760
    %v1769 = vadd.f32 %v1754, %v1760
    %v1770 = vtanh.pop %v1762
    %v1771 = vtanh.pop %v1763
    %v1772 = vtanh.pop %v1764
    %v1773 = vtanh.pop %v1765
    %v1774 = vtanh.pop %v1766
    %v1775 = vtanh.pop %v1767
    %v1776 = vtanh.pop %v1768
    %v1777 = vtanh.pop %v1769
    %v1778 = vld [vmem:[#allocation5] sm:$0xff]
    %v1779 = vld [vmem:[#allocation5 + $0x8] sm:$0xff]
    %v1780 = vld [vmem:[#allocation5 + $0x10] sm:$0xff]
    %v1781 = vld [vmem:[#allocation5 + $0x18] sm:$0xff]
    %v1782 = vld [vmem:[#allocation5 + $0x20] sm:$0xff]
    %v1783 = vld [vmem:[#allocation5 + $0x28] sm:$0xff]
    %v1784 = vld [vmem:[#allocation5 + $0x30] sm:$0xff]
    %v1785 = vld [vmem:[#allocation5 + $0x38] sm:$0xff]
    %v1786 = vld [vmem:[#allocation5 + $0x40] sm:$0xff]
    %v1787 = vld [vmem:[#allocation5 + $0x48] sm:$0xff]
    %v1788 = vld [vmem:[#allocation5 + $0x50] sm:$0xff]
    %v1789 = vld [vmem:[#allocation5 + $0x58] sm:$0xff]
    %v1790 = vld [vmem:[#allocation5 + $0x60] sm:$0xff]
    %v1791 = vld [vmem:[#allocation5 + $0x68] sm:$0xff]
    %v1792 = vld [vmem:[#allocation5 + $0x70] sm:$0xff]
    %v1793 = vld [vmem:[#allocation5 + $0x78] sm:$0xff]
    %1794 = vmatprep.subr.mxu0 0.0
    %1795 = vmatpush1.msra.mxu0 %v1778
    %1796 = vmatprep.subr.mxu0 0.0
    %1797 = vmatpush1.msra.mxu0 %v1779
    %1798 = vmatprep.subr.mxu0 0.0
    %1799 = vmatpush1.msra.mxu0 %v1780
    %1800 = vmatprep.subr.mxu0 0.0
    %1801 = vmatpush1.msra.mxu0 %v1781
    %1802 = vmatprep.subr.mxu0 0.0
    %1803 = vmatpush1.msra.mxu0 %v1782
    %1804 = vmatprep.subr.mxu0 0.0
    %1805 = vmatpush1.msra.mxu0 %v1783
    %1806 = vmatprep.subr.mxu0 0.0
    %1807 = vmatpush1.msra.mxu0 %v1784
    %1808 = vmatprep.subr.mxu0 0.0
    %1809 = vmatpush1.msra.mxu0 %v1785
    %1810 = vmatprep.subr.mxu0 0.0
    %1811 = vmatpush1.msra.mxu0 %v1786
    %1812 = vmatprep.subr.mxu0 0.0
    %1813 = vmatpush1.msra.mxu0 %v1787
    %1814 = vmatprep.subr.mxu0 0.0
    %1815 = vmatpush1.msra.mxu0 %v1788
    %1816 = vmatprep.subr.mxu0 0.0
    %1817 = vmatpush1.msra.mxu0 %v1789
    %1818 = vmatprep.subr.mxu0 0.0
    %1819 = vmatpush1.msra.mxu0 %v1790
    %1820 = vmatprep.subr.mxu0 0.0
    %1821 = vmatpush1.msra.mxu0 %v1791
    %1822 = vmatprep.subr.mxu0 0.0
    %1823 = vmatpush1.msra.mxu0 %v1792
    %1824 = vmatprep.subr.mxu0 0.0
    %1825 = vmatpush1.msra.mxu0 %v1793
    %1826 = vmatprep.subr.mxu0 0.0
    %1827 = vmatpush1.msra.mxu0 0.0
    %1828 = vmatprep.subr.mxu0 0.0
    %1829 = vmatpush1.msra.mxu0 0.0
    %1830 = vmatprep.subr.mxu0 0.0
    %1831 = vmatpush1.msra.mxu0 0.0
    %1832 = vmatprep.subr.mxu0 0.0
    %1833 = vmatpush1.msra.mxu0 0.0
    %1834 = vmatprep.subr.mxu0 0.0
    %1835 = vmatpush1.msra.mxu0 0.0
    %1836 = vmatprep.subr.mxu0 0.0
    %1837 = vmatpush1.msra.mxu0 0.0
    %1838 = vmatprep.subr.mxu0 0.0
    %1839 = vmatpush1.msra.mxu0 0.0
    %1840 = vmatprep.subr.mxu0 0.0
    %1841 = vmatpush1.msra.mxu0 0.0
    %1842 = vmatprep.subr.mxu0 0.0
    %1843 = vmatpush1.msra.mxu0 0.0
    %1844 = vmatprep.subr.mxu0 0.0
    %1845 = vmatpush1.msra.mxu0 0.0
    %1846 = vmatprep.subr.mxu0 0.0
    %1847 = vmatpush1.msra.mxu0 0.0
    %1848 = vmatprep.subr.mxu0 0.0
    %1849 = vmatpush1.msra.mxu0 0.0
    %1850 = vmatprep.subr.mxu0 0.0
    %1851 = vmatpush1.msra.mxu0 0.0
    %1852 = vmatprep.subr.mxu0 0.0
    %1853 = vmatpush1.msra.mxu0 0.0
    %1854 = vmatprep.subr.mxu0 0.0
    %1855 = vmatpush1.msra.mxu0 0.0
    %1856 = vmatprep.subr.mxu0 0.0
    %1857 = vmatpush1.msra.mxu0 0.0
    %1858 = vmatprep.mubr.f32.mxu0 0.0
    %1859 = vmatmul.mubr.f32.gmra.mrb[0].mxu0 %v1770
    %v1860 = vpop.f32.mrb[0].mxu0
    %v1861 = vadd.f32 0.0, %v1860
    %v1862 = vpop.f32.mrb[0].mxu0
    %1863 = vmatprep.mubr.f32.mxu0 0.0
    %1864 = vmatmul.mubr.f32.gmra.mrb[0].mxu0 %v1771
    %v1865 = vpop.f32.mrb[0].mxu0
    %v1866 = vadd.f32 0.0, %v1865
    %v1867 = vpop.f32.mrb[0].mxu0
    %1868 = vmatprep.mubr.f32.mxu0 0.0
    %1869 = vmatmul.mubr.f32.gmra.mrb[0].mxu0 %v1772
    %v1870 = vpop.f32.mrb[0].mxu0
    %v1871 = vadd.f32 0.0, %v1870
    %v1872 = vpop.f32.mrb[0].mxu0
    %1873 = vmatprep.mubr.f32.mxu0 0.0
    %1874 = vmatmul.mubr.f32.gmra.mrb[0].mxu0 %v1773
    %v1875 = vpop.f32.mrb[0].mxu0
    %v1876 = vadd.f32 0.0, %v1875
    %v1877 = vpop.f32.mrb[0].mxu0
    %1878 = vmatprep.mubr.f32.mxu0 0.0
    %1879 = vmatmul.mubr.f32.gmra.mrb[0].mxu0 %v1774
    %v1880 = vpop.f32.mrb[0].mxu0
    %v1881 = vadd.f32 0.0, %v1880
    %v1882 = vpop.f32.mrb[0].mxu0
    %1883 = vmatprep.mubr.f32.mxu0 0.0
    %1884 = vmatmul.mubr.f32.gmra.mrb[0].mxu0 %v1775
    %v1885 = vpop.f32.mrb[0].mxu0
    %v1886 = vadd.f32 0.0, %v1885
    %v1887 = vpop.f32.mrb[0].mxu0
    %1888 = vmatprep.mubr.f32.mxu0 0.0
    %1889 = vmatmul.mubr.f32.gmra.mrb[0].mxu0 %v1776
    %v1890 = vpop.f32.mrb[0].mxu0
    %v1891 = vadd.f32 0.0, %v1890
    %v1892 = vpop.f32.mrb[0].mxu0
    %1893 = vmatprep.mubr.f32.mxu0 0.0
    %1894 = vmatmul.mubr.f32.gmra.mrb[0].mxu0 %v1777
    %v1895 = vpop.f32.mrb[0].mxu0
    %v1896 = vadd.f32 0.0, %v1895
    %v1897 = vpop.f32.mrb[0].mxu0
    %1898 = vdwg.mxu0
    %v1899 = vmul.f32 %v791, %v1861
    %v1900 = vmul.f32 %v796, %v1866
    %v1901 = vmul.f32 %v801, %v1871
    %v1902 = vmul.f32 %v806, %v1876
    %v1903 = vmul.f32 %v811, %v1881
    %v1904 = vmul.f32 %v816, %v1886
    %v1905 = vmul.f32 %v821, %v1891
    %v1906 = vmul.f32 %v826, %v1896
    %v1907 = vpack.c.bf16 %v1900, %v1899
    %v1908 = vpack.c.bf16 %v1902, %v1901
    %v1909 = vpack.c.bf16 %v1904, %v1903
    %v1910 = vpack.c.bf16 %v1906, %v1905
    %v1911 = vld [vmem:[%s2] sm:$0xf]
    %v1912 = vld [vmem:[%s2 + $0x4] sm:$0xf]
    %v1913 = vld [vmem:[%s2 + $0x8] sm:$0xf]
    %v1914 = vld [vmem:[%s2 + $0xc] sm:$0xf]
    %v1915 = vld [vmem:[%s2 + $0x10] sm:$0xf]
    %v1916 = vld [vmem:[%s2 + $0x14] sm:$0xf]
    %v1917 = vld [vmem:[%s2 + $0x18] sm:$0xf]
    %v1918 = vld [vmem:[%s2 + $0x1c] sm:$0xf]
    %v1927 = vunpack.c.l.b16 %v1911
    %v1928 = vunpack.c.l.b16 %v1912
    %v1929 = vunpack.c.l.b16 %v1913
    %v1930 = vunpack.c.l.b16 %v1914
    %v1931 = vunpack.c.l.b16 %v1915
    %v1932 = vunpack.c.l.b16 %v1916
    %v1933 = vunpack.c.l.b16 %v1917
    %v1934 = vunpack.c.l.b16 %v1918
    %v1935 = vpack.c.b16 %v1928, %v1927
    %v1936 = vpack.c.b16 %v1930, %v1929
    %v1937 = vpack.c.b16 %v1932, %v1931
    %v1938 = vpack.c.b16 %v1934, %v1933
    %v1940 = vsel %vm868, %v1935, 0
    %v1943 = vsel %vm868, %v1936, 0
    %v1946 = vsel %vm868, %v1937, 0
    %v1949 = vsel %vm868, %v1938, 0
    %1951 = vmatprep.subr.bf16.mxu0 0
    %1952 = vmatpush1.bf16.msra.mxu0 %v1907
    %1953 = vmatprep.subr.bf16.mxu0 0
    %1954 = vmatpush1.bf16.msra.mxu0 %v1908
    %1955 = vmatprep.subr.bf16.mxu0 0
    %1956 = vmatpush1.bf16.msra.mxu0 %v1909
    %1957 = vmatprep.subr.bf16.mxu0 0
    %1958 = vmatpush1.bf16.msra.mxu0 %v1910
    %1959 = vmatprep.subr.bf16.mxu0 0
    %1960 = vmatpush1.bf16.msra.mxu0 0
    %1961 = vmatprep.subr.bf16.mxu0 0
    %1962 = vmatpush1.bf16.msra.mxu0 0
    %1963 = vmatprep.subr.bf16.mxu0 0
    %1964 = vmatpush1.bf16.msra.mxu0 0
    %1965 = vmatprep.subr.bf16.mxu0 0
    %1966 = vmatpush1.bf16.msra.mxu0 0
    %1967 = vmatprep.subr.bf16.mxu0 0
    %1968 = vmatpush1.bf16.msra.mxu0 0
    %1969 = vmatprep.subr.bf16.mxu0 0
    %1970 = vmatpush1.bf16.msra.mxu0 0
    %1971 = vmatprep.subr.bf16.mxu0 0
    %1972 = vmatpush1.bf16.msra.mxu0 0
    %1973 = vmatprep.subr.bf16.mxu0 0
    %1974 = vmatpush1.bf16.msra.mxu0 0
    %1975 = vmatprep.subr.bf16.mxu0 0
    %1976 = vmatpush1.bf16.msra.mxu0 0
    %1977 = vmatprep.subr.bf16.mxu0 0
    %1978 = vmatpush1.bf16.msra.mxu0 0
    %1979 = vmatprep.subr.bf16.mxu0 0
    %1980 = vmatpush1.bf16.msra.mxu0 0
    %1981 = vmatprep.subr.bf16.mxu0 0
    %1982 = vmatpush1.bf16.msra.mxu0 0
    %1983 = vmatprep.mubr.bf16.mxu0 0
    %1984 = vmatmul.mubr.bf16.gmra.mrb[0].mxu0 %v1940
    %v1985 = vpop.f32.mrb[0].mxu0
    %v1986 = vadd.f32 0.0, %v1985
    %v1987 = vpop.f32.mrb[0].mxu0
    %v1988 = vpop.f32.mrb[0].mxu0
    %v1989 = vadd.f32 0.0, %v1988
    %v1990 = vpop.f32.mrb[0].mxu0
    %1991 = vmatprep.mubr.bf16.mxu0 0
    %1992 = vmatmul.mubr.bf16.gmra.mrb[0].mxu0 %v1943
    %v1993 = vpop.f32.mrb[0].mxu0
    %v1994 = vadd.f32 0.0, %v1993
    %v1995 = vpop.f32.mrb[0].mxu0
    %v1996 = vpop.f32.mrb[0].mxu0
    %v1997 = vadd.f32 0.0, %v1996
    %v1998 = vpop.f32.mrb[0].mxu0
    %1999 = vmatprep.mubr.bf16.mxu0 0
    %2000 = vmatmul.mubr.bf16.gmra.mrb[0].mxu0 %v1946
    %v2001 = vpop.f32.mrb[0].mxu0
    %v2002 = vadd.f32 0.0, %v2001
    %v2003 = vpop.f32.mrb[0].mxu0
    %v2004 = vpop.f32.mrb[0].mxu0
    %v2005 = vadd.f32 0.0, %v2004
    %v2006 = vpop.f32.mrb[0].mxu0
    %2007 = vmatprep.mubr.bf16.mxu0 0
    %2008 = vmatmul.mubr.bf16.gmra.mrb[0].mxu0 %v1949
    %v2009 = vpop.f32.mrb[0].mxu0
    %v2010 = vadd.f32 0.0, %v2009
    %v2011 = vpop.f32.mrb[0].mxu0
    %v2012 = vpop.f32.mrb[0].mxu0
    %v2013 = vadd.f32 0.0, %v2012
    %v2014 = vpop.f32.mrb[0].mxu0
    %2015 = vdwg.mxu0
    %v2016 = vmul.f32 %v1507, 0.5
    %v2017 = vmul.f32 %v1508, 0.5
    %v2018 = vmul.f32 %v1509, 0.5
    %v2019 = vmul.f32 %v1510, 0.5
    %v2020 = vmul.f32 %v1511, 0.5
    %v2021 = vmul.f32 %v1512, 0.5
    %v2022 = vmul.f32 %v1513, 0.5
    %v2023 = vmul.f32 %v1514, 0.5
    %v2024 = vmul.f32 %v1986, 0.5
    %v2025 = vmul.f32 %v1989, 0.5
    %v2026 = vmul.f32 %v1994, 0.5
    %v2027 = vmul.f32 %v1997, 0.5
    %v2028 = vmul.f32 %v2002, 0.5
    %v2029 = vmul.f32 %v2005, 0.5
    %v2030 = vmul.f32 %v2010, 0.5
    %v2031 = vmul.f32 %v2013, 0.5
    %v2032 = vadd.f32 %v2016, %v2024
    %v2033 = vadd.f32 %v2017, %v2025
    %v2034 = vadd.f32 %v2018, %v2026
    %v2035 = vadd.f32 %v2019, %v2027
    %v2036 = vadd.f32 %v2020, %v2028
    %v2037 = vadd.f32 %v2021, %v2029
    %v2038 = vadd.f32 %v2022, %v2030
    %v2039 = vadd.f32 %v2023, %v2031
    %2040 = vst [vmem:[#allocation8] sm:$0xff] %v2032
    %2041 = vst [vmem:[#allocation8 + $0x8] sm:$0xff] %v2033
    %2042 = vst [vmem:[#allocation8 + $0x10] sm:$0xff] %v2034
    %2043 = vst [vmem:[#allocation8 + $0x18] sm:$0xff] %v2035
    %2044 = vst [vmem:[#allocation8 + $0x20] sm:$0xff] %v2036
    %2045 = vst [vmem:[#allocation8 + $0x28] sm:$0xff] %v2037
    %2046 = vst [vmem:[#allocation8 + $0x30] sm:$0xff] %v2038
    %2047 = vst [vmem:[#allocation8 + $0x38] sm:$0xff] %v2039
    %v2048 = vld [vmem:[#allocation8] sm:$0xff]
    %v2049 = vld [vmem:[#allocation8 + $0x8] sm:$0xff]
    %v2050 = vld [vmem:[#allocation8 + $0x10] sm:$0xff]
    %v2051 = vld [vmem:[#allocation8 + $0x18] sm:$0xff]
    %v2052 = vld [vmem:[#allocation8 + $0x20] sm:$0xff]
    %v2053 = vld [vmem:[#allocation8 + $0x28] sm:$0xff]
    %v2054 = vld [vmem:[#allocation8 + $0x30] sm:$0xff]
    %v2055 = vld [vmem:[#allocation8 + $0x38] sm:$0xff]
    %v2056 = vmul.f32 %v791, %v2048
    %v2057 = vmul.f32 %v796, %v2049
    %v2058 = vmul.f32 %v801, %v2050
    %v2059 = vmul.f32 %v806, %v2051
    %v2060 = vmul.f32 %v811, %v2052
    %v2061 = vmul.f32 %v816, %v2053
    %v2062 = vmul.f32 %v821, %v2054
    %v2063 = vmul.f32 %v826, %v2055
    %v2064 = vld [vmem:[%s978] sm:$0xff]
    %v2065 = vld [vmem:[%s978 + $0x8] sm:$0xff]
    %v2066 = vld [vmem:[%s978 + $0x10] sm:$0xff]
    %v2067 = vld [vmem:[%s978 + $0x18] sm:$0xff]
    %v2068 = vld [vmem:[%s978 + $0x20] sm:$0xff]
    %v2069 = vld [vmem:[%s978 + $0x28] sm:$0xff]
    %v2070 = vld [vmem:[%s978 + $0x30] sm:$0xff]
    %v2071 = vld [vmem:[%s978 + $0x38] sm:$0xff]
    %v2072 = vld [vmem:[%s978 + $0x40] sm:$0xff]
    %v2073 = vld [vmem:[%s978 + $0x48] sm:$0xff]
    %v2074 = vld [vmem:[%s978 + $0x50] sm:$0xff]
    %v2075 = vld [vmem:[%s978 + $0x58] sm:$0xff]
    %v2076 = vld [vmem:[%s978 + $0x60] sm:$0xff]
    %v2077 = vld [vmem:[%s978 + $0x68] sm:$0xff]
    %v2078 = vld [vmem:[%s978 + $0x70] sm:$0xff]
    %v2079 = vld [vmem:[%s978 + $0x78] sm:$0xff]
    %2080 = vmatprep.subr.mxu0 0.0
    %2081 = vmatpush1.msra.mxu0 %v2064
    %2082 = vmatprep.subr.mxu0 0.0
    %2083 = vmatpush1.msra.mxu0 %v2065
    %2084 = vmatprep.subr.mxu0 0.0
    %2085 = vmatpush1.msra.mxu0 %v2066
    %2086 = vmatprep.subr.mxu0 0.0
    %2087 = vmatpush1.msra.mxu0 %v2067
    %2088 = vmatprep.subr.mxu0 0.0
    %2089 = vmatpush1.msra.mxu0 %v2068
    %2090 = vmatprep.subr.mxu0 0.0
    %2091 = vmatpush1.msra.mxu0 %v2069
    %2092 = vmatprep.subr.mxu0 0.0
    %2093 = vmatpush1.msra.mxu0 %v2070
    %2094 = vmatprep.subr.mxu0 0.0
    %2095 = vmatpush1.msra.mxu0 %v2071
    %2096 = vmatprep.subr.mxu0 0.0
    %2097 = vmatpush1.msra.mxu0 %v2072
    %2098 = vmatprep.subr.mxu0 0.0
    %2099 = vmatpush1.msra.mxu0 %v2073
    %2100 = vmatprep.subr.mxu0 0.0
    %2101 = vmatpush1.msra.mxu0 %v2074
    %2102 = vmatprep.subr.mxu0 0.0
    %2103 = vmatpush1.msra.mxu0 %v2075
    %2104 = vmatprep.subr.mxu0 0.0
    %2105 = vmatpush1.msra.mxu0 %v2076
    %2106 = vmatprep.subr.mxu0 0.0
    %2107 = vmatpush1.msra.mxu0 %v2077
    %2108 = vmatprep.subr.mxu0 0.0
    %2109 = vmatpush1.msra.mxu0 %v2078
    %2110 = vmatprep.subr.mxu0 0.0
    %2111 = vmatpush1.msra.mxu0 %v2079
    %2112 = vmatprep.subr.mxu0 0.0
    %2113 = vmatpush1.msra.mxu0 0.0
    %2114 = vmatprep.subr.mxu0 0.0
    %2115 = vmatpush1.msra.mxu0 0.0
    %2116 = vmatprep.subr.mxu0 0.0
    %2117 = vmatpush1.msra.mxu0 0.0
    %2118 = vmatprep.subr.mxu0 0.0
    %2119 = vmatpush1.msra.mxu0 0.0
    %2120 = vmatprep.subr.mxu0 0.0
    %2121 = vmatpush1.msra.mxu0 0.0
    %2122 = vmatprep.subr.mxu0 0.0
    %2123 = vmatpush1.msra.mxu0 0.0
    %2124 = vmatprep.subr.mxu0 0.0
    %2125 = vmatpush1.msra.mxu0 0.0
    %2126 = vmatprep.subr.mxu0 0.0
    %2127 = vmatpush1.msra.mxu0 0.0
    %2128 = vmatprep.subr.mxu0 0.0
    %2129 = vmatpush1.msra.mxu0 0.0
    %2130 = vmatprep.subr.mxu0 0.0
    %2131 = vmatpush1.msra.mxu0 0.0
    %2132 = vmatprep.subr.mxu0 0.0
    %2133 = vmatpush1.msra.mxu0 0.0
    %2134 = vmatprep.subr.mxu0 0.0
    %2135 = vmatpush1.msra.mxu0 0.0
    %2136 = vmatprep.subr.mxu0 0.0
    %2137 = vmatpush1.msra.mxu0 0.0
    %2138 = vmatprep.subr.mxu0 0.0
    %2139 = vmatpush1.msra.mxu0 0.0
    %2140 = vmatprep.subr.mxu0 0.0
    %2141 = vmatpush1.msra.mxu0 0.0
    %2142 = vmatprep.subr.mxu0 0.0
    %2143 = vmatpush1.msra.mxu0 0.0
    %2144 = vmatprep.mubr.f32.mxu0 0.0
    %2145 = vmatmul.mubr.f32.gmra.mrb[0].mxu0 %v2056
    %v2146 = vpop.f32.mrb[0].mxu0
    %v2147 = vadd.f32 %v523, %v2146
    %v2148 = vpop.f32.mrb[0].mxu0
    %2149 = vmatprep.mubr.f32.mxu0 0.0
    %2150 = vmatmul.mubr.f32.gmra.mrb[0].mxu0 %v2057
    %v2151 = vpop.f32.mrb[0].mxu0
    %v2152 = vadd.f32 %v524, %v2151
    %v2153 = vpop.f32.mrb[0].mxu0
    %2154 = vmatprep.mubr.f32.mxu0 0.0
    %2155 = vmatmul.mubr.f32.gmra.mrb[0].mxu0 %v2058
    %v2156 = vpop.f32.mrb[0].mxu0
    %v2157 = vadd.f32 %v525, %v2156
    %v2158 = vpop.f32.mrb[0].mxu0
    %2159 = vmatprep.mubr.f32.mxu0 0.0
    %2160 = vmatmul.mubr.f32.gmra.mrb[0].mxu0 %v2059
    %v2161 = vpop.f32.mrb[0].mxu0
    %v2162 = vadd.f32 %v526, %v2161
    %v2163 = vpop.f32.mrb[0].mxu0
    %2164 = vmatprep.mubr.f32.mxu0 0.0
    %2165 = vmatmul.mubr.f32.gmra.mrb[0].mxu0 %v2060
    %v2166 = vpop.f32.mrb[0].mxu0
    %v2167 = vadd.f32 %v527, %v2166
    %v2168 = vpop.f32.mrb[0].mxu0
    %2169 = vmatprep.mubr.f32.mxu0 0.0
    %2170 = vmatmul.mubr.f32.gmra.mrb[0].mxu0 %v2061
    %v2171 = vpop.f32.mrb[0].mxu0
    %v2172 = vadd.f32 %v528, %v2171
    %v2173 = vpop.f32.mrb[0].mxu0
    %2174 = vmatprep.mubr.f32.mxu0 0.0
    %2175 = vmatmul.mubr.f32.gmra.mrb[0].mxu0 %v2062
    %v2176 = vpop.f32.mrb[0].mxu0
    %v2177 = vadd.f32 %v529, %v2176
    %v2178 = vpop.f32.mrb[0].mxu0
    %2179 = vmatprep.mubr.f32.mxu0 0.0
    %2180 = vmatmul.mubr.f32.gmra.mrb[0].mxu0 %v2063
    %v2181 = vpop.f32.mrb[0].mxu0
    %v2182 = vadd.f32 %v530, %v2181
    %v2183 = vpop.f32.mrb[0].mxu0
    %2184 = vdwg.mxu0
    %2185 = vadd.xlane.f32.xlu0 %v2147
    %v2186 = vpop.xlane.xlu0 %2185
    %2187 = vadd.xlane.f32.xlu0 %v2152
    %v2188 = vpop.xlane.xlu0 %2187
    %2189 = vadd.xlane.f32.xlu0 %v2157
    %v2190 = vpop.xlane.xlu0 %2189
    %2191 = vadd.xlane.f32.xlu0 %v2162
    %v2192 = vpop.xlane.xlu0 %2191
    %2193 = vadd.xlane.f32.xlu0 %v2167
    %v2194 = vpop.xlane.xlu0 %2193
    %2195 = vadd.xlane.f32.xlu0 %v2172
    %v2196 = vpop.xlane.xlu0 %2195
    %2197 = vadd.xlane.f32.xlu0 %v2177
    %v2198 = vpop.xlane.xlu0 %2197
    %2199 = vadd.xlane.f32.xlu0 %v2182
    %v2200 = vpop.xlane.xlu0 %2199
    %v2201 = vmul.f32 %v2186, 0.03125
    %v2202 = vmul.f32 %v2188, 0.03125
    %v2203 = vmul.f32 %v2190, 0.03125
    %v2204 = vmul.f32 %v2192, 0.03125
    %v2205 = vmul.f32 %v2194, 0.03125
    %v2206 = vmul.f32 %v2196, 0.03125
    %v2207 = vmul.f32 %v2198, 0.03125
    %v2208 = vmul.f32 %v2200, 0.03125
    %v2209 = vsub.f32 %v2147, %v2201
    %v2210 = vsub.f32 %v2152, %v2202
    %v2211 = vsub.f32 %v2157, %v2203
    %v2212 = vsub.f32 %v2162, %v2204
    %v2213 = vsub.f32 %v2167, %v2205
    %v2214 = vsub.f32 %v2172, %v2206
    %v2215 = vsub.f32 %v2177, %v2207
    %v2216 = vsub.f32 %v2182, %v2208
    %v2217 = vsel %vm564, %v2209, 0.0
    %v2218 = vsel %vm564, %v2210, 0.0
    %v2219 = vsel %vm564, %v2211, 0.0
    %v2220 = vsel %vm564, %v2212, 0.0
    %v2221 = vsel %vm564, %v2213, 0.0
    %v2222 = vsel %vm564, %v2214, 0.0
    %v2223 = vsel %vm564, %v2215, 0.0
    %v2224 = vsel %vm564, %v2216, 0.0
    %v2225 = vmul.f32 %v2217, %v2217
    %v2226 = vmul.f32 %v2218, %v2218
    %v2227 = vmul.f32 %v2219, %v2219
    %v2228 = vmul.f32 %v2220, %v2220
    %v2229 = vmul.f32 %v2221, %v2221
    %v2230 = vmul.f32 %v2222, %v2222
    %v2231 = vmul.f32 %v2223, %v2223
    %v2232 = vmul.f32 %v2224, %v2224
    %2233 = vadd.xlane.f32.xlu0 %v2225
    %v2234 = vpop.xlane.xlu0 %2233
    %2235 = vadd.xlane.f32.xlu0 %v2226
    %v2236 = vpop.xlane.xlu0 %2235
    %2237 = vadd.xlane.f32.xlu0 %v2227
    %v2238 = vpop.xlane.xlu0 %2237
    %2239 = vadd.xlane.f32.xlu0 %v2228
    %v2240 = vpop.xlane.xlu0 %2239
    %2241 = vadd.xlane.f32.xlu0 %v2229
    %v2242 = vpop.xlane.xlu0 %2241
    %2243 = vadd.xlane.f32.xlu0 %v2230
    %v2244 = vpop.xlane.xlu0 %2243
    %2245 = vadd.xlane.f32.xlu0 %v2231
    %v2246 = vpop.xlane.xlu0 %2245
    %2247 = vadd.xlane.f32.xlu0 %v2232
    %v2248 = vpop.xlane.xlu0 %2247
    %v2249 = vmul.f32 %v2234, 0.03125
    %v2250 = vmul.f32 %v2236, 0.03125
    %v2251 = vmul.f32 %v2238, 0.03125
    %v2252 = vmul.f32 %v2240, 0.03125
    %v2253 = vmul.f32 %v2242, 0.03125
    %v2254 = vmul.f32 %v2244, 0.03125
    %v2255 = vmul.f32 %v2246, 0.03125
    %v2256 = vmul.f32 %v2248, 0.03125
    %v2257 = vadd.f32 %v2249, 1e-05
    %v2258 = vadd.f32 %v2250, 1e-05
    %v2259 = vadd.f32 %v2251, 1e-05
    %v2260 = vadd.f32 %v2252, 1e-05
    %v2261 = vadd.f32 %v2253, 1e-05
    %v2262 = vadd.f32 %v2254, 1e-05
    %v2263 = vadd.f32 %v2255, 1e-05
    %v2264 = vadd.f32 %v2256, 1e-05
    %v2265 = vrsqrt.pop %v2257
    %v2266 = vrsqrt.pop %v2258
    %v2267 = vrsqrt.pop %v2259
    %v2268 = vrsqrt.pop %v2260
    %v2269 = vrsqrt.pop %v2261
    %v2270 = vrsqrt.pop %v2262
    %v2271 = vrsqrt.pop %v2263
    %v2272 = vrsqrt.pop %v2264
    %v2273 = vmul.f32 %v2217, %v2265
    %v2274 = vmul.f32 %v2218, %v2266
    %v2275 = vmul.f32 %v2219, %v2267
    %v2276 = vmul.f32 %v2220, %v2268
    %v2277 = vmul.f32 %v2221, %v2269
    %v2278 = vmul.f32 %v2222, %v2270
    %v2279 = vmul.f32 %v2223, %v2271
    %v2280 = vmul.f32 %v2224, %v2272
    %v2281 = vld [vmem:[%s1196] sm:$0x1]
    %v2283 = vlaneseq
    %v2284 = vshrl.u32 %v2283, 7
    %v2285 = vsub.s32 0, %v2284
    %v2286 = vrot.slane %v2281, %v2285
    %v2288 = vmul.f32 %v2273, %v2286
    %v2289 = vmul.f32 %v2274, %v2286
    %v2290 = vmul.f32 %v2275, %v2286
    %v2291 = vmul.f32 %v2276, %v2286
    %v2292 = vmul.f32 %v2277, %v2286
    %v2293 = vmul.f32 %v2278, %v2286
    %v2294 = vmul.f32 %v2279, %v2286
    %v2295 = vmul.f32 %v2280, %v2286
    %v2296 = vld [vmem:[%s1212] sm:$0x1]
    %v2298 = vlaneseq
    %v2299 = vshrl.u32 %v2298, 7
    %v2300 = vsub.s32 0, %v2299
    %v2301 = vrot.slane %v2296, %v2300
    %v2303 = vadd.f32 %v2288, %v2301
    %v2304 = vadd.f32 %v2289, %v2301
    %v2305 = vadd.f32 %v2290, %v2301
    %v2306 = vadd.f32 %v2291, %v2301
    %v2307 = vadd.f32 %v2292, %v2301
    %v2308 = vadd.f32 %v2293, %v2301
    %v2309 = vadd.f32 %v2294, %v2301
    %v2310 = vadd.f32 %v2295, %v2301
    %v2311 = vtanh.pop %v2303
    %v2312 = vtanh.pop %v2304
    %v2313 = vtanh.pop %v2305
    %v2314 = vtanh.pop %v2306
    %v2315 = vtanh.pop %v2307
    %v2316 = vtanh.pop %v2308
    %v2317 = vtanh.pop %v2309
    %v2318 = vtanh.pop %v2310
    %v2319 = vld [vmem:[%s1236] sm:$0xff]
    %v2320 = vld [vmem:[%s1236 + $0x8] sm:$0xff]
    %v2321 = vld [vmem:[%s1236 + $0x10] sm:$0xff]
    %v2322 = vld [vmem:[%s1236 + $0x18] sm:$0xff]
    %v2323 = vld [vmem:[%s1236 + $0x20] sm:$0xff]
    %v2324 = vld [vmem:[%s1236 + $0x28] sm:$0xff]
    %v2325 = vld [vmem:[%s1236 + $0x30] sm:$0xff]
    %v2326 = vld [vmem:[%s1236 + $0x38] sm:$0xff]
    %v2327 = vld [vmem:[%s1236 + $0x40] sm:$0xff]
    %v2328 = vld [vmem:[%s1236 + $0x48] sm:$0xff]
    %v2329 = vld [vmem:[%s1236 + $0x50] sm:$0xff]
    %v2330 = vld [vmem:[%s1236 + $0x58] sm:$0xff]
    %v2331 = vld [vmem:[%s1236 + $0x60] sm:$0xff]
    %v2332 = vld [vmem:[%s1236 + $0x68] sm:$0xff]
    %v2333 = vld [vmem:[%s1236 + $0x70] sm:$0xff]
    %v2334 = vld [vmem:[%s1236 + $0x78] sm:$0xff]
    %2335 = vmatprep.subr.mxu0 0.0
    %2336 = vmatpush1.msra.mxu0 %v2319
    %2337 = vmatprep.subr.mxu0 0.0
    %2338 = vmatpush1.msra.mxu0 %v2320
    %2339 = vmatprep.subr.mxu0 0.0
    %2340 = vmatpush1.msra.mxu0 %v2321
    %2341 = vmatprep.subr.mxu0 0.0
    %2342 = vmatpush1.msra.mxu0 %v2322
    %2343 = vmatprep.subr.mxu0 0.0
    %2344 = vmatpush1.msra.mxu0 %v2323
    %2345 = vmatprep.subr.mxu0 0.0
    %2346 = vmatpush1.msra.mxu0 %v2324
    %2347 = vmatprep.subr.mxu0 0.0
    %2348 = vmatpush1.msra.mxu0 %v2325
    %2349 = vmatprep.subr.mxu0 0.0
    %2350 = vmatpush1.msra.mxu0 %v2326
    %2351 = vmatprep.subr.mxu0 0.0
    %2352 = vmatpush1.msra.mxu0 %v2327
    %2353 = vmatprep.subr.mxu0 0.0
    %2354 = vmatpush1.msra.mxu0 %v2328
    %2355 = vmatprep.subr.mxu0 0.0
    %2356 = vmatpush1.msra.mxu0 %v2329
    %2357 = vmatprep.subr.mxu0 0.0
    %2358 = vmatpush1.msra.mxu0 %v2330
    %2359 = vmatprep.subr.mxu0 0.0
    %2360 = vmatpush1.msra.mxu0 %v2331
    %2361 = vmatprep.subr.mxu0 0.0
    %2362 = vmatpush1.msra.mxu0 %v2332
    %2363 = vmatprep.subr.mxu0 0.0
    %2364 = vmatpush1.msra.mxu0 %v2333
    %2365 = vmatprep.subr.mxu0 0.0
    %2366 = vmatpush1.msra.mxu0 %v2334
    %2367 = vmatprep.subr.mxu0 0.0
    %2368 = vmatpush1.msra.mxu0 0.0
    %2369 = vmatprep.subr.mxu0 0.0
    %2370 = vmatpush1.msra.mxu0 0.0
    %2371 = vmatprep.subr.mxu0 0.0
    %2372 = vmatpush1.msra.mxu0 0.0
    %2373 = vmatprep.subr.mxu0 0.0
    %2374 = vmatpush1.msra.mxu0 0.0
    %2375 = vmatprep.subr.mxu0 0.0
    %2376 = vmatpush1.msra.mxu0 0.0
    %2377 = vmatprep.subr.mxu0 0.0
    %2378 = vmatpush1.msra.mxu0 0.0
    %2379 = vmatprep.subr.mxu0 0.0
    %2380 = vmatpush1.msra.mxu0 0.0
    %2381 = vmatprep.subr.mxu0 0.0
    %2382 = vmatpush1.msra.mxu0 0.0
    %2383 = vmatprep.subr.mxu0 0.0
    %2384 = vmatpush1.msra.mxu0 0.0
    %2385 = vmatprep.subr.mxu0 0.0
    %2386 = vmatpush1.msra.mxu0 0.0
    %2387 = vmatprep.subr.mxu0 0.0
    %2388 = vmatpush1.msra.mxu0 0.0
    %2389 = vmatprep.subr.mxu0 0.0
    %2390 = vmatpush1.msra.mxu0 0.0
    %2391 = vmatprep.subr.mxu0 0.0
    %2392 = vmatpush1.msra.mxu0 0.0
    %2393 = vmatprep.subr.mxu0 0.0
    %2394 = vmatpush1.msra.mxu0 0.0
    %2395 = vmatprep.subr.mxu0 0.0
    %2396 = vmatpush1.msra.mxu0 0.0
    %2397 = vmatprep.subr.mxu0 0.0
    %2398 = vmatpush1.msra.mxu0 0.0
    %2399 = vmatprep.mubr.f32.mxu0 0.0
    %2400 = vmatmul.mubr.f32.gmra.mrb[0].mxu0 %v2311
    %v2401 = vpop.f32.mrb[0].mxu0
    %v2402 = vadd.f32 0.0, %v2401
    %v2403 = vpop.f32.mrb[0].mxu0
    %2404 = vmatprep.mubr.f32.mxu0 0.0
    %2405 = vmatmul.mubr.f32.gmra.mrb[0].mxu0 %v2312
    %v2406 = vpop.f32.mrb[0].mxu0
    %v2407 = vadd.f32 0.0, %v2406
    %v2408 = vpop.f32.mrb[0].mxu0
    %2409 = vmatprep.mubr.f32.mxu0 0.0
    %2410 = vmatmul.mubr.f32.gmra.mrb[0].mxu0 %v2313
    %v2411 = vpop.f32.mrb[0].mxu0
    %v2412 = vadd.f32 0.0, %v2411
    %v2413 = vpop.f32.mrb[0].mxu0
    %2414 = vmatprep.mubr.f32.mxu0 0.0
    %2415 = vmatmul.mubr.f32.gmra.mrb[0].mxu0 %v2314
    %v2416 = vpop.f32.mrb[0].mxu0
    %v2417 = vadd.f32 0.0, %v2416
    %v2418 = vpop.f32.mrb[0].mxu0
    %2419 = vmatprep.mubr.f32.mxu0 0.0
    %2420 = vmatmul.mubr.f32.gmra.mrb[0].mxu0 %v2315
    %v2421 = vpop.f32.mrb[0].mxu0
    %v2422 = vadd.f32 0.0, %v2421
    %v2423 = vpop.f32.mrb[0].mxu0
    %2424 = vmatprep.mubr.f32.mxu0 0.0
    %2425 = vmatmul.mubr.f32.gmra.mrb[0].mxu0 %v2316
    %v2426 = vpop.f32.mrb[0].mxu0
    %v2427 = vadd.f32 0.0, %v2426
    %v2428 = vpop.f32.mrb[0].mxu0
    %2429 = vmatprep.mubr.f32.mxu0 0.0
    %2430 = vmatmul.mubr.f32.gmra.mrb[0].mxu0 %v2317
    %v2431 = vpop.f32.mrb[0].mxu0
    %v2432 = vadd.f32 0.0, %v2431
    %v2433 = vpop.f32.mrb[0].mxu0
    %2434 = vmatprep.mubr.f32.mxu0 0.0
    %2435 = vmatmul.mubr.f32.gmra.mrb[0].mxu0 %v2318
    %v2436 = vpop.f32.mrb[0].mxu0
    %v2437 = vadd.f32 0.0, %v2436
    %v2438 = vpop.f32.mrb[0].mxu0
    %2439 = vdwg.mxu0
    %v2440 = vmul.f32 %v791, %v2402
    %v2441 = vmul.f32 %v796, %v2407
    %v2442 = vmul.f32 %v801, %v2412
    %v2443 = vmul.f32 %v806, %v2417
    %v2444 = vmul.f32 %v811, %v2422
    %v2445 = vmul.f32 %v816, %v2427
    %v2446 = vmul.f32 %v821, %v2432
    %v2447 = vmul.f32 %v826, %v2437
    %v2448 = vpack.c.bf16 %v2441, %v2440
    %v2449 = vpack.c.bf16 %v2443, %v2442
    %v2450 = vpack.c.bf16 %v2445, %v2444
    %v2451 = vpack.c.bf16 %v2447, %v2446
    %v2452 = vld [vmem:[%s2] sm:$0xf]
    %v2453 = vld [vmem:[%s2 + $0x4] sm:$0xf]
    %v2454 = vld [vmem:[%s2 + $0x8] sm:$0xf]
    %v2455 = vld [vmem:[%s2 + $0xc] sm:$0xf]
    %v2456 = vld [vmem:[%s2 + $0x10] sm:$0xf]
    %v2457 = vld [vmem:[%s2 + $0x14] sm:$0xf]
    %v2458 = vld [vmem:[%s2 + $0x18] sm:$0xf]
    %v2459 = vld [vmem:[%s2 + $0x1c] sm:$0xf]
    %v2468 = vunpack.c.l.b16 %v2452
    %v2469 = vunpack.c.l.b16 %v2453
    %v2470 = vunpack.c.l.b16 %v2454
    %v2471 = vunpack.c.l.b16 %v2455
    %v2472 = vunpack.c.l.b16 %v2456
    %v2473 = vunpack.c.l.b16 %v2457
    %v2474 = vunpack.c.l.b16 %v2458
    %v2475 = vunpack.c.l.b16 %v2459
    %v2476 = vpack.c.b16 %v2469, %v2468
    %v2477 = vpack.c.b16 %v2471, %v2470
    %v2478 = vpack.c.b16 %v2473, %v2472
    %v2479 = vpack.c.b16 %v2475, %v2474
    %v2481 = vsel %vm868, %v2476, 0
    %v2484 = vsel %vm868, %v2477, 0
    %v2487 = vsel %vm868, %v2478, 0
    %v2490 = vsel %vm868, %v2479, 0
    %2492 = vmatprep.subr.bf16.mxu0 0
    %2493 = vmatpush1.bf16.msra.mxu0 %v2448
    %2494 = vmatprep.subr.bf16.mxu0 0
    %2495 = vmatpush1.bf16.msra.mxu0 %v2449
    %2496 = vmatprep.subr.bf16.mxu0 0
    %2497 = vmatpush1.bf16.msra.mxu0 %v2450
    %2498 = vmatprep.subr.bf16.mxu0 0
    %2499 = vmatpush1.bf16.msra.mxu0 %v2451
    %2500 = vmatprep.subr.bf16.mxu0 0
    %2501 = vmatpush1.bf16.msra.mxu0 0
    %2502 = vmatprep.subr.bf16.mxu0 0
    %2503 = vmatpush1.bf16.msra.mxu0 0
    %2504 = vmatprep.subr.bf16.mxu0 0
    %2505 = vmatpush1.bf16.msra.mxu0 0
    %2506 = vmatprep.subr.bf16.mxu0 0
    %2507 = vmatpush1.bf16.msra.mxu0 0
    %2508 = vmatprep.subr.bf16.mxu0 0
    %2509 = vmatpush1.bf16.msra.mxu0 0
    %2510 = vmatprep.subr.bf16.mxu0 0
    %2511 = vmatpush1.bf16.msra.mxu0 0
    %2512 = vmatprep.subr.bf16.mxu0 0
    %2513 = vmatpush1.bf16.msra.mxu0 0
    %2514 = vmatprep.subr.bf16.mxu0 0
    %2515 = vmatpush1.bf16.msra.mxu0 0
    %2516 = vmatprep.subr.bf16.mxu0 0
    %2517 = vmatpush1.bf16.msra.mxu0 0
    %2518 = vmatprep.subr.bf16.mxu0 0
    %2519 = vmatpush1.bf16.msra.mxu0 0
    %2520 = vmatprep.subr.bf16.mxu0 0
    %2521 = vmatpush1.bf16.msra.mxu0 0
    %2522 = vmatprep.subr.bf16.mxu0 0
    %2523 = vmatpush1.bf16.msra.mxu0 0
    %2524 = vmatprep.mubr.bf16.mxu0 0
    %2525 = vmatmul.mubr.bf16.gmra.mrb[0].mxu0 %v2481
    %v2526 = vpop.f32.mrb[0].mxu0
    %v2527 = vadd.f32 0.0, %v2526
    %v2528 = vpop.f32.mrb[0].mxu0
    %v2529 = vpop.f32.mrb[0].mxu0
    %v2530 = vadd.f32 0.0, %v2529
    %v2531 = vpop.f32.mrb[0].mxu0
    %2532 = vmatprep.mubr.bf16.mxu0 0
    %2533 = vmatmul.mubr.bf16.gmra.mrb[0].mxu0 %v2484
    %v2534 = vpop.f32.mrb[0].mxu0
    %v2535 = vadd.f32 0.0, %v2534
    %v2536 = vpop.f32.mrb[0].mxu0
    %v2537 = vpop.f32.mrb[0].mxu0
    %v2538 = vadd.f32 0.0, %v2537
    %v2539 = vpop.f32.mrb[0].mxu0
    %2540 = vmatprep.mubr.bf16.mxu0 0
    %2541 = vmatmul.mubr.bf16.gmra.mrb[0].mxu0 %v2487
    %v2542 = vpop.f32.mrb[0].mxu0
    %v2543 = vadd.f32 0.0, %v2542
    %v2544 = vpop.f32.mrb[0].mxu0
    %v2545 = vpop.f32.mrb[0].mxu0
    %v2546 = vadd.f32 0.0, %v2545
    %v2547 = vpop.f32.mrb[0].mxu0
    %2548 = vmatprep.mubr.bf16.mxu0 0
    %2549 = vmatmul.mubr.bf16.gmra.mrb[0].mxu0 %v2490
    %v2550 = vpop.f32.mrb[0].mxu0
    %v2551 = vadd.f32 0.0, %v2550
    %v2552 = vpop.f32.mrb[0].mxu0
    %v2553 = vpop.f32.mrb[0].mxu0
    %v2554 = vadd.f32 0.0, %v2553
    %v2555 = vpop.f32.mrb[0].mxu0
    %2556 = vdwg.mxu0
    %v2557 = vmul.f32 %v2048, 0.5
    %v2558 = vmul.f32 %v2049, 0.5
    %v2559 = vmul.f32 %v2050, 0.5
    %v2560 = vmul.f32 %v2051, 0.5
    %v2561 = vmul.f32 %v2052, 0.5
    %v2562 = vmul.f32 %v2053, 0.5
    %v2563 = vmul.f32 %v2054, 0.5
    %v2564 = vmul.f32 %v2055, 0.5
    %v2565 = vmul.f32 %v2527, 0.5
    %v2566 = vmul.f32 %v2530, 0.5
    %v2567 = vmul.f32 %v2535, 0.5
    %v2568 = vmul.f32 %v2538, 0.5
    %v2569 = vmul.f32 %v2543, 0.5
    %v2570 = vmul.f32 %v2546, 0.5
    %v2571 = vmul.f32 %v2551, 0.5
    %v2572 = vmul.f32 %v2554, 0.5
    %v2573 = vadd.f32 %v2557, %v2565
    %v2574 = vadd.f32 %v2558, %v2566
    %v2575 = vadd.f32 %v2559, %v2567
    %v2576 = vadd.f32 %v2560, %v2568
    %v2577 = vadd.f32 %v2561, %v2569
    %v2578 = vadd.f32 %v2562, %v2570
    %v2579 = vadd.f32 %v2563, %v2571
    %v2580 = vadd.f32 %v2564, %v2572
    %2581 = vst [vmem:[#allocation8] sm:$0xff] %v2573
    %2582 = vst [vmem:[#allocation8 + $0x8] sm:$0xff] %v2574
    %2583 = vst [vmem:[#allocation8 + $0x10] sm:$0xff] %v2575
    %2584 = vst [vmem:[#allocation8 + $0x18] sm:$0xff] %v2576
    %2585 = vst [vmem:[#allocation8 + $0x20] sm:$0xff] %v2577
    %2586 = vst [vmem:[#allocation8 + $0x28] sm:$0xff] %v2578
    %2587 = vst [vmem:[#allocation8 + $0x30] sm:$0xff] %v2579
    %2588 = vst [vmem:[#allocation8 + $0x38] sm:$0xff] %v2580
    %v2589 = vld [vmem:[#allocation8] sm:$0xff]
    %v2590 = vld [vmem:[#allocation8 + $0x8] sm:$0xff]
    %v2591 = vld [vmem:[#allocation8 + $0x10] sm:$0xff]
    %v2592 = vld [vmem:[#allocation8 + $0x18] sm:$0xff]
    %v2593 = vld [vmem:[#allocation8 + $0x20] sm:$0xff]
    %v2594 = vld [vmem:[#allocation8 + $0x28] sm:$0xff]
    %v2595 = vld [vmem:[#allocation8 + $0x30] sm:$0xff]
    %v2596 = vld [vmem:[#allocation8 + $0x38] sm:$0xff]
    %v2597 = vmul.f32 %v791, %v2589
    %v2598 = vmul.f32 %v796, %v2590
    %v2599 = vmul.f32 %v801, %v2591
    %v2600 = vmul.f32 %v806, %v2592
    %v2601 = vmul.f32 %v811, %v2593
    %v2602 = vmul.f32 %v816, %v2594
    %v2603 = vmul.f32 %v821, %v2595
    %v2604 = vmul.f32 %v826, %v2596
    %v2605 = vld [vmem:[#allocation2] sm:$0xff]
    %v2606 = vld [vmem:[#allocation2 + $0x8] sm:$0xff]
    %v2607 = vld [vmem:[#allocation2 + $0x10] sm:$0xff]
    %v2608 = vld [vmem:[#allocation2 + $0x18] sm:$0xff]
    %v2609 = vld [vmem:[#allocation2 + $0x20] sm:$0xff]
    %v2610 = vld [vmem:[#allocation2 + $0x28] sm:$0xff]
    %v2611 = vld [vmem:[#allocation2 + $0x30] sm:$0xff]
    %v2612 = vld [vmem:[#allocation2 + $0x38] sm:$0xff]
    %v2613 = vld [vmem:[#allocation2 + $0x40] sm:$0xff]
    %v2614 = vld [vmem:[#allocation2 + $0x48] sm:$0xff]
    %v2615 = vld [vmem:[#allocation2 + $0x50] sm:$0xff]
    %v2616 = vld [vmem:[#allocation2 + $0x58] sm:$0xff]
    %v2617 = vld [vmem:[#allocation2 + $0x60] sm:$0xff]
    %v2618 = vld [vmem:[#allocation2 + $0x68] sm:$0xff]
    %v2619 = vld [vmem:[#allocation2 + $0x70] sm:$0xff]
    %v2620 = vld [vmem:[#allocation2 + $0x78] sm:$0xff]
    %2621 = vmatprep.subr.mxu0 0.0
    %2622 = vmatpush1.msra.mxu0 %v2605
    %2623 = vmatprep.subr.mxu0 0.0
    %2624 = vmatpush1.msra.mxu0 %v2606
    %2625 = vmatprep.subr.mxu0 0.0
    %2626 = vmatpush1.msra.mxu0 %v2607
    %2627 = vmatprep.subr.mxu0 0.0
    %2628 = vmatpush1.msra.mxu0 %v2608
    %2629 = vmatprep.subr.mxu0 0.0
    %2630 = vmatpush1.msra.mxu0 %v2609
    %2631 = vmatprep.subr.mxu0 0.0
    %2632 = vmatpush1.msra.mxu0 %v2610
    %2633 = vmatprep.subr.mxu0 0.0
    %2634 = vmatpush1.msra.mxu0 %v2611
    %2635 = vmatprep.subr.mxu0 0.0
    %2636 = vmatpush1.msra.mxu0 %v2612
    %2637 = vmatprep.subr.mxu0 0.0
    %2638 = vmatpush1.msra.mxu0 %v2613
    %2639 = vmatprep.subr.mxu0 0.0
    %2640 = vmatpush1.msra.mxu0 %v2614
    %2641 = vmatprep.subr.mxu0 0.0
    %2642 = vmatpush1.msra.mxu0 %v2615
    %2643 = vmatprep.subr.mxu0 0.0
    %2644 = vmatpush1.msra.mxu0 %v2616
    %2645 = vmatprep.subr.mxu0 0.0
    %2646 = vmatpush1.msra.mxu0 %v2617
    %2647 = vmatprep.subr.mxu0 0.0
    %2648 = vmatpush1.msra.mxu0 %v2618
    %2649 = vmatprep.subr.mxu0 0.0
    %2650 = vmatpush1.msra.mxu0 %v2619
    %2651 = vmatprep.subr.mxu0 0.0
    %2652 = vmatpush1.msra.mxu0 %v2620
    %2653 = vmatprep.subr.mxu0 0.0
    %2654 = vmatpush1.msra.mxu0 0.0
    %2655 = vmatprep.subr.mxu0 0.0
    %2656 = vmatpush1.msra.mxu0 0.0
    %2657 = vmatprep.subr.mxu0 0.0
    %2658 = vmatpush1.msra.mxu0 0.0
    %2659 = vmatprep.subr.mxu0 0.0
    %2660 = vmatpush1.msra.mxu0 0.0
    %2661 = vmatprep.subr.mxu0 0.0
    %2662 = vmatpush1.msra.mxu0 0.0
    %2663 = vmatprep.subr.mxu0 0.0
    %2664 = vmatpush1.msra.mxu0 0.0
    %2665 = vmatprep.subr.mxu0 0.0
    %2666 = vmatpush1.msra.mxu0 0.0
    %2667 = vmatprep.subr.mxu0 0.0
    %2668 = vmatpush1.msra.mxu0 0.0
    %2669 = vmatprep.subr.mxu0 0.0
    %2670 = vmatpush1.msra.mxu0 0.0
    %2671 = vmatprep.subr.mxu0 0.0
    %2672 = vmatpush1.msra.mxu0 0.0
    %2673 = vmatprep.subr.mxu0 0.0
    %2674 = vmatpush1.msra.mxu0 0.0
    %2675 = vmatprep.subr.mxu0 0.0
    %2676 = vmatpush1.msra.mxu0 0.0
    %2677 = vmatprep.subr.mxu0 0.0
    %2678 = vmatpush1.msra.mxu0 0.0
    %2679 = vmatprep.subr.mxu0 0.0
    %2680 = vmatpush1.msra.mxu0 0.0
    %2681 = vmatprep.subr.mxu0 0.0
    %2682 = vmatpush1.msra.mxu0 0.0
    %2683 = vmatprep.subr.mxu0 0.0
    %2684 = vmatpush1.msra.mxu0 0.0
    %2685 = vmatprep.mubr.f32.mxu0 0.0
    %2686 = vmatmul.mubr.f32.gmra.mrb[0].mxu0 %v2597
    %v2687 = vpop.f32.mrb[0].mxu0
    %v2688 = vadd.f32 %v377, %v2687
    %v2689 = vpop.f32.mrb[0].mxu0
    %2690 = vmatprep.mubr.f32.mxu0 0.0
    %2691 = vmatmul.mubr.f32.gmra.mrb[0].mxu0 %v2598
    %v2692 = vpop.f32.mrb[0].mxu0
    %v2693 = vadd.f32 %v378, %v2692
    %v2694 = vpop.f32.mrb[0].mxu0
    %2695 = vmatprep.mubr.f32.mxu0 0.0
    %2696 = vmatmul.mubr.f32.gmra.mrb[0].mxu0 %v2599
    %v2697 = vpop.f32.mrb[0].mxu0
    %v2698 = vadd.f32 %v379, %v2697
    %v2699 = vpop.f32.mrb[0].mxu0
    %2700 = vmatprep.mubr.f32.mxu0 0.0
    %2701 = vmatmul.mubr.f32.gmra.mrb[0].mxu0 %v2600
    %v2702 = vpop.f32.mrb[0].mxu0
    %v2703 = vadd.f32 %v380, %v2702
    %v2704 = vpop.f32.mrb[0].mxu0
    %2705 = vmatprep.mubr.f32.mxu0 0.0
    %2706 = vmatmul.mubr.f32.gmra.mrb[0].mxu0 %v2601
    %v2707 = vpop.f32.mrb[0].mxu0
    %v2708 = vadd.f32 %v381, %v2707
    %v2709 = vpop.f32.mrb[0].mxu0
    %2710 = vmatprep.mubr.f32.mxu0 0.0
    %2711 = vmatmul.mubr.f32.gmra.mrb[0].mxu0 %v2602
    %v2712 = vpop.f32.mrb[0].mxu0
    %v2713 = vadd.f32 %v382, %v2712
    %v2714 = vpop.f32.mrb[0].mxu0
    %2715 = vmatprep.mubr.f32.mxu0 0.0
    %2716 = vmatmul.mubr.f32.gmra.mrb[0].mxu0 %v2603
    %v2717 = vpop.f32.mrb[0].mxu0
    %v2718 = vadd.f32 %v383, %v2717
    %v2719 = vpop.f32.mrb[0].mxu0
    %2720 = vmatprep.mubr.f32.mxu0 0.0
    %2721 = vmatmul.mubr.f32.gmra.mrb[0].mxu0 %v2604
    %v2722 = vpop.f32.mrb[0].mxu0
    %v2723 = vadd.f32 %v384, %v2722
    %v2724 = vpop.f32.mrb[0].mxu0
    %2725 = vdwg.mxu0
    %2726 = vadd.xlane.f32.xlu0 %v2688
    %v2727 = vpop.xlane.xlu0 %2726
    %2728 = vadd.xlane.f32.xlu0 %v2693
    %v2729 = vpop.xlane.xlu0 %2728
    %2730 = vadd.xlane.f32.xlu0 %v2698
    %v2731 = vpop.xlane.xlu0 %2730
    %2732 = vadd.xlane.f32.xlu0 %v2703
    %v2733 = vpop.xlane.xlu0 %2732
    %2734 = vadd.xlane.f32.xlu0 %v2708
    %v2735 = vpop.xlane.xlu0 %2734
    %2736 = vadd.xlane.f32.xlu0 %v2713
    %v2737 = vpop.xlane.xlu0 %2736
    %2738 = vadd.xlane.f32.xlu0 %v2718
    %v2739 = vpop.xlane.xlu0 %2738
    %2740 = vadd.xlane.f32.xlu0 %v2723
    %v2741 = vpop.xlane.xlu0 %2740
    %v2742 = vmul.f32 %v2727, 0.03125
    %v2743 = vmul.f32 %v2729, 0.03125
    %v2744 = vmul.f32 %v2731, 0.03125
    %v2745 = vmul.f32 %v2733, 0.03125
    %v2746 = vmul.f32 %v2735, 0.03125
    %v2747 = vmul.f32 %v2737, 0.03125
    %v2748 = vmul.f32 %v2739, 0.03125
    %v2749 = vmul.f32 %v2741, 0.03125
    %v2750 = vsub.f32 %v2688, %v2742
    %v2751 = vsub.f32 %v2693, %v2743
    %v2752 = vsub.f32 %v2698, %v2744
    %v2753 = vsub.f32 %v2703, %v2745
    %v2754 = vsub.f32 %v2708, %v2746
    %v2755 = vsub.f32 %v2713, %v2747
    %v2756 = vsub.f32 %v2718, %v2748
    %v2757 = vsub.f32 %v2723, %v2749
    %v2758 = vsel %vm564, %v2750, 0.0
    %v2759 = vsel %vm564, %v2751, 0.0
    %v2760 = vsel %vm564, %v2752, 0.0
    %v2761 = vsel %vm564, %v2753, 0.0
    %v2762 = vsel %vm564, %v2754, 0.0
    %v2763 = vsel %vm564, %v2755, 0.0
    %v2764 = vsel %vm564, %v2756, 0.0
    %v2765 = vsel %vm564, %v2757, 0.0
    %v2766 = vmul.f32 %v2758, %v2758
    %v2767 = vmul.f32 %v2759, %v2759
    %v2768 = vmul.f32 %v2760, %v2760
    %v2769 = vmul.f32 %v2761, %v2761
    %v2770 = vmul.f32 %v2762, %v2762
    %v2771 = vmul.f32 %v2763, %v2763
    %v2772 = vmul.f32 %v2764, %v2764
    %v2773 = vmul.f32 %v2765, %v2765
    %2774 = vadd.xlane.f32.xlu0 %v2766
    %v2775 = vpop.xlane.xlu0 %2774
    %2776 = vadd.xlane.f32.xlu0 %v2767
    %v2777 = vpop.xlane.xlu0 %2776
    %2778 = vadd.xlane.f32.xlu0 %v2768
    %v2779 = vpop.xlane.xlu0 %2778
    %2780 = vadd.xlane.f32.xlu0 %v2769
    %v2781 = vpop.xlane.xlu0 %2780
    %2782 = vadd.xlane.f32.xlu0 %v2770
    %v2783 = vpop.xlane.xlu0 %2782
    %2784 = vadd.xlane.f32.xlu0 %v2771
    %v2785 = vpop.xlane.xlu0 %2784
    %2786 = vadd.xlane.f32.xlu0 %v2772
    %v2787 = vpop.xlane.xlu0 %2786
    %2788 = vadd.xlane.f32.xlu0 %v2773
    %v2789 = vpop.xlane.xlu0 %2788
    %v2790 = vmul.f32 %v2775, 0.03125
    %v2791 = vmul.f32 %v2777, 0.03125
    %v2792 = vmul.f32 %v2779, 0.03125
    %v2793 = vmul.f32 %v2781, 0.03125
    %v2794 = vmul.f32 %v2783, 0.03125
    %v2795 = vmul.f32 %v2785, 0.03125
    %v2796 = vmul.f32 %v2787, 0.03125
    %v2797 = vmul.f32 %v2789, 0.03125
    %v2798 = vadd.f32 %v2790, 1e-05
    %v2799 = vadd.f32 %v2791, 1e-05
    %v2800 = vadd.f32 %v2792, 1e-05
    %v2801 = vadd.f32 %v2793, 1e-05
    %v2802 = vadd.f32 %v2794, 1e-05
    %v2803 = vadd.f32 %v2795, 1e-05
    %v2804 = vadd.f32 %v2796, 1e-05
    %v2805 = vadd.f32 %v2797, 1e-05
    %v2806 = vrsqrt.pop %v2798
    %v2807 = vrsqrt.pop %v2799
    %v2808 = vrsqrt.pop %v2800
    %v2809 = vrsqrt.pop %v2801
    %v2810 = vrsqrt.pop %v2802
    %v2811 = vrsqrt.pop %v2803
    %v2812 = vrsqrt.pop %v2804
    %v2813 = vrsqrt.pop %v2805
    %v2814 = vmul.f32 %v2758, %v2806
    %v2815 = vmul.f32 %v2759, %v2807
    %v2816 = vmul.f32 %v2760, %v2808
    %v2817 = vmul.f32 %v2761, %v2809
    %v2818 = vmul.f32 %v2762, %v2810
    %v2819 = vmul.f32 %v2763, %v2811
    %v2820 = vmul.f32 %v2764, %v2812
    %v2821 = vmul.f32 %v2765, %v2813
    %v2822 = vld [vmem:[%s10] sm:$0x1]
    %v2824 = vlaneseq
    %v2825 = vshrl.u32 %v2824, 7
    %v2826 = vsub.s32 0, %v2825
    %v2827 = vrot.slane %v2822, %v2826
    %v2829 = vmul.f32 %v2814, %v2827
    %v2830 = vmul.f32 %v2815, %v2827
    %v2831 = vmul.f32 %v2816, %v2827
    %v2832 = vmul.f32 %v2817, %v2827
    %v2833 = vmul.f32 %v2818, %v2827
    %v2834 = vmul.f32 %v2819, %v2827
    %v2835 = vmul.f32 %v2820, %v2827
    %v2836 = vmul.f32 %v2821, %v2827
    %v2837 = vld [vmem:[%s11] sm:$0x1]
    %v2839 = vlaneseq
    %v2840 = vshrl.u32 %v2839, 7
    %v2841 = vsub.s32 0, %v2840
    %v2842 = vrot.slane %v2837, %v2841
    %v2844 = vadd.f32 %v2829, %v2842
    %v2845 = vadd.f32 %v2830, %v2842
    %v2846 = vadd.f32 %v2831, %v2842
    %v2847 = vadd.f32 %v2832, %v2842
    %v2848 = vadd.f32 %v2833, %v2842
    %v2849 = vadd.f32 %v2834, %v2842
    %v2850 = vadd.f32 %v2835, %v2842
    %v2851 = vadd.f32 %v2836, %v2842
    %v2852 = vtanh.pop %v2844
    %v2853 = vtanh.pop %v2845
    %v2854 = vtanh.pop %v2846
    %v2855 = vtanh.pop %v2847
    %v2856 = vtanh.pop %v2848
    %v2857 = vtanh.pop %v2849
    %v2858 = vtanh.pop %v2850
    %v2859 = vtanh.pop %v2851
    %v2860 = vld [vmem:[#allocation5] sm:$0xff]
    %v2861 = vld [vmem:[#allocation5 + $0x8] sm:$0xff]
    %v2862 = vld [vmem:[#allocation5 + $0x10] sm:$0xff]
    %v2863 = vld [vmem:[#allocation5 + $0x18] sm:$0xff]
    %v2864 = vld [vmem:[#allocation5 + $0x20] sm:$0xff]
    %v2865 = vld [vmem:[#allocation5 + $0x28] sm:$0xff]
    %v2866 = vld [vmem:[#allocation5 + $0x30] sm:$0xff]
    %v2867 = vld [vmem:[#allocation5 + $0x38] sm:$0xff]
    %v2868 = vld [vmem:[#allocation5 + $0x40] sm:$0xff]
    %v2869 = vld [vmem:[#allocation5 + $0x48] sm:$0xff]
    %v2870 = vld [vmem:[#allocation5 + $0x50] sm:$0xff]
    %v2871 = vld [vmem:[#allocation5 + $0x58] sm:$0xff]
    %v2872 = vld [vmem:[#allocation5 + $0x60] sm:$0xff]
    %v2873 = vld [vmem:[#allocation5 + $0x68] sm:$0xff]
    %v2874 = vld [vmem:[#allocation5 + $0x70] sm:$0xff]
    %v2875 = vld [vmem:[#allocation5 + $0x78] sm:$0xff]
    %2876 = vmatprep.subr.mxu0 0.0
    %2877 = vmatpush1.msra.mxu0 %v2860
    %2878 = vmatprep.subr.mxu0 0.0
    %2879 = vmatpush1.msra.mxu0 %v2861
    %2880 = vmatprep.subr.mxu0 0.0
    %2881 = vmatpush1.msra.mxu0 %v2862
    %2882 = vmatprep.subr.mxu0 0.0
    %2883 = vmatpush1.msra.mxu0 %v2863
    %2884 = vmatprep.subr.mxu0 0.0
    %2885 = vmatpush1.msra.mxu0 %v2864
    %2886 = vmatprep.subr.mxu0 0.0
    %2887 = vmatpush1.msra.mxu0 %v2865
    %2888 = vmatprep.subr.mxu0 0.0
    %2889 = vmatpush1.msra.mxu0 %v2866
    %2890 = vmatprep.subr.mxu0 0.0
    %2891 = vmatpush1.msra.mxu0 %v2867
    %2892 = vmatprep.subr.mxu0 0.0
    %2893 = vmatpush1.msra.mxu0 %v2868
    %2894 = vmatprep.subr.mxu0 0.0
    %2895 = vmatpush1.msra.mxu0 %v2869
    %2896 = vmatprep.subr.mxu0 0.0
    %2897 = vmatpush1.msra.mxu0 %v2870
    %2898 = vmatprep.subr.mxu0 0.0
    %2899 = vmatpush1.msra.mxu0 %v2871
    %2900 = vmatprep.subr.mxu0 0.0
    %2901 = vmatpush1.msra.mxu0 %v2872
    %2902 = vmatprep.subr.mxu0 0.0
    %2903 = vmatpush1.msra.mxu0 %v2873
    %2904 = vmatprep.subr.mxu0 0.0
    %2905 = vmatpush1.msra.mxu0 %v2874
    %2906 = vmatprep.subr.mxu0 0.0
    %2907 = vmatpush1.msra.mxu0 %v2875
    %2908 = vmatprep.subr.mxu0 0.0
    %2909 = vmatpush1.msra.mxu0 0.0
    %2910 = vmatprep.subr.mxu0 0.0
    %2911 = vmatpush1.msra.mxu0 0.0
    %2912 = vmatprep.subr.mxu0 0.0
    %2913 = vmatpush1.msra.mxu0 0.0
    %2914 = vmatprep.subr.mxu0 0.0
    %2915 = vmatpush1.msra.mxu0 0.0
    %2916 = vmatprep.subr.mxu0 0.0
    %2917 = vmatpush1.msra.mxu0 0.0
    %2918 = vmatprep.subr.mxu0 0.0
    %2919 = vmatpush1.msra.mxu0 0.0
    %2920 = vmatprep.subr.mxu0 0.0
    %2921 = vmatpush1.msra.mxu0 0.0
    %2922 = vmatprep.subr.mxu0 0.0
    %2923 = vmatpush1.msra.mxu0 0.0
    %2924 = vmatprep.subr.mxu0 0.0
    %2925 = vmatpush1.msra.mxu0 0.0
    %2926 = vmatprep.subr.mxu0 0.0
    %2927 = vmatpush1.msra.mxu0 0.0
    %2928 = vmatprep.subr.mxu0 0.0
    %2929 = vmatpush1.msra.mxu0 0.0
    %2930 = vmatprep.subr.mxu0 0.0
    %2931 = vmatpush1.msra.mxu0 0.0
    %2932 = vmatprep.subr.mxu0 0.0
    %2933 = vmatpush1.msra.mxu0 0.0
    %2934 = vmatprep.subr.mxu0 0.0
    %2935 = vmatpush1.msra.mxu0 0.0
    %2936 = vmatprep.subr.mxu0 0.0
    %2937 = vmatpush1.msra.mxu0 0.0
    %2938 = vmatprep.subr.mxu0 0.0
    %2939 = vmatpush1.msra.mxu0 0.0
    %2940 = vmatprep.mubr.f32.mxu0 0.0
    %2941 = vmatmul.mubr.f32.gmra.mrb[0].mxu0 %v2852
    %v2942 = vpop.f32.mrb[0].mxu0
    %v2943 = vadd.f32 0.0, %v2942
    %v2944 = vpop.f32.mrb[0].mxu0
    %2945 = vmatprep.mubr.f32.mxu0 0.0
    %2946 = vmatmul.mubr.f32.gmra.mrb[0].mxu0 %v2853
    %v2947 = vpop.f32.mrb[0].mxu0
    %v2948 = vadd.f32 0.0, %v2947
    %v2949 = vpop.f32.mrb[0].mxu0
    %2950 = vmatprep.mubr.f32.mxu0 0.0
    %2951 = vmatmul.mubr.f32.gmra.mrb[0].mxu0 %v2854
    %v2952 = vpop.f32.mrb[0].mxu0
    %v2953 = vadd.f32 0.0, %v2952
    %v2954 = vpop.f32.mrb[0].mxu0
    %2955 = vmatprep.mubr.f32.mxu0 0.0
    %2956 = vmatmul.mubr.f32.gmra.mrb[0].mxu0 %v2855
    %v2957 = vpop.f32.mrb[0].mxu0
    %v2958 = vadd.f32 0.0, %v2957
    %v2959 = vpop.f32.mrb[0].mxu0
    %2960 = vmatprep.mubr.f32.mxu0 0.0
    %2961 = vmatmul.mubr.f32.gmra.mrb[0].mxu0 %v2856
    %v2962 = vpop.f32.mrb[0].mxu0
    %v2963 = vadd.f32 0.0, %v2962
    %v2964 = vpop.f32.mrb[0].mxu0
    %2965 = vmatprep.mubr.f32.mxu0 0.0
    %2966 = vmatmul.mubr.f32.gmra.mrb[0].mxu0 %v2857
    %v2967 = vpop.f32.mrb[0].mxu0
    %v2968 = vadd.f32 0.0, %v2967
    %v2969 = vpop.f32.mrb[0].mxu0
    %2970 = vmatprep.mubr.f32.mxu0 0.0
    %2971 = vmatmul.mubr.f32.gmra.mrb[0].mxu0 %v2858
    %v2972 = vpop.f32.mrb[0].mxu0
    %v2973 = vadd.f32 0.0, %v2972
    %v2974 = vpop.f32.mrb[0].mxu0
    %2975 = vmatprep.mubr.f32.mxu0 0.0
    %2976 = vmatmul.mubr.f32.gmra.mrb[0].mxu0 %v2859
    %v2977 = vpop.f32.mrb[0].mxu0
    %v2978 = vadd.f32 0.0, %v2977
    %v2979 = vpop.f32.mrb[0].mxu0
    %2980 = vdwg.mxu0
    %v2981 = vmul.f32 %v791, %v2943
    %v2982 = vmul.f32 %v796, %v2948
    %v2983 = vmul.f32 %v801, %v2953
    %v2984 = vmul.f32 %v806, %v2958
    %v2985 = vmul.f32 %v811, %v2963
    %v2986 = vmul.f32 %v816, %v2968
    %v2987 = vmul.f32 %v821, %v2973
    %v2988 = vmul.f32 %v826, %v2978
    %v2989 = vpack.c.bf16 %v2982, %v2981
    %v2990 = vpack.c.bf16 %v2984, %v2983
    %v2991 = vpack.c.bf16 %v2986, %v2985
    %v2992 = vpack.c.bf16 %v2988, %v2987
    %v2993 = vld [vmem:[%s2] sm:$0xf]
    %v2994 = vld [vmem:[%s2 + $0x4] sm:$0xf]
    %v2995 = vld [vmem:[%s2 + $0x8] sm:$0xf]
    %v2996 = vld [vmem:[%s2 + $0xc] sm:$0xf]
    %v2997 = vld [vmem:[%s2 + $0x10] sm:$0xf]
    %v2998 = vld [vmem:[%s2 + $0x14] sm:$0xf]
    %v2999 = vld [vmem:[%s2 + $0x18] sm:$0xf]
    %v3000 = vld [vmem:[%s2 + $0x1c] sm:$0xf]
    %v3009 = vunpack.c.l.b16 %v2993
    %v3010 = vunpack.c.l.b16 %v2994
    %v3011 = vunpack.c.l.b16 %v2995
    %v3012 = vunpack.c.l.b16 %v2996
    %v3013 = vunpack.c.l.b16 %v2997
    %v3014 = vunpack.c.l.b16 %v2998
    %v3015 = vunpack.c.l.b16 %v2999
    %v3016 = vunpack.c.l.b16 %v3000
    %v3017 = vpack.c.b16 %v3010, %v3009
    %v3018 = vpack.c.b16 %v3012, %v3011
    %v3019 = vpack.c.b16 %v3014, %v3013
    %v3020 = vpack.c.b16 %v3016, %v3015
    %v3022 = vsel %vm868, %v3017, 0
    %v3025 = vsel %vm868, %v3018, 0
    %v3028 = vsel %vm868, %v3019, 0
    %v3031 = vsel %vm868, %v3020, 0
    %3033 = vmatprep.subr.bf16.mxu0 0
    %3034 = vmatpush1.bf16.msra.mxu0 %v2989
    %3035 = vmatprep.subr.bf16.mxu0 0
    %3036 = vmatpush1.bf16.msra.mxu0 %v2990
    %3037 = vmatprep.subr.bf16.mxu0 0
    %3038 = vmatpush1.bf16.msra.mxu0 %v2991
    %3039 = vmatprep.subr.bf16.mxu0 0
    %3040 = vmatpush1.bf16.msra.mxu0 %v2992
    %3041 = vmatprep.subr.bf16.mxu0 0
    %3042 = vmatpush1.bf16.msra.mxu0 0
    %3043 = vmatprep.subr.bf16.mxu0 0
    %3044 = vmatpush1.bf16.msra.mxu0 0
    %3045 = vmatprep.subr.bf16.mxu0 0
    %3046 = vmatpush1.bf16.msra.mxu0 0
    %3047 = vmatprep.subr.bf16.mxu0 0
    %3048 = vmatpush1.bf16.msra.mxu0 0
    %3049 = vmatprep.subr.bf16.mxu0 0
    %3050 = vmatpush1.bf16.msra.mxu0 0
    %3051 = vmatprep.subr.bf16.mxu0 0
    %3052 = vmatpush1.bf16.msra.mxu0 0
    %3053 = vmatprep.subr.bf16.mxu0 0
    %3054 = vmatpush1.bf16.msra.mxu0 0
    %3055 = vmatprep.subr.bf16.mxu0 0
    %3056 = vmatpush1.bf16.msra.mxu0 0
    %3057 = vmatprep.subr.bf16.mxu0 0
    %3058 = vmatpush1.bf16.msra.mxu0 0
    %3059 = vmatprep.subr.bf16.mxu0 0
    %3060 = vmatpush1.bf16.msra.mxu0 0
    %3061 = vmatprep.subr.bf16.mxu0 0
    %3062 = vmatpush1.bf16.msra.mxu0 0
    %3063 = vmatprep.subr.bf16.mxu0 0
    %3064 = vmatpush1.bf16.msra.mxu0 0
    %3065 = vmatprep.mubr.bf16.mxu0 0
    %3066 = vmatmul.mubr.bf16.gmra.mrb[0].mxu0 %v3022
    %v3067 = vpop.f32.mrb[0].mxu0
    %v3068 = vadd.f32 0.0, %v3067
    %v3069 = vpop.f32.mrb[0].mxu0
    %v3070 = vpop.f32.mrb[0].mxu0
    %v3071 = vadd.f32 0.0, %v3070
    %v3072 = vpop.f32.mrb[0].mxu0
    %3073 = vmatprep.mubr.bf16.mxu0 0
    %3074 = vmatmul.mubr.bf16.gmra.mrb[0].mxu0 %v3025
    %v3075 = vpop.f32.mrb[0].mxu0
    %v3076 = vadd.f32 0.0, %v3075
    %v3077 = vpop.f32.mrb[0].mxu0
    %v3078 = vpop.f32.mrb[0].mxu0
    %v3079 = vadd.f32 0.0, %v3078
    %v3080 = vpop.f32.mrb[0].mxu0
    %3081 = vmatprep.mubr.bf16.mxu0 0
    %3082 = vmatmul.mubr.bf16.gmra.mrb[0].mxu0 %v3028
    %v3083 = vpop.f32.mrb[0].mxu0
    %v3084 = vadd.f32 0.0, %v3083
    %v3085 = vpop.f32.mrb[0].mxu0
    %v3086 = vpop.f32.mrb[0].mxu0
    %v3087 = vadd.f32 0.0, %v3086
    %v3088 = vpop.f32.mrb[0].mxu0
    %3089 = vmatprep.mubr.bf16.mxu0 0
    %3090 = vmatmul.mubr.bf16.gmra.mrb[0].mxu0 %v3031
    %v3091 = vpop.f32.mrb[0].mxu0
    %v3092 = vadd.f32 0.0, %v3091
    %v3093 = vpop.f32.mrb[0].mxu0
    %v3094 = vpop.f32.mrb[0].mxu0
    %v3095 = vadd.f32 0.0, %v3094
    %v3096 = vpop.f32.mrb[0].mxu0
    %3097 = vdwg.mxu0
    %v3098 = vmul.f32 %v2589, 0.5
    %v3099 = vmul.f32 %v2590, 0.5
    %v3100 = vmul.f32 %v2591, 0.5
    %v3101 = vmul.f32 %v2592, 0.5
    %v3102 = vmul.f32 %v2593, 0.5
    %v3103 = vmul.f32 %v2594, 0.5
    %v3104 = vmul.f32 %v2595, 0.5
    %v3105 = vmul.f32 %v2596, 0.5
    %v3106 = vmul.f32 %v3068, 0.5
    %v3107 = vmul.f32 %v3071, 0.5
    %v3108 = vmul.f32 %v3076, 0.5
    %v3109 = vmul.f32 %v3079, 0.5
    %v3110 = vmul.f32 %v3084, 0.5
    %v3111 = vmul.f32 %v3087, 0.5
    %v3112 = vmul.f32 %v3092, 0.5
    %v3113 = vmul.f32 %v3095, 0.5
    %v3114 = vadd.f32 %v3098, %v3106
    %v3115 = vadd.f32 %v3099, %v3107
    %v3116 = vadd.f32 %v3100, %v3108
    %v3117 = vadd.f32 %v3101, %v3109
    %v3118 = vadd.f32 %v3102, %v3110
    %v3119 = vadd.f32 %v3103, %v3111
    %v3120 = vadd.f32 %v3104, %v3112
    %v3121 = vadd.f32 %v3105, %v3113
    %3122 = vst [vmem:[#allocation8] sm:$0xff] %v3114
    %3123 = vst [vmem:[#allocation8 + $0x8] sm:$0xff] %v3115
    %3124 = vst [vmem:[#allocation8 + $0x10] sm:$0xff] %v3116
    %3125 = vst [vmem:[#allocation8 + $0x18] sm:$0xff] %v3117
    %3126 = vst [vmem:[#allocation8 + $0x20] sm:$0xff] %v3118
    %3127 = vst [vmem:[#allocation8 + $0x28] sm:$0xff] %v3119
    %3128 = vst [vmem:[#allocation8 + $0x30] sm:$0xff] %v3120
    %3129 = vst [vmem:[#allocation8 + $0x38] sm:$0xff] %v3121
    %v3130 = vld [vmem:[#allocation8] sm:$0xff]
    %v3131 = vld [vmem:[#allocation8 + $0x8] sm:$0xff]
    %v3132 = vld [vmem:[#allocation8 + $0x10] sm:$0xff]
    %v3133 = vld [vmem:[#allocation8 + $0x18] sm:$0xff]
    %v3134 = vld [vmem:[#allocation8 + $0x20] sm:$0xff]
    %v3135 = vld [vmem:[#allocation8 + $0x28] sm:$0xff]
    %v3136 = vld [vmem:[#allocation8 + $0x30] sm:$0xff]
    %v3137 = vld [vmem:[#allocation8 + $0x38] sm:$0xff]
    %v3138 = vmul.f32 %v791, %v3130
    %v3139 = vmul.f32 %v796, %v3131
    %v3140 = vmul.f32 %v801, %v3132
    %v3141 = vmul.f32 %v806, %v3133
    %v3142 = vmul.f32 %v811, %v3134
    %v3143 = vmul.f32 %v816, %v3135
    %v3144 = vmul.f32 %v821, %v3136
    %v3145 = vmul.f32 %v826, %v3137
    %v3146 = vld [vmem:[%s978] sm:$0xff]
    %v3147 = vld [vmem:[%s978 + $0x8] sm:$0xff]
    %v3148 = vld [vmem:[%s978 + $0x10] sm:$0xff]
    %v3149 = vld [vmem:[%s978 + $0x18] sm:$0xff]
    %v3150 = vld [vmem:[%s978 + $0x20] sm:$0xff]
    %v3151 = vld [vmem:[%s978 + $0x28] sm:$0xff]
    %v3152 = vld [vmem:[%s978 + $0x30] sm:$0xff]
    %v3153 = vld [vmem:[%s978 + $0x38] sm:$0xff]
    %v3154 = vld [vmem:[%s978 + $0x40] sm:$0xff]
    %v3155 = vld [vmem:[%s978 + $0x48] sm:$0xff]
    %v3156 = vld [vmem:[%s978 + $0x50] sm:$0xff]
    %v3157 = vld [vmem:[%s978 + $0x58] sm:$0xff]
    %v3158 = vld [vmem:[%s978 + $0x60] sm:$0xff]
    %v3159 = vld [vmem:[%s978 + $0x68] sm:$0xff]
    %v3160 = vld [vmem:[%s978 + $0x70] sm:$0xff]
    %v3161 = vld [vmem:[%s978 + $0x78] sm:$0xff]
    %3162 = vmatprep.subr.mxu0 0.0
    %3163 = vmatpush1.msra.mxu0 %v3146
    %3164 = vmatprep.subr.mxu0 0.0
    %3165 = vmatpush1.msra.mxu0 %v3147
    %3166 = vmatprep.subr.mxu0 0.0
    %3167 = vmatpush1.msra.mxu0 %v3148
    %3168 = vmatprep.subr.mxu0 0.0
    %3169 = vmatpush1.msra.mxu0 %v3149
    %3170 = vmatprep.subr.mxu0 0.0
    %3171 = vmatpush1.msra.mxu0 %v3150
    %3172 = vmatprep.subr.mxu0 0.0
    %3173 = vmatpush1.msra.mxu0 %v3151
    %3174 = vmatprep.subr.mxu0 0.0
    %3175 = vmatpush1.msra.mxu0 %v3152
    %3176 = vmatprep.subr.mxu0 0.0
    %3177 = vmatpush1.msra.mxu0 %v3153
    %3178 = vmatprep.subr.mxu0 0.0
    %3179 = vmatpush1.msra.mxu0 %v3154
    %3180 = vmatprep.subr.mxu0 0.0
    %3181 = vmatpush1.msra.mxu0 %v3155
    %3182 = vmatprep.subr.mxu0 0.0
    %3183 = vmatpush1.msra.mxu0 %v3156
    %3184 = vmatprep.subr.mxu0 0.0
    %3185 = vmatpush1.msra.mxu0 %v3157
    %3186 = vmatprep.subr.mxu0 0.0
    %3187 = vmatpush1.msra.mxu0 %v3158
    %3188 = vmatprep.subr.mxu0 0.0
    %3189 = vmatpush1.msra.mxu0 %v3159
    %3190 = vmatprep.subr.mxu0 0.0
    %3191 = vmatpush1.msra.mxu0 %v3160
    %3192 = vmatprep.subr.mxu0 0.0
    %3193 = vmatpush1.msra.mxu0 %v3161
    %3194 = vmatprep.subr.mxu0 0.0
    %3195 = vmatpush1.msra.mxu0 0.0
    %3196 = vmatprep.subr.mxu0 0.0
    %3197 = vmatpush1.msra.mxu0 0.0
    %3198 = vmatprep.subr.mxu0 0.0
    %3199 = vmatpush1.msra.mxu0 0.0
    %3200 = vmatprep.subr.mxu0 0.0
    %3201 = vmatpush1.msra.mxu0 0.0
    %3202 = vmatprep.subr.mxu0 0.0
    %3203 = vmatpush1.msra.mxu0 0.0
    %3204 = vmatprep.subr.mxu0 0.0
    %3205 = vmatpush1.msra.mxu0 0.0
    %3206 = vmatprep.subr.mxu0 0.0
    %3207 = vmatpush1.msra.mxu0 0.0
    %3208 = vmatprep.subr.mxu0 0.0
    %3209 = vmatpush1.msra.mxu0 0.0
    %3210 = vmatprep.subr.mxu0 0.0
    %3211 = vmatpush1.msra.mxu0 0.0
    %3212 = vmatprep.subr.mxu0 0.0
    %3213 = vmatpush1.msra.mxu0 0.0
    %3214 = vmatprep.subr.mxu0 0.0
    %3215 = vmatpush1.msra.mxu0 0.0
    %3216 = vmatprep.subr.mxu0 0.0
    %3217 = vmatpush1.msra.mxu0 0.0
    %3218 = vmatprep.subr.mxu0 0.0
    %3219 = vmatpush1.msra.mxu0 0.0
    %3220 = vmatprep.subr.mxu0 0.0
    %3221 = vmatpush1.msra.mxu0 0.0
    %3222 = vmatprep.subr.mxu0 0.0
    %3223 = vmatpush1.msra.mxu0 0.0
    %3224 = vmatprep.subr.mxu0 0.0
    %3225 = vmatpush1.msra.mxu0 0.0
    %3226 = vmatprep.mubr.f32.mxu0 0.0
    %3227 = vmatmul.mubr.f32.gmra.mrb[0].mxu0 %v3138
    %v3228 = vpop.f32.mrb[0].mxu0
    %v3229 = vadd.f32 %v523, %v3228
    %v3230 = vpop.f32.mrb[0].mxu0
    %3231 = vmatprep.mubr.f32.mxu0 0.0
    %3232 = vmatmul.mubr.f32.gmra.mrb[0].mxu0 %v3139
    %v3233 = vpop.f32.mrb[0].mxu0
    %v3234 = vadd.f32 %v524, %v3233
    %v3235 = vpop.f32.mrb[0].mxu0
    %3236 = vmatprep.mubr.f32.mxu0 0.0
    %3237 = vmatmul.mubr.f32.gmra.mrb[0].mxu0 %v3140
    %v3238 = vpop.f32.mrb[0].mxu0
    %v3239 = vadd.f32 %v525, %v3238
    %v3240 = vpop.f32.mrb[0].mxu0
    %3241 = vmatprep.mubr.f32.mxu0 0.0
    %3242 = vmatmul.mubr.f32.gmra.mrb[0].mxu0 %v3141
    %v3243 = vpop.f32.mrb[0].mxu0
    %v3244 = vadd.f32 %v526, %v3243
    %v3245 = vpop.f32.mrb[0].mxu0
    %3246 = vmatprep.mubr.f32.mxu0 0.0
    %3247 = vmatmul.mubr.f32.gmra.mrb[0].mxu0 %v3142
    %v3248 = vpop.f32.mrb[0].mxu0
    %v3249 = vadd.f32 %v527, %v3248
    %v3250 = vpop.f32.mrb[0].mxu0
    %3251 = vmatprep.mubr.f32.mxu0 0.0
    %3252 = vmatmul.mubr.f32.gmra.mrb[0].mxu0 %v3143
    %v3253 = vpop.f32.mrb[0].mxu0
    %v3254 = vadd.f32 %v528, %v3253
    %v3255 = vpop.f32.mrb[0].mxu0
    %3256 = vmatprep.mubr.f32.mxu0 0.0
    %3257 = vmatmul.mubr.f32.gmra.mrb[0].mxu0 %v3144
    %v3258 = vpop.f32.mrb[0].mxu0
    %v3259 = vadd.f32 %v529, %v3258
    %v3260 = vpop.f32.mrb[0].mxu0
    %3261 = vmatprep.mubr.f32.mxu0 0.0
    %3262 = vmatmul.mubr.f32.gmra.mrb[0].mxu0 %v3145
    %v3263 = vpop.f32.mrb[0].mxu0
    %v3264 = vadd.f32 %v530, %v3263
    %v3265 = vpop.f32.mrb[0].mxu0
    %3266 = vdwg.mxu0
    %3267 = vadd.xlane.f32.xlu0 %v3229
    %v3268 = vpop.xlane.xlu0 %3267
    %3269 = vadd.xlane.f32.xlu0 %v3234
    %v3270 = vpop.xlane.xlu0 %3269
    %3271 = vadd.xlane.f32.xlu0 %v3239
    %v3272 = vpop.xlane.xlu0 %3271
    %3273 = vadd.xlane.f32.xlu0 %v3244
    %v3274 = vpop.xlane.xlu0 %3273
    %3275 = vadd.xlane.f32.xlu0 %v3249
    %v3276 = vpop.xlane.xlu0 %3275
    %3277 = vadd.xlane.f32.xlu0 %v3254
    %v3278 = vpop.xlane.xlu0 %3277
    %3279 = vadd.xlane.f32.xlu0 %v3259
    %v3280 = vpop.xlane.xlu0 %3279
    %3281 = vadd.xlane.f32.xlu0 %v3264
    %v3282 = vpop.xlane.xlu0 %3281
    %v3283 = vmul.f32 %v3268, 0.03125
    %v3284 = vmul.f32 %v3270, 0.03125
    %v3285 = vmul.f32 %v3272, 0.03125
    %v3286 = vmul.f32 %v3274, 0.03125
    %v3287 = vmul.f32 %v3276, 0.03125
    %v3288 = vmul.f32 %v3278, 0.03125
    %v3289 = vmul.f32 %v3280, 0.03125
    %v3290 = vmul.f32 %v3282, 0.03125
    %v3291 = vsub.f32 %v3229, %v3283
    %v3292 = vsub.f32 %v3234, %v3284
    %v3293 = vsub.f32 %v3239, %v3285
    %v3294 = vsub.f32 %v3244, %v3286
    %v3295 = vsub.f32 %v3249, %v3287
    %v3296 = vsub.f32 %v3254, %v3288
    %v3297 = vsub.f32 %v3259, %v3289
    %v3298 = vsub.f32 %v3264, %v3290
    %v3299 = vsel %vm564, %v3291, 0.0
    %v3300 = vsel %vm564, %v3292, 0.0
    %v3301 = vsel %vm564, %v3293, 0.0
    %v3302 = vsel %vm564, %v3294, 0.0
    %v3303 = vsel %vm564, %v3295, 0.0
    %v3304 = vsel %vm564, %v3296, 0.0
    %v3305 = vsel %vm564, %v3297, 0.0
    %v3306 = vsel %vm564, %v3298, 0.0
    %v3307 = vmul.f32 %v3299, %v3299
    %v3308 = vmul.f32 %v3300, %v3300
    %v3309 = vmul.f32 %v3301, %v3301
    %v3310 = vmul.f32 %v3302, %v3302
    %v3311 = vmul.f32 %v3303, %v3303
    %v3312 = vmul.f32 %v3304, %v3304
    %v3313 = vmul.f32 %v3305, %v3305
    %v3314 = vmul.f32 %v3306, %v3306
    %3315 = vadd.xlane.f32.xlu0 %v3307
    %v3316 = vpop.xlane.xlu0 %3315
    %3317 = vadd.xlane.f32.xlu0 %v3308
    %v3318 = vpop.xlane.xlu0 %3317
    %3319 = vadd.xlane.f32.xlu0 %v3309
    %v3320 = vpop.xlane.xlu0 %3319
    %3321 = vadd.xlane.f32.xlu0 %v3310
    %v3322 = vpop.xlane.xlu0 %3321
    %3323 = vadd.xlane.f32.xlu0 %v3311
    %v3324 = vpop.xlane.xlu0 %3323
    %3325 = vadd.xlane.f32.xlu0 %v3312
    %v3326 = vpop.xlane.xlu0 %3325
    %3327 = vadd.xlane.f32.xlu0 %v3313
    %v3328 = vpop.xlane.xlu0 %3327
    %3329 = vadd.xlane.f32.xlu0 %v3314
    %v3330 = vpop.xlane.xlu0 %3329
    %v3331 = vmul.f32 %v3316, 0.03125
    %v3332 = vmul.f32 %v3318, 0.03125
    %v3333 = vmul.f32 %v3320, 0.03125
    %v3334 = vmul.f32 %v3322, 0.03125
    %v3335 = vmul.f32 %v3324, 0.03125
    %v3336 = vmul.f32 %v3326, 0.03125
    %v3337 = vmul.f32 %v3328, 0.03125
    %v3338 = vmul.f32 %v3330, 0.03125
    %v3339 = vadd.f32 %v3331, 1e-05
    %v3340 = vadd.f32 %v3332, 1e-05
    %v3341 = vadd.f32 %v3333, 1e-05
    %v3342 = vadd.f32 %v3334, 1e-05
    %v3343 = vadd.f32 %v3335, 1e-05
    %v3344 = vadd.f32 %v3336, 1e-05
    %v3345 = vadd.f32 %v3337, 1e-05
    %v3346 = vadd.f32 %v3338, 1e-05
    %v3347 = vrsqrt.pop %v3339
    %v3348 = vrsqrt.pop %v3340
    %v3349 = vrsqrt.pop %v3341
    %v3350 = vrsqrt.pop %v3342
    %v3351 = vrsqrt.pop %v3343
    %v3352 = vrsqrt.pop %v3344
    %v3353 = vrsqrt.pop %v3345
    %v3354 = vrsqrt.pop %v3346
    %v3355 = vmul.f32 %v3299, %v3347
    %v3356 = vmul.f32 %v3300, %v3348
    %v3357 = vmul.f32 %v3301, %v3349
    %v3358 = vmul.f32 %v3302, %v3350
    %v3359 = vmul.f32 %v3303, %v3351
    %v3360 = vmul.f32 %v3304, %v3352
    %v3361 = vmul.f32 %v3305, %v3353
    %v3362 = vmul.f32 %v3306, %v3354
    %v3363 = vld [vmem:[%s1196] sm:$0x1]
    %v3365 = vlaneseq
    %v3366 = vshrl.u32 %v3365, 7
    %v3367 = vsub.s32 0, %v3366
    %v3368 = vrot.slane %v3363, %v3367
    %v3370 = vmul.f32 %v3355, %v3368
    %v3371 = vmul.f32 %v3356, %v3368
    %v3372 = vmul.f32 %v3357, %v3368
    %v3373 = vmul.f32 %v3358, %v3368
    %v3374 = vmul.f32 %v3359, %v3368
    %v3375 = vmul.f32 %v3360, %v3368
    %v3376 = vmul.f32 %v3361, %v3368
    %v3377 = vmul.f32 %v3362, %v3368
    %v3378 = vld [vmem:[%s1212] sm:$0x1]
    %v3380 = vlaneseq
    %v3381 = vshrl.u32 %v3380, 7
    %v3382 = vsub.s32 0, %v3381
    %v3383 = vrot.slane %v3378, %v3382
    %v3385 = vadd.f32 %v3370, %v3383
    %v3386 = vadd.f32 %v3371, %v3383
    %v3387 = vadd.f32 %v3372, %v3383
    %v3388 = vadd.f32 %v3373, %v3383
    %v3389 = vadd.f32 %v3374, %v3383
    %v3390 = vadd.f32 %v3375, %v3383
    %v3391 = vadd.f32 %v3376, %v3383
    %v3392 = vadd.f32 %v3377, %v3383
    %v3393 = vtanh.pop %v3385
    %v3394 = vtanh.pop %v3386
    %v3395 = vtanh.pop %v3387
    %v3396 = vtanh.pop %v3388
    %v3397 = vtanh.pop %v3389
    %v3398 = vtanh.pop %v3390
    %v3399 = vtanh.pop %v3391
    %v3400 = vtanh.pop %v3392
    %v3401 = vld [vmem:[%s1236] sm:$0xff]
    %v3402 = vld [vmem:[%s1236 + $0x8] sm:$0xff]
    %v3403 = vld [vmem:[%s1236 + $0x10] sm:$0xff]
    %v3404 = vld [vmem:[%s1236 + $0x18] sm:$0xff]
    %v3405 = vld [vmem:[%s1236 + $0x20] sm:$0xff]
    %v3406 = vld [vmem:[%s1236 + $0x28] sm:$0xff]
    %v3407 = vld [vmem:[%s1236 + $0x30] sm:$0xff]
    %v3408 = vld [vmem:[%s1236 + $0x38] sm:$0xff]
    %v3409 = vld [vmem:[%s1236 + $0x40] sm:$0xff]
    %v3410 = vld [vmem:[%s1236 + $0x48] sm:$0xff]
    %v3411 = vld [vmem:[%s1236 + $0x50] sm:$0xff]
    %v3412 = vld [vmem:[%s1236 + $0x58] sm:$0xff]
    %v3413 = vld [vmem:[%s1236 + $0x60] sm:$0xff]
    %v3414 = vld [vmem:[%s1236 + $0x68] sm:$0xff]
    %v3415 = vld [vmem:[%s1236 + $0x70] sm:$0xff]
    %v3416 = vld [vmem:[%s1236 + $0x78] sm:$0xff]
    %3417 = vmatprep.subr.mxu0 0.0
    %3418 = vmatpush1.msra.mxu0 %v3401
    %3419 = vmatprep.subr.mxu0 0.0
    %3420 = vmatpush1.msra.mxu0 %v3402
    %3421 = vmatprep.subr.mxu0 0.0
    %3422 = vmatpush1.msra.mxu0 %v3403
    %3423 = vmatprep.subr.mxu0 0.0
    %3424 = vmatpush1.msra.mxu0 %v3404
    %3425 = vmatprep.subr.mxu0 0.0
    %3426 = vmatpush1.msra.mxu0 %v3405
    %3427 = vmatprep.subr.mxu0 0.0
    %3428 = vmatpush1.msra.mxu0 %v3406
    %3429 = vmatprep.subr.mxu0 0.0
    %3430 = vmatpush1.msra.mxu0 %v3407
    %3431 = vmatprep.subr.mxu0 0.0
    %3432 = vmatpush1.msra.mxu0 %v3408
    %3433 = vmatprep.subr.mxu0 0.0
    %3434 = vmatpush1.msra.mxu0 %v3409
    %3435 = vmatprep.subr.mxu0 0.0
    %3436 = vmatpush1.msra.mxu0 %v3410
    %3437 = vmatprep.subr.mxu0 0.0
    %3438 = vmatpush1.msra.mxu0 %v3411
    %3439 = vmatprep.subr.mxu0 0.0
    %3440 = vmatpush1.msra.mxu0 %v3412
    %3441 = vmatprep.subr.mxu0 0.0
    %3442 = vmatpush1.msra.mxu0 %v3413
    %3443 = vmatprep.subr.mxu0 0.0
    %3444 = vmatpush1.msra.mxu0 %v3414
    %3445 = vmatprep.subr.mxu0 0.0
    %3446 = vmatpush1.msra.mxu0 %v3415
    %3447 = vmatprep.subr.mxu0 0.0
    %3448 = vmatpush1.msra.mxu0 %v3416
    %3449 = vmatprep.subr.mxu0 0.0
    %3450 = vmatpush1.msra.mxu0 0.0
    %3451 = vmatprep.subr.mxu0 0.0
    %3452 = vmatpush1.msra.mxu0 0.0
    %3453 = vmatprep.subr.mxu0 0.0
    %3454 = vmatpush1.msra.mxu0 0.0
    %3455 = vmatprep.subr.mxu0 0.0
    %3456 = vmatpush1.msra.mxu0 0.0
    %3457 = vmatprep.subr.mxu0 0.0
    %3458 = vmatpush1.msra.mxu0 0.0
    %3459 = vmatprep.subr.mxu0 0.0
    %3460 = vmatpush1.msra.mxu0 0.0
    %3461 = vmatprep.subr.mxu0 0.0
    %3462 = vmatpush1.msra.mxu0 0.0
    %3463 = vmatprep.subr.mxu0 0.0
    %3464 = vmatpush1.msra.mxu0 0.0
    %3465 = vmatprep.subr.mxu0 0.0
    %3466 = vmatpush1.msra.mxu0 0.0
    %3467 = vmatprep.subr.mxu0 0.0
    %3468 = vmatpush1.msra.mxu0 0.0
    %3469 = vmatprep.subr.mxu0 0.0
    %3470 = vmatpush1.msra.mxu0 0.0
    %3471 = vmatprep.subr.mxu0 0.0
    %3472 = vmatpush1.msra.mxu0 0.0
    %3473 = vmatprep.subr.mxu0 0.0
    %3474 = vmatpush1.msra.mxu0 0.0
    %3475 = vmatprep.subr.mxu0 0.0
    %3476 = vmatpush1.msra.mxu0 0.0
    %3477 = vmatprep.subr.mxu0 0.0
    %3478 = vmatpush1.msra.mxu0 0.0
    %3479 = vmatprep.subr.mxu0 0.0
    %3480 = vmatpush1.msra.mxu0 0.0
    %3481 = vmatprep.mubr.f32.mxu0 0.0
    %3482 = vmatmul.mubr.f32.gmra.mrb[0].mxu0 %v3393
    %v3483 = vpop.f32.mrb[0].mxu0
    %v3484 = vadd.f32 0.0, %v3483
    %v3485 = vpop.f32.mrb[0].mxu0
    %3486 = vmatprep.mubr.f32.mxu0 0.0
    %3487 = vmatmul.mubr.f32.gmra.mrb[0].mxu0 %v3394
    %v3488 = vpop.f32.mrb[0].mxu0
    %v3489 = vadd.f32 0.0, %v3488
    %v3490 = vpop.f32.mrb[0].mxu0
    %3491 = vmatprep.mubr.f32.mxu0 0.0
    %3492 = vmatmul.mubr.f32.gmra.mrb[0].mxu0 %v3395
    %v3493 = vpop.f32.mrb[0].mxu0
    %v3494 = vadd.f32 0.0, %v3493
    %v3495 = vpop.f32.mrb[0].mxu0
    %3496 = vmatprep.mubr.f32.mxu0 0.0
    %3497 = vmatmul.mubr.f32.gmra.mrb[0].mxu0 %v3396
    %v3498 = vpop.f32.mrb[0].mxu0
    %v3499 = vadd.f32 0.0, %v3498
    %v3500 = vpop.f32.mrb[0].mxu0
    %3501 = vmatprep.mubr.f32.mxu0 0.0
    %3502 = vmatmul.mubr.f32.gmra.mrb[0].mxu0 %v3397
    %v3503 = vpop.f32.mrb[0].mxu0
    %v3504 = vadd.f32 0.0, %v3503
    %v3505 = vpop.f32.mrb[0].mxu0
    %3506 = vmatprep.mubr.f32.mxu0 0.0
    %3507 = vmatmul.mubr.f32.gmra.mrb[0].mxu0 %v3398
    %v3508 = vpop.f32.mrb[0].mxu0
    %v3509 = vadd.f32 0.0, %v3508
    %v3510 = vpop.f32.mrb[0].mxu0
    %3511 = vmatprep.mubr.f32.mxu0 0.0
    %3512 = vmatmul.mubr.f32.gmra.mrb[0].mxu0 %v3399
    %v3513 = vpop.f32.mrb[0].mxu0
    %v3514 = vadd.f32 0.0, %v3513
    %v3515 = vpop.f32.mrb[0].mxu0
    %3516 = vmatprep.mubr.f32.mxu0 0.0
    %3517 = vmatmul.mubr.f32.gmra.mrb[0].mxu0 %v3400
    %v3518 = vpop.f32.mrb[0].mxu0
    %v3519 = vadd.f32 0.0, %v3518
    %v3520 = vpop.f32.mrb[0].mxu0
    %3521 = vdwg.mxu0
    %v3522 = vmul.f32 %v791, %v3484
    %v3523 = vmul.f32 %v796, %v3489
    %v3524 = vmul.f32 %v801, %v3494
    %v3525 = vmul.f32 %v806, %v3499
    %v3526 = vmul.f32 %v811, %v3504
    %v3527 = vmul.f32 %v816, %v3509
    %v3528 = vmul.f32 %v821, %v3514
    %v3529 = vmul.f32 %v826, %v3519
    %v3530 = vpack.c.bf16 %v3523, %v3522
    %v3531 = vpack.c.bf16 %v3525, %v3524
    %v3532 = vpack.c.bf16 %v3527, %v3526
    %v3533 = vpack.c.bf16 %v3529, %v3528
    %v3534 = vld [vmem:[%s2] sm:$0xf]
    %v3535 = vld [vmem:[%s2 + $0x4] sm:$0xf]
    %v3536 = vld [vmem:[%s2 + $0x8] sm:$0xf]
    %v3537 = vld [vmem:[%s2 + $0xc] sm:$0xf]
    %v3538 = vld [vmem:[%s2 + $0x10] sm:$0xf]
    %v3539 = vld [vmem:[%s2 + $0x14] sm:$0xf]
    %v3540 = vld [vmem:[%s2 + $0x18] sm:$0xf]
    %v3541 = vld [vmem:[%s2 + $0x1c] sm:$0xf]
    %v3550 = vunpack.c.l.b16 %v3534
    %v3551 = vunpack.c.l.b16 %v3535
    %v3552 = vunpack.c.l.b16 %v3536
    %v3553 = vunpack.c.l.b16 %v3537
    %v3554 = vunpack.c.l.b16 %v3538
    %v3555 = vunpack.c.l.b16 %v3539
    %v3556 = vunpack.c.l.b16 %v3540
    %v3557 = vunpack.c.l.b16 %v3541
    %v3558 = vpack.c.b16 %v3551, %v3550
    %v3559 = vpack.c.b16 %v3553, %v3552
    %v3560 = vpack.c.b16 %v3555, %v3554
    %v3561 = vpack.c.b16 %v3557, %v3556
    %v3563 = vsel %vm868, %v3558, 0
    %v3566 = vsel %vm868, %v3559, 0
    %v3569 = vsel %vm868, %v3560, 0
    %v3572 = vsel %vm868, %v3561, 0
    %3574 = vmatprep.subr.bf16.mxu0 0
    %3575 = vmatpush1.bf16.msra.mxu0 %v3530
    %3576 = vmatprep.subr.bf16.mxu0 0
    %3577 = vmatpush1.bf16.msra.mxu0 %v3531
    %3578 = vmatprep.subr.bf16.mxu0 0
    %3579 = vmatpush1.bf16.msra.mxu0 %v3532
    %3580 = vmatprep.subr.bf16.mxu0 0
    %3581 = vmatpush1.bf16.msra.mxu0 %v3533
    %3582 = vmatprep.subr.bf16.mxu0 0
    %3583 = vmatpush1.bf16.msra.mxu0 0
    %3584 = vmatprep.subr.bf16.mxu0 0
    %3585 = vmatpush1.bf16.msra.mxu0 0
    %3586 = vmatprep.subr.bf16.mxu0 0
    %3587 = vmatpush1.bf16.msra.mxu0 0
    %3588 = vmatprep.subr.bf16.mxu0 0
    %3589 = vmatpush1.bf16.msra.mxu0 0
    %3590 = vmatprep.subr.bf16.mxu0 0
    %3591 = vmatpush1.bf16.msra.mxu0 0
    %3592 = vmatprep.subr.bf16.mxu0 0
    %3593 = vmatpush1.bf16.msra.mxu0 0
    %3594 = vmatprep.subr.bf16.mxu0 0
    %3595 = vmatpush1.bf16.msra.mxu0 0
    %3596 = vmatprep.subr.bf16.mxu0 0
    %3597 = vmatpush1.bf16.msra.mxu0 0
    %3598 = vmatprep.subr.bf16.mxu0 0
    %3599 = vmatpush1.bf16.msra.mxu0 0
    %3600 = vmatprep.subr.bf16.mxu0 0
    %3601 = vmatpush1.bf16.msra.mxu0 0
    %3602 = vmatprep.subr.bf16.mxu0 0
    %3603 = vmatpush1.bf16.msra.mxu0 0
    %3604 = vmatprep.subr.bf16.mxu0 0
    %3605 = vmatpush1.bf16.msra.mxu0 0
    %3606 = vmatprep.mubr.bf16.mxu0 0
    %3607 = vmatmul.mubr.bf16.gmra.mrb[0].mxu0 %v3563
    %v3608 = vpop.f32.mrb[0].mxu0
    %v3609 = vadd.f32 0.0, %v3608
    %v3610 = vpop.f32.mrb[0].mxu0
    %v3611 = vpop.f32.mrb[0].mxu0
    %v3612 = vadd.f32 0.0, %v3611
    %v3613 = vpop.f32.mrb[0].mxu0
    %3614 = vmatprep.mubr.bf16.mxu0 0
    %3615 = vmatmul.mubr.bf16.gmra.mrb[0].mxu0 %v3566
    %v3616 = vpop.f32.mrb[0].mxu0
    %v3617 = vadd.f32 0.0, %v3616
    %v3618 = vpop.f32.mrb[0].mxu0
    %v3619 = vpop.f32.mrb[0].mxu0
    %v3620 = vadd.f32 0.0, %v3619
    %v3621 = vpop.f32.mrb[0].mxu0
    %3622 = vmatprep.mubr.bf16.mxu0 0
    %3623 = vmatmul.mubr.bf16.gmra.mrb[0].mxu0 %v3569
    %v3624 = vpop.f32.mrb[0].mxu0
    %v3625 = vadd.f32 0.0, %v3624
    %v3626 = vpop.f32.mrb[0].mxu0
    %v3627 = vpop.f32.mrb[0].mxu0
    %v3628 = vadd.f32 0.0, %v3627
    %v3629 = vpop.f32.mrb[0].mxu0
    %3630 = vmatprep.mubr.bf16.mxu0 0
    %3631 = vmatmul.mubr.bf16.gmra.mrb[0].mxu0 %v3572
    %v3632 = vpop.f32.mrb[0].mxu0
    %v3633 = vadd.f32 0.0, %v3632
    %v3634 = vpop.f32.mrb[0].mxu0
    %v3635 = vpop.f32.mrb[0].mxu0
    %v3636 = vadd.f32 0.0, %v3635
    %v3637 = vpop.f32.mrb[0].mxu0
    %3638 = vdwg.mxu0
    %v3639 = vmul.f32 %v3130, 0.5
    %v3640 = vmul.f32 %v3131, 0.5
    %v3641 = vmul.f32 %v3132, 0.5
    %v3642 = vmul.f32 %v3133, 0.5
    %v3643 = vmul.f32 %v3134, 0.5
    %v3644 = vmul.f32 %v3135, 0.5
    %v3645 = vmul.f32 %v3136, 0.5
    %v3646 = vmul.f32 %v3137, 0.5
    %v3647 = vmul.f32 %v3609, 0.5
    %v3648 = vmul.f32 %v3612, 0.5
    %v3649 = vmul.f32 %v3617, 0.5
    %v3650 = vmul.f32 %v3620, 0.5
    %v3651 = vmul.f32 %v3625, 0.5
    %v3652 = vmul.f32 %v3628, 0.5
    %v3653 = vmul.f32 %v3633, 0.5
    %v3654 = vmul.f32 %v3636, 0.5
    %v3655 = vadd.f32 %v3639, %v3647
    %v3656 = vadd.f32 %v3640, %v3648
    %v3657 = vadd.f32 %v3641, %v3649
    %v3658 = vadd.f32 %v3642, %v3650
    %v3659 = vadd.f32 %v3643, %v3651
    %v3660 = vadd.f32 %v3644, %v3652
    %v3661 = vadd.f32 %v3645, %v3653
    %v3662 = vadd.f32 %v3646, %v3654
    %3663 = vst [vmem:[#allocation8] sm:$0xff] %v3655
    %3664 = vst [vmem:[#allocation8 + $0x8] sm:$0xff] %v3656
    %3665 = vst [vmem:[#allocation8 + $0x10] sm:$0xff] %v3657
    %3666 = vst [vmem:[#allocation8 + $0x18] sm:$0xff] %v3658
    %3667 = vst [vmem:[#allocation8 + $0x20] sm:$0xff] %v3659
    %3668 = vst [vmem:[#allocation8 + $0x28] sm:$0xff] %v3660
    %3669 = vst [vmem:[#allocation8 + $0x30] sm:$0xff] %v3661
    %3670 = vst [vmem:[#allocation8 + $0x38] sm:$0xff] %v3662
    %v3671 = vld [vmem:[#allocation8] sm:$0xff]
    %v3672 = vld [vmem:[#allocation8 + $0x8] sm:$0xff]
    %v3673 = vld [vmem:[#allocation8 + $0x10] sm:$0xff]
    %v3674 = vld [vmem:[#allocation8 + $0x18] sm:$0xff]
    %v3675 = vld [vmem:[#allocation8 + $0x20] sm:$0xff]
    %v3676 = vld [vmem:[#allocation8 + $0x28] sm:$0xff]
    %v3677 = vld [vmem:[#allocation8 + $0x30] sm:$0xff]
    %v3678 = vld [vmem:[#allocation8 + $0x38] sm:$0xff]
    %v3679 = vmul.f32 %v791, %v3671
    %v3680 = vmul.f32 %v796, %v3672
    %v3681 = vmul.f32 %v801, %v3673
    %v3682 = vmul.f32 %v806, %v3674
    %v3683 = vmul.f32 %v811, %v3675
    %v3684 = vmul.f32 %v816, %v3676
    %v3685 = vmul.f32 %v821, %v3677
    %v3686 = vmul.f32 %v826, %v3678
    %v3687 = vld [vmem:[#allocation2] sm:$0xff]
    %v3688 = vld [vmem:[#allocation2 + $0x8] sm:$0xff]
    %v3689 = vld [vmem:[#allocation2 + $0x10] sm:$0xff]
    %v3690 = vld [vmem:[#allocation2 + $0x18] sm:$0xff]
    %v3691 = vld [vmem:[#allocation2 + $0x20] sm:$0xff]
    %v3692 = vld [vmem:[#allocation2 + $0x28] sm:$0xff]
    %v3693 = vld [vmem:[#allocation2 + $0x30] sm:$0xff]
    %v3694 = vld [vmem:[#allocation2 + $0x38] sm:$0xff]
    %v3695 = vld [vmem:[#allocation2 + $0x40] sm:$0xff]
    %v3696 = vld [vmem:[#allocation2 + $0x48] sm:$0xff]
    %v3697 = vld [vmem:[#allocation2 + $0x50] sm:$0xff]
    %v3698 = vld [vmem:[#allocation2 + $0x58] sm:$0xff]
    %v3699 = vld [vmem:[#allocation2 + $0x60] sm:$0xff]
    %v3700 = vld [vmem:[#allocation2 + $0x68] sm:$0xff]
    %v3701 = vld [vmem:[#allocation2 + $0x70] sm:$0xff]
    %v3702 = vld [vmem:[#allocation2 + $0x78] sm:$0xff]
    %3703 = vmatprep.subr.mxu0 0.0
    %3704 = vmatpush1.msra.mxu0 %v3687
    %3705 = vmatprep.subr.mxu0 0.0
    %3706 = vmatpush1.msra.mxu0 %v3688
    %3707 = vmatprep.subr.mxu0 0.0
    %3708 = vmatpush1.msra.mxu0 %v3689
    %3709 = vmatprep.subr.mxu0 0.0
    %3710 = vmatpush1.msra.mxu0 %v3690
    %3711 = vmatprep.subr.mxu0 0.0
    %3712 = vmatpush1.msra.mxu0 %v3691
    %3713 = vmatprep.subr.mxu0 0.0
    %3714 = vmatpush1.msra.mxu0 %v3692
    %3715 = vmatprep.subr.mxu0 0.0
    %3716 = vmatpush1.msra.mxu0 %v3693
    %3717 = vmatprep.subr.mxu0 0.0
    %3718 = vmatpush1.msra.mxu0 %v3694
    %3719 = vmatprep.subr.mxu0 0.0
    %3720 = vmatpush1.msra.mxu0 %v3695
    %3721 = vmatprep.subr.mxu0 0.0
    %3722 = vmatpush1.msra.mxu0 %v3696
    %3723 = vmatprep.subr.mxu0 0.0
    %3724 = vmatpush1.msra.mxu0 %v3697
    %3725 = vmatprep.subr.mxu0 0.0
    %3726 = vmatpush1.msra.mxu0 %v3698
    %3727 = vmatprep.subr.mxu0 0.0
    %3728 = vmatpush1.msra.mxu0 %v3699
    %3729 = vmatprep.subr.mxu0 0.0
    %3730 = vmatpush1.msra.mxu0 %v3700
    %3731 = vmatprep.subr.mxu0 0.0
    %3732 = vmatpush1.msra.mxu0 %v3701
    %3733 = vmatprep.subr.mxu0 0.0
    %3734 = vmatpush1.msra.mxu0 %v3702
    %3735 = vmatprep.subr.mxu0 0.0
    %3736 = vmatpush1.msra.mxu0 0.0
    %3737 = vmatprep.subr.mxu0 0.0
    %3738 = vmatpush1.msra.mxu0 0.0
    %3739 = vmatprep.subr.mxu0 0.0
    %3740 = vmatpush1.msra.mxu0 0.0
    %3741 = vmatprep.subr.mxu0 0.0
    %3742 = vmatpush1.msra.mxu0 0.0
    %3743 = vmatprep.subr.mxu0 0.0
    %3744 = vmatpush1.msra.mxu0 0.0
    %3745 = vmatprep.subr.mxu0 0.0
    %3746 = vmatpush1.msra.mxu0 0.0
    %3747 = vmatprep.subr.mxu0 0.0
    %3748 = vmatpush1.msra.mxu0 0.0
    %3749 = vmatprep.subr.mxu0 0.0
    %3750 = vmatpush1.msra.mxu0 0.0
    %3751 = vmatprep.subr.mxu0 0.0
    %3752 = vmatpush1.msra.mxu0 0.0
    %3753 = vmatprep.subr.mxu0 0.0
    %3754 = vmatpush1.msra.mxu0 0.0
    %3755 = vmatprep.subr.mxu0 0.0
    %3756 = vmatpush1.msra.mxu0 0.0
    %3757 = vmatprep.subr.mxu0 0.0
    %3758 = vmatpush1.msra.mxu0 0.0
    %3759 = vmatprep.subr.mxu0 0.0
    %3760 = vmatpush1.msra.mxu0 0.0
    %3761 = vmatprep.subr.mxu0 0.0
    %3762 = vmatpush1.msra.mxu0 0.0
    %3763 = vmatprep.subr.mxu0 0.0
    %3764 = vmatpush1.msra.mxu0 0.0
    %3765 = vmatprep.subr.mxu0 0.0
    %3766 = vmatpush1.msra.mxu0 0.0
    %3767 = vmatprep.mubr.f32.mxu0 0.0
    %3768 = vmatmul.mubr.f32.gmra.mrb[0].mxu0 %v3679
    %v3769 = vpop.f32.mrb[0].mxu0
    %v3770 = vadd.f32 %v377, %v3769
    %v3771 = vpop.f32.mrb[0].mxu0
    %3772 = vmatprep.mubr.f32.mxu0 0.0
    %3773 = vmatmul.mubr.f32.gmra.mrb[0].mxu0 %v3680
    %v3774 = vpop.f32.mrb[0].mxu0
    %v3775 = vadd.f32 %v378, %v3774
    %v3776 = vpop.f32.mrb[0].mxu0
    %3777 = vmatprep.mubr.f32.mxu0 0.0
    %3778 = vmatmul.mubr.f32.gmra.mrb[0].mxu0 %v3681
    %v3779 = vpop.f32.mrb[0].mxu0
    %v3780 = vadd.f32 %v379, %v3779
    %v3781 = vpop.f32.mrb[0].mxu0
    %3782 = vmatprep.mubr.f32.mxu0 0.0
    %3783 = vmatmul.mubr.f32.gmra.mrb[0].mxu0 %v3682
    %v3784 = vpop.f32.mrb[0].mxu0
    %v3785 = vadd.f32 %v380, %v3784
    %v3786 = vpop.f32.mrb[0].mxu0
    %3787 = vmatprep.mubr.f32.mxu0 0.0
    %3788 = vmatmul.mubr.f32.gmra.mrb[0].mxu0 %v3683
    %v3789 = vpop.f32.mrb[0].mxu0
    %v3790 = vadd.f32 %v381, %v3789
    %v3791 = vpop.f32.mrb[0].mxu0
    %3792 = vmatprep.mubr.f32.mxu0 0.0
    %3793 = vmatmul.mubr.f32.gmra.mrb[0].mxu0 %v3684
    %v3794 = vpop.f32.mrb[0].mxu0
    %v3795 = vadd.f32 %v382, %v3794
    %v3796 = vpop.f32.mrb[0].mxu0
    %3797 = vmatprep.mubr.f32.mxu0 0.0
    %3798 = vmatmul.mubr.f32.gmra.mrb[0].mxu0 %v3685
    %v3799 = vpop.f32.mrb[0].mxu0
    %v3800 = vadd.f32 %v383, %v3799
    %v3801 = vpop.f32.mrb[0].mxu0
    %3802 = vmatprep.mubr.f32.mxu0 0.0
    %3803 = vmatmul.mubr.f32.gmra.mrb[0].mxu0 %v3686
    %v3804 = vpop.f32.mrb[0].mxu0
    %v3805 = vadd.f32 %v384, %v3804
    %v3806 = vpop.f32.mrb[0].mxu0
    %3807 = vdwg.mxu0
    %3808 = vadd.xlane.f32.xlu0 %v3770
    %v3809 = vpop.xlane.xlu0 %3808
    %3810 = vadd.xlane.f32.xlu0 %v3775
    %v3811 = vpop.xlane.xlu0 %3810
    %3812 = vadd.xlane.f32.xlu0 %v3780
    %v3813 = vpop.xlane.xlu0 %3812
    %3814 = vadd.xlane.f32.xlu0 %v3785
    %v3815 = vpop.xlane.xlu0 %3814
    %3816 = vadd.xlane.f32.xlu0 %v3790
    %v3817 = vpop.xlane.xlu0 %3816
    %3818 = vadd.xlane.f32.xlu0 %v3795
    %v3819 = vpop.xlane.xlu0 %3818
    %3820 = vadd.xlane.f32.xlu0 %v3800
    %v3821 = vpop.xlane.xlu0 %3820
    %3822 = vadd.xlane.f32.xlu0 %v3805
    %v3823 = vpop.xlane.xlu0 %3822
    %v3824 = vmul.f32 %v3809, 0.03125
    %v3825 = vmul.f32 %v3811, 0.03125
    %v3826 = vmul.f32 %v3813, 0.03125
    %v3827 = vmul.f32 %v3815, 0.03125
    %v3828 = vmul.f32 %v3817, 0.03125
    %v3829 = vmul.f32 %v3819, 0.03125
    %v3830 = vmul.f32 %v3821, 0.03125
    %v3831 = vmul.f32 %v3823, 0.03125
    %v3832 = vsub.f32 %v3770, %v3824
    %v3833 = vsub.f32 %v3775, %v3825
    %v3834 = vsub.f32 %v3780, %v3826
    %v3835 = vsub.f32 %v3785, %v3827
    %v3836 = vsub.f32 %v3790, %v3828
    %v3837 = vsub.f32 %v3795, %v3829
    %v3838 = vsub.f32 %v3800, %v3830
    %v3839 = vsub.f32 %v3805, %v3831
    %v3840 = vsel %vm564, %v3832, 0.0
    %v3841 = vsel %vm564, %v3833, 0.0
    %v3842 = vsel %vm564, %v3834, 0.0
    %v3843 = vsel %vm564, %v3835, 0.0
    %v3844 = vsel %vm564, %v3836, 0.0
    %v3845 = vsel %vm564, %v3837, 0.0
    %v3846 = vsel %vm564, %v3838, 0.0
    %v3847 = vsel %vm564, %v3839, 0.0
    %v3848 = vmul.f32 %v3840, %v3840
    %v3849 = vmul.f32 %v3841, %v3841
    %v3850 = vmul.f32 %v3842, %v3842
    %v3851 = vmul.f32 %v3843, %v3843
    %v3852 = vmul.f32 %v3844, %v3844
    %v3853 = vmul.f32 %v3845, %v3845
    %v3854 = vmul.f32 %v3846, %v3846
    %v3855 = vmul.f32 %v3847, %v3847
    %3856 = vadd.xlane.f32.xlu0 %v3848
    %v3857 = vpop.xlane.xlu0 %3856
    %3858 = vadd.xlane.f32.xlu0 %v3849
    %v3859 = vpop.xlane.xlu0 %3858
    %3860 = vadd.xlane.f32.xlu0 %v3850
    %v3861 = vpop.xlane.xlu0 %3860
    %3862 = vadd.xlane.f32.xlu0 %v3851
    %v3863 = vpop.xlane.xlu0 %3862
    %3864 = vadd.xlane.f32.xlu0 %v3852
    %v3865 = vpop.xlane.xlu0 %3864
    %3866 = vadd.xlane.f32.xlu0 %v3853
    %v3867 = vpop.xlane.xlu0 %3866
    %3868 = vadd.xlane.f32.xlu0 %v3854
    %v3869 = vpop.xlane.xlu0 %3868
    %3870 = vadd.xlane.f32.xlu0 %v3855
    %v3871 = vpop.xlane.xlu0 %3870
    %v3872 = vmul.f32 %v3857, 0.03125
    %v3873 = vmul.f32 %v3859, 0.03125
    %v3874 = vmul.f32 %v3861, 0.03125
    %v3875 = vmul.f32 %v3863, 0.03125
    %v3876 = vmul.f32 %v3865, 0.03125
    %v3877 = vmul.f32 %v3867, 0.03125
    %v3878 = vmul.f32 %v3869, 0.03125
    %v3879 = vmul.f32 %v3871, 0.03125
    %v3880 = vadd.f32 %v3872, 1e-05
    %v3881 = vadd.f32 %v3873, 1e-05
    %v3882 = vadd.f32 %v3874, 1e-05
    %v3883 = vadd.f32 %v3875, 1e-05
    %v3884 = vadd.f32 %v3876, 1e-05
    %v3885 = vadd.f32 %v3877, 1e-05
    %v3886 = vadd.f32 %v3878, 1e-05
    %v3887 = vadd.f32 %v3879, 1e-05
    %v3888 = vrsqrt.pop %v3880
    %v3889 = vrsqrt.pop %v3881
    %v3890 = vrsqrt.pop %v3882
    %v3891 = vrsqrt.pop %v3883
    %v3892 = vrsqrt.pop %v3884
    %v3893 = vrsqrt.pop %v3885
    %v3894 = vrsqrt.pop %v3886
    %v3895 = vrsqrt.pop %v3887
    %v3896 = vmul.f32 %v3840, %v3888
    %v3897 = vmul.f32 %v3841, %v3889
    %v3898 = vmul.f32 %v3842, %v3890
    %v3899 = vmul.f32 %v3843, %v3891
    %v3900 = vmul.f32 %v3844, %v3892
    %v3901 = vmul.f32 %v3845, %v3893
    %v3902 = vmul.f32 %v3846, %v3894
    %v3903 = vmul.f32 %v3847, %v3895
    %v3904 = vld [vmem:[%s10] sm:$0x1]
    %v3906 = vlaneseq
    %v3907 = vshrl.u32 %v3906, 7
    %v3908 = vsub.s32 0, %v3907
    %v3909 = vrot.slane %v3904, %v3908
    %v3911 = vmul.f32 %v3896, %v3909
    %v3912 = vmul.f32 %v3897, %v3909
    %v3913 = vmul.f32 %v3898, %v3909
    %v3914 = vmul.f32 %v3899, %v3909
    %v3915 = vmul.f32 %v3900, %v3909
    %v3916 = vmul.f32 %v3901, %v3909
    %v3917 = vmul.f32 %v3902, %v3909
    %v3918 = vmul.f32 %v3903, %v3909
    %v3919 = vld [vmem:[%s11] sm:$0x1]
    %v3921 = vlaneseq
    %v3922 = vshrl.u32 %v3921, 7
    %v3923 = vsub.s32 0, %v3922
    %v3924 = vrot.slane %v3919, %v3923
    %v3926 = vadd.f32 %v3911, %v3924
    %v3927 = vadd.f32 %v3912, %v3924
    %v3928 = vadd.f32 %v3913, %v3924
    %v3929 = vadd.f32 %v3914, %v3924
    %v3930 = vadd.f32 %v3915, %v3924
    %v3931 = vadd.f32 %v3916, %v3924
    %v3932 = vadd.f32 %v3917, %v3924
    %v3933 = vadd.f32 %v3918, %v3924
    %v3934 = vtanh.pop %v3926
    %v3935 = vtanh.pop %v3927
    %v3936 = vtanh.pop %v3928
    %v3937 = vtanh.pop %v3929
    %v3938 = vtanh.pop %v3930
    %v3939 = vtanh.pop %v3931
    %v3940 = vtanh.pop %v3932
    %v3941 = vtanh.pop %v3933
    %v3942 = vld [vmem:[#allocation5] sm:$0xff]
    %v3943 = vld [vmem:[#allocation5 + $0x8] sm:$0xff]
    %v3944 = vld [vmem:[#allocation5 + $0x10] sm:$0xff]
    %v3945 = vld [vmem:[#allocation5 + $0x18] sm:$0xff]
    %v3946 = vld [vmem:[#allocation5 + $0x20] sm:$0xff]
    %v3947 = vld [vmem:[#allocation5 + $0x28] sm:$0xff]
    %v3948 = vld [vmem:[#allocation5 + $0x30] sm:$0xff]
    %v3949 = vld [vmem:[#allocation5 + $0x38] sm:$0xff]
    %v3950 = vld [vmem:[#allocation5 + $0x40] sm:$0xff]
    %v3951 = vld [vmem:[#allocation5 + $0x48] sm:$0xff]
    %v3952 = vld [vmem:[#allocation5 + $0x50] sm:$0xff]
    %v3953 = vld [vmem:[#allocation5 + $0x58] sm:$0xff]
    %v3954 = vld [vmem:[#allocation5 + $0x60] sm:$0xff]
    %v3955 = vld [vmem:[#allocation5 + $0x68] sm:$0xff]
    %v3956 = vld [vmem:[#allocation5 + $0x70] sm:$0xff]
    %v3957 = vld [vmem:[#allocation5 + $0x78] sm:$0xff]
    %3958 = vmatprep.subr.mxu0 0.0
    %3959 = vmatpush1.msra.mxu0 %v3942
    %3960 = vmatprep.subr.mxu0 0.0
    %3961 = vmatpush1.msra.mxu0 %v3943
    %3962 = vmatprep.subr.mxu0 0.0
    %3963 = vmatpush1.msra.mxu0 %v3944
    %3964 = vmatprep.subr.mxu0 0.0
    %3965 = vmatpush1.msra.mxu0 %v3945
    %3966 = vmatprep.subr.mxu0 0.0
    %3967 = vmatpush1.msra.mxu0 %v3946
    %3968 = vmatprep.subr.mxu0 0.0
    %3969 = vmatpush1.msra.mxu0 %v3947
    %3970 = vmatprep.subr.mxu0 0.0
    %3971 = vmatpush1.msra.mxu0 %v3948
    %3972 = vmatprep.subr.mxu0 0.0
    %3973 = vmatpush1.msra.mxu0 %v3949
    %3974 = vmatprep.subr.mxu0 0.0
    %3975 = vmatpush1.msra.mxu0 %v3950
    %3976 = vmatprep.subr.mxu0 0.0
    %3977 = vmatpush1.msra.mxu0 %v3951
    %3978 = vmatprep.subr.mxu0 0.0
    %3979 = vmatpush1.msra.mxu0 %v3952
    %3980 = vmatprep.subr.mxu0 0.0
    %3981 = vmatpush1.msra.mxu0 %v3953
    %3982 = vmatprep.subr.mxu0 0.0
    %3983 = vmatpush1.msra.mxu0 %v3954
    %3984 = vmatprep.subr.mxu0 0.0
    %3985 = vmatpush1.msra.mxu0 %v3955
    %3986 = vmatprep.subr.mxu0 0.0
    %3987 = vmatpush1.msra.mxu0 %v3956
    %3988 = vmatprep.subr.mxu0 0.0
    %3989 = vmatpush1.msra.mxu0 %v3957
    %3990 = vmatprep.subr.mxu0 0.0
    %3991 = vmatpush1.msra.mxu0 0.0
    %3992 = vmatprep.subr.mxu0 0.0
    %3993 = vmatpush1.msra.mxu0 0.0
    %3994 = vmatprep.subr.mxu0 0.0
    %3995 = vmatpush1.msra.mxu0 0.0
    %3996 = vmatprep.subr.mxu0 0.0
    %3997 = vmatpush1.msra.mxu0 0.0
    %3998 = vmatprep.subr.mxu0 0.0
    %3999 = vmatpush1.msra.mxu0 0.0
    %4000 = vmatprep.subr.mxu0 0.0
    %4001 = vmatpush1.msra.mxu0 0.0
    %4002 = vmatprep.subr.mxu0 0.0
    %4003 = vmatpush1.msra.mxu0 0.0
    %4004 = vmatprep.subr.mxu0 0.0
    %4005 = vmatpush1.msra.mxu0 0.0
    %4006 = vmatprep.subr.mxu0 0.0
    %4007 = vmatpush1.msra.mxu0 0.0
    %4008 = vmatprep.subr.mxu0 0.0
    %4009 = vmatpush1.msra.mxu0 0.0
    %4010 = vmatprep.subr.mxu0 0.0
    %4011 = vmatpush1.msra.mxu0 0.0
    %4012 = vmatprep.subr.mxu0 0.0
    %4013 = vmatpush1.msra.mxu0 0.0
    %4014 = vmatprep.subr.mxu0 0.0
    %4015 = vmatpush1.msra.mxu0 0.0
    %4016 = vmatprep.subr.mxu0 0.0
    %4017 = vmatpush1.msra.mxu0 0.0
    %4018 = vmatprep.subr.mxu0 0.0
    %4019 = vmatpush1.msra.mxu0 0.0
    %4020 = vmatprep.subr.mxu0 0.0
    %4021 = vmatpush1.msra.mxu0 0.0
    %4022 = vmatprep.mubr.f32.mxu0 0.0
    %4023 = vmatmul.mubr.f32.gmra.mrb[0].mxu0 %v3934
    %v4024 = vpop.f32.mrb[0].mxu0
    %v4025 = vadd.f32 0.0, %v4024
    %v4026 = vpop.f32.mrb[0].mxu0
    %4027 = vmatprep.mubr.f32.mxu0 0.0
    %4028 = vmatmul.mubr.f32.gmra.mrb[0].mxu0 %v3935
    %v4029 = vpop.f32.mrb[0].mxu0
    %v4030 = vadd.f32 0.0, %v4029
    %v4031 = vpop.f32.mrb[0].mxu0
    %4032 = vmatprep.mubr.f32.mxu0 0.0
    %4033 = vmatmul.mubr.f32.gmra.mrb[0].mxu0 %v3936
    %v4034 = vpop.f32.mrb[0].mxu0
    %v4035 = vadd.f32 0.0, %v4034
    %v4036 = vpop.f32.mrb[0].mxu0
    %4037 = vmatprep.mubr.f32.mxu0 0.0
    %4038 = vmatmul.mubr.f32.gmra.mrb[0].mxu0 %v3937
    %v4039 = vpop.f32.mrb[0].mxu0
    %v4040 = vadd.f32 0.0, %v4039
    %v4041 = vpop.f32.mrb[0].mxu0
    %4042 = vmatprep.mubr.f32.mxu0 0.0
    %4043 = vmatmul.mubr.f32.gmra.mrb[0].mxu0 %v3938
    %v4044 = vpop.f32.mrb[0].mxu0
    %v4045 = vadd.f32 0.0, %v4044
    %v4046 = vpop.f32.mrb[0].mxu0
    %4047 = vmatprep.mubr.f32.mxu0 0.0
    %4048 = vmatmul.mubr.f32.gmra.mrb[0].mxu0 %v3939
    %v4049 = vpop.f32.mrb[0].mxu0
    %v4050 = vadd.f32 0.0, %v4049
    %v4051 = vpop.f32.mrb[0].mxu0
    %4052 = vmatprep.mubr.f32.mxu0 0.0
    %4053 = vmatmul.mubr.f32.gmra.mrb[0].mxu0 %v3940
    %v4054 = vpop.f32.mrb[0].mxu0
    %v4055 = vadd.f32 0.0, %v4054
    %v4056 = vpop.f32.mrb[0].mxu0
    %4057 = vmatprep.mubr.f32.mxu0 0.0
    %4058 = vmatmul.mubr.f32.gmra.mrb[0].mxu0 %v3941
    %v4059 = vpop.f32.mrb[0].mxu0
    %v4060 = vadd.f32 0.0, %v4059
    %v4061 = vpop.f32.mrb[0].mxu0
    %4062 = vdwg.mxu0
    %v4063 = vmul.f32 %v791, %v4025
    %v4064 = vmul.f32 %v796, %v4030
    %v4065 = vmul.f32 %v801, %v4035
    %v4066 = vmul.f32 %v806, %v4040
    %v4067 = vmul.f32 %v811, %v4045
    %v4068 = vmul.f32 %v816, %v4050
    %v4069 = vmul.f32 %v821, %v4055
    %v4070 = vmul.f32 %v826, %v4060
    %v4071 = vpack.c.bf16 %v4064, %v4063
    %v4072 = vpack.c.bf16 %v4066, %v4065
    %v4073 = vpack.c.bf16 %v4068, %v4067
    %v4074 = vpack.c.bf16 %v4070, %v4069
    %v4075 = vld [vmem:[%s2] sm:$0xf]
    %v4076 = vld [vmem:[%s2 + $0x4] sm:$0xf]
    %v4077 = vld [vmem:[%s2 + $0x8] sm:$0xf]
    %v4078 = vld [vmem:[%s2 + $0xc] sm:$0xf]
    %v4079 = vld [vmem:[%s2 + $0x10] sm:$0xf]
    %v4080 = vld [vmem:[%s2 + $0x14] sm:$0xf]
    %v4081 = vld [vmem:[%s2 + $0x18] sm:$0xf]
    %v4082 = vld [vmem:[%s2 + $0x1c] sm:$0xf]
    %v4091 = vunpack.c.l.b16 %v4075
    %v4092 = vunpack.c.l.b16 %v4076
    %v4093 = vunpack.c.l.b16 %v4077
    %v4094 = vunpack.c.l.b16 %v4078
    %v4095 = vunpack.c.l.b16 %v4079
    %v4096 = vunpack.c.l.b16 %v4080
    %v4097 = vunpack.c.l.b16 %v4081
    %v4098 = vunpack.c.l.b16 %v4082
    %v4099 = vpack.c.b16 %v4092, %v4091
    %v4100 = vpack.c.b16 %v4094, %v4093
    %v4101 = vpack.c.b16 %v4096, %v4095
    %v4102 = vpack.c.b16 %v4098, %v4097
    %v4104 = vsel %vm868, %v4099, 0
    %v4107 = vsel %vm868, %v4100, 0
    %v4110 = vsel %vm868, %v4101, 0
    %v4113 = vsel %vm868, %v4102, 0
    %4115 = vmatprep.subr.bf16.mxu0 0
    %4116 = vmatpush1.bf16.msra.mxu0 %v4071
    %4117 = vmatprep.subr.bf16.mxu0 0
    %4118 = vmatpush1.bf16.msra.mxu0 %v4072
    %4119 = vmatprep.subr.bf16.mxu0 0
    %4120 = vmatpush1.bf16.msra.mxu0 %v4073
    %4121 = vmatprep.subr.bf16.mxu0 0
    %4122 = vmatpush1.bf16.msra.mxu0 %v4074
    %4123 = vmatprep.subr.bf16.mxu0 0
    %4124 = vmatpush1.bf16.msra.mxu0 0
    %4125 = vmatprep.subr.bf16.mxu0 0
    %4126 = vmatpush1.bf16.msra.mxu0 0
    %4127 = vmatprep.subr.bf16.mxu0 0
    %4128 = vmatpush1.bf16.msra.mxu0 0
    %4129 = vmatprep.subr.bf16.mxu0 0
    %4130 = vmatpush1.bf16.msra.mxu0 0
    %4131 = vmatprep.subr.bf16.mxu0 0
    %4132 = vmatpush1.bf16.msra.mxu0 0
    %4133 = vmatprep.subr.bf16.mxu0 0
    %4134 = vmatpush1.bf16.msra.mxu0 0
    %4135 = vmatprep.subr.bf16.mxu0 0
    %4136 = vmatpush1.bf16.msra.mxu0 0
    %4137 = vmatprep.subr.bf16.mxu0 0
    %4138 = vmatpush1.bf16.msra.mxu0 0
    %4139 = vmatprep.subr.bf16.mxu0 0
    %4140 = vmatpush1.bf16.msra.mxu0 0
    %4141 = vmatprep.subr.bf16.mxu0 0
    %4142 = vmatpush1.bf16.msra.mxu0 0
    %4143 = vmatprep.subr.bf16.mxu0 0
    %4144 = vmatpush1.bf16.msra.mxu0 0
    %4145 = vmatprep.subr.bf16.mxu0 0
    %4146 = vmatpush1.bf16.msra.mxu0 0
    %4147 = vmatprep.mubr.bf16.mxu0 0
    %4148 = vmatmul.mubr.bf16.gmra.mrb[0].mxu0 %v4104
    %v4149 = vpop.f32.mrb[0].mxu0
    %v4150 = vadd.f32 0.0, %v4149
    %v4151 = vpop.f32.mrb[0].mxu0
    %v4152 = vpop.f32.mrb[0].mxu0
    %v4153 = vadd.f32 0.0, %v4152
    %v4154 = vpop.f32.mrb[0].mxu0
    %4155 = vmatprep.mubr.bf16.mxu0 0
    %4156 = vmatmul.mubr.bf16.gmra.mrb[0].mxu0 %v4107
    %v4157 = vpop.f32.mrb[0].mxu0
    %v4158 = vadd.f32 0.0, %v4157
    %v4159 = vpop.f32.mrb[0].mxu0
    %v4160 = vpop.f32.mrb[0].mxu0
    %v4161 = vadd.f32 0.0, %v4160
    %v4162 = vpop.f32.mrb[0].mxu0
    %4163 = vmatprep.mubr.bf16.mxu0 0
    %4164 = vmatmul.mubr.bf16.gmra.mrb[0].mxu0 %v4110
    %v4165 = vpop.f32.mrb[0].mxu0
    %v4166 = vadd.f32 0.0, %v4165
    %v4167 = vpop.f32.mrb[0].mxu0
    %v4168 = vpop.f32.mrb[0].mxu0
    %v4169 = vadd.f32 0.0, %v4168
    %v4170 = vpop.f32.mrb[0].mxu0
    %4171 = vmatprep.mubr.bf16.mxu0 0
    %4172 = vmatmul.mubr.bf16.gmra.mrb[0].mxu0 %v4113
    %v4173 = vpop.f32.mrb[0].mxu0
    %v4174 = vadd.f32 0.0, %v4173
    %v4175 = vpop.f32.mrb[0].mxu0
    %v4176 = vpop.f32.mrb[0].mxu0
    %v4177 = vadd.f32 0.0, %v4176
    %v4178 = vpop.f32.mrb[0].mxu0
    %4179 = vdwg.mxu0
    %v4180 = vmul.f32 %v3671, 0.5
    %v4181 = vmul.f32 %v3672, 0.5
    %v4182 = vmul.f32 %v3673, 0.5
    %v4183 = vmul.f32 %v3674, 0.5
    %v4184 = vmul.f32 %v3675, 0.5
    %v4185 = vmul.f32 %v3676, 0.5
    %v4186 = vmul.f32 %v3677, 0.5
    %v4187 = vmul.f32 %v3678, 0.5
    %v4188 = vmul.f32 %v4150, 0.5
    %v4189 = vmul.f32 %v4153, 0.5
    %v4190 = vmul.f32 %v4158, 0.5
    %v4191 = vmul.f32 %v4161, 0.5
    %v4192 = vmul.f32 %v4166, 0.5
    %v4193 = vmul.f32 %v4169, 0.5
    %v4194 = vmul.f32 %v4174, 0.5
    %v4195 = vmul.f32 %v4177, 0.5
    %v4196 = vadd.f32 %v4180, %v4188
    %v4197 = vadd.f32 %v4181, %v4189
    %v4198 = vadd.f32 %v4182, %v4190
    %v4199 = vadd.f32 %v4183, %v4191
    %v4200 = vadd.f32 %v4184, %v4192
    %v4201 = vadd.f32 %v4185, %v4193
    %v4202 = vadd.f32 %v4186, %v4194
    %v4203 = vadd.f32 %v4187, %v4195
    %4204 = vst [vmem:[#allocation8] sm:$0xff] %v4196
    %4205 = vst [vmem:[#allocation8 + $0x8] sm:$0xff] %v4197
    %4206 = vst [vmem:[#allocation8 + $0x10] sm:$0xff] %v4198
    %4207 = vst [vmem:[#allocation8 + $0x18] sm:$0xff] %v4199
    %4208 = vst [vmem:[#allocation8 + $0x20] sm:$0xff] %v4200
    %4209 = vst [vmem:[#allocation8 + $0x28] sm:$0xff] %v4201
    %4210 = vst [vmem:[#allocation8 + $0x30] sm:$0xff] %v4202
    %4211 = vst [vmem:[#allocation8 + $0x38] sm:$0xff] %v4203
    %v4212 = vld [vmem:[#allocation8] sm:$0xff]
    %v4213 = vld [vmem:[#allocation8 + $0x8] sm:$0xff]
    %v4214 = vld [vmem:[#allocation8 + $0x10] sm:$0xff]
    %v4215 = vld [vmem:[#allocation8 + $0x18] sm:$0xff]
    %v4216 = vld [vmem:[#allocation8 + $0x20] sm:$0xff]
    %v4217 = vld [vmem:[#allocation8 + $0x28] sm:$0xff]
    %v4218 = vld [vmem:[#allocation8 + $0x30] sm:$0xff]
    %v4219 = vld [vmem:[#allocation8 + $0x38] sm:$0xff]
    %v4220 = vmul.f32 %v791, %v4212
    %v4221 = vmul.f32 %v796, %v4213
    %v4222 = vmul.f32 %v801, %v4214
    %v4223 = vmul.f32 %v806, %v4215
    %v4224 = vmul.f32 %v811, %v4216
    %v4225 = vmul.f32 %v816, %v4217
    %v4226 = vmul.f32 %v821, %v4218
    %v4227 = vmul.f32 %v826, %v4219
    %v4228 = vld [vmem:[%s978] sm:$0xff]
    %v4229 = vld [vmem:[%s978 + $0x8] sm:$0xff]
    %v4230 = vld [vmem:[%s978 + $0x10] sm:$0xff]
    %v4231 = vld [vmem:[%s978 + $0x18] sm:$0xff]
    %v4232 = vld [vmem:[%s978 + $0x20] sm:$0xff]
    %v4233 = vld [vmem:[%s978 + $0x28] sm:$0xff]
    %v4234 = vld [vmem:[%s978 + $0x30] sm:$0xff]
    %v4235 = vld [vmem:[%s978 + $0x38] sm:$0xff]
    %v4236 = vld [vmem:[%s978 + $0x40] sm:$0xff]
    %v4237 = vld [vmem:[%s978 + $0x48] sm:$0xff]
    %v4238 = vld [vmem:[%s978 + $0x50] sm:$0xff]
    %v4239 = vld [vmem:[%s978 + $0x58] sm:$0xff]
    %v4240 = vld [vmem:[%s978 + $0x60] sm:$0xff]
    %v4241 = vld [vmem:[%s978 + $0x68] sm:$0xff]
    %v4242 = vld [vmem:[%s978 + $0x70] sm:$0xff]
    %v4243 = vld [vmem:[%s978 + $0x78] sm:$0xff]
    %4244 = vmatprep.subr.mxu0 0.0
    %4245 = vmatpush1.msra.mxu0 %v4228
    %4246 = vmatprep.subr.mxu0 0.0
    %4247 = vmatpush1.msra.mxu0 %v4229
    %4248 = vmatprep.subr.mxu0 0.0
    %4249 = vmatpush1.msra.mxu0 %v4230
    %4250 = vmatprep.subr.mxu0 0.0
    %4251 = vmatpush1.msra.mxu0 %v4231
    %4252 = vmatprep.subr.mxu0 0.0
    %4253 = vmatpush1.msra.mxu0 %v4232
    %4254 = vmatprep.subr.mxu0 0.0
    %4255 = vmatpush1.msra.mxu0 %v4233
    %4256 = vmatprep.subr.mxu0 0.0
    %4257 = vmatpush1.msra.mxu0 %v4234
    %4258 = vmatprep.subr.mxu0 0.0
    %4259 = vmatpush1.msra.mxu0 %v4235
    %4260 = vmatprep.subr.mxu0 0.0
    %4261 = vmatpush1.msra.mxu0 %v4236
    %4262 = vmatprep.subr.mxu0 0.0
    %4263 = vmatpush1.msra.mxu0 %v4237
    %4264 = vmatprep.subr.mxu0 0.0
    %4265 = vmatpush1.msra.mxu0 %v4238
    %4266 = vmatprep.subr.mxu0 0.0
    %4267 = vmatpush1.msra.mxu0 %v4239
    %4268 = vmatprep.subr.mxu0 0.0
    %4269 = vmatpush1.msra.mxu0 %v4240
    %4270 = vmatprep.subr.mxu0 0.0
    %4271 = vmatpush1.msra.mxu0 %v4241
    %4272 = vmatprep.subr.mxu0 0.0
    %4273 = vmatpush1.msra.mxu0 %v4242
    %4274 = vmatprep.subr.mxu0 0.0
    %4275 = vmatpush1.msra.mxu0 %v4243
    %4276 = vmatprep.subr.mxu0 0.0
    %4277 = vmatpush1.msra.mxu0 0.0
    %4278 = vmatprep.subr.mxu0 0.0
    %4279 = vmatpush1.msra.mxu0 0.0
    %4280 = vmatprep.subr.mxu0 0.0
    %4281 = vmatpush1.msra.mxu0 0.0
    %4282 = vmatprep.subr.mxu0 0.0
    %4283 = vmatpush1.msra.mxu0 0.0
    %4284 = vmatprep.subr.mxu0 0.0
    %4285 = vmatpush1.msra.mxu0 0.0
    %4286 = vmatprep.subr.mxu0 0.0
    %4287 = vmatpush1.msra.mxu0 0.0
    %4288 = vmatprep.subr.mxu0 0.0
    %4289 = vmatpush1.msra.mxu0 0.0
    %4290 = vmatprep.subr.mxu0 0.0
    %4291 = vmatpush1.msra.mxu0 0.0
    %4292 = vmatprep.subr.mxu0 0.0
    %4293 = vmatpush1.msra.mxu0 0.0
    %4294 = vmatprep.subr.mxu0 0.0
    %4295 = vmatpush1.msra.mxu0 0.0
    %4296 = vmatprep.subr.mxu0 0.0
    %4297 = vmatpush1.msra.mxu0 0.0
    %4298 = vmatprep.subr.mxu0 0.0
    %4299 = vmatpush1.msra.mxu0 0.0
    %4300 = vmatprep.subr.mxu0 0.0
    %4301 = vmatpush1.msra.mxu0 0.0
    %4302 = vmatprep.subr.mxu0 0.0
    %4303 = vmatpush1.msra.mxu0 0.0
    %4304 = vmatprep.subr.mxu0 0.0
    %4305 = vmatpush1.msra.mxu0 0.0
    %4306 = vmatprep.subr.mxu0 0.0
    %4307 = vmatpush1.msra.mxu0 0.0
    %4308 = vmatprep.mubr.f32.mxu0 0.0
    %4309 = vmatmul.mubr.f32.gmra.mrb[0].mxu0 %v4220
    %v4310 = vpop.f32.mrb[0].mxu0
    %v4311 = vadd.f32 %v523, %v4310
    %v4312 = vpop.f32.mrb[0].mxu0
    %4313 = vmatprep.mubr.f32.mxu0 0.0
    %4314 = vmatmul.mubr.f32.gmra.mrb[0].mxu0 %v4221
    %v4315 = vpop.f32.mrb[0].mxu0
    %v4316 = vadd.f32 %v524, %v4315
    %v4317 = vpop.f32.mrb[0].mxu0
    %4318 = vmatprep.mubr.f32.mxu0 0.0
    %4319 = vmatmul.mubr.f32.gmra.mrb[0].mxu0 %v4222
    %v4320 = vpop.f32.mrb[0].mxu0
    %v4321 = vadd.f32 %v525, %v4320
    %v4322 = vpop.f32.mrb[0].mxu0
    %4323 = vmatprep.mubr.f32.mxu0 0.0
    %4324 = vmatmul.mubr.f32.gmra.mrb[0].mxu0 %v4223
    %v4325 = vpop.f32.mrb[0].mxu0
    %v4326 = vadd.f32 %v526, %v4325
    %v4327 = vpop.f32.mrb[0].mxu0
    %4328 = vmatprep.mubr.f32.mxu0 0.0
    %4329 = vmatmul.mubr.f32.gmra.mrb[0].mxu0 %v4224
    %v4330 = vpop.f32.mrb[0].mxu0
    %v4331 = vadd.f32 %v527, %v4330
    %v4332 = vpop.f32.mrb[0].mxu0
    %4333 = vmatprep.mubr.f32.mxu0 0.0
    %4334 = vmatmul.mubr.f32.gmra.mrb[0].mxu0 %v4225
    %v4335 = vpop.f32.mrb[0].mxu0
    %v4336 = vadd.f32 %v528, %v4335
    %v4337 = vpop.f32.mrb[0].mxu0
    %4338 = vmatprep.mubr.f32.mxu0 0.0
    %4339 = vmatmul.mubr.f32.gmra.mrb[0].mxu0 %v4226
    %v4340 = vpop.f32.mrb[0].mxu0
    %v4341 = vadd.f32 %v529, %v4340
    %v4342 = vpop.f32.mrb[0].mxu0
    %4343 = vmatprep.mubr.f32.mxu0 0.0
    %4344 = vmatmul.mubr.f32.gmra.mrb[0].mxu0 %v4227
    %v4345 = vpop.f32.mrb[0].mxu0
    %v4346 = vadd.f32 %v530, %v4345
    %v4347 = vpop.f32.mrb[0].mxu0
    %4348 = vdwg.mxu0
    %4349 = vadd.xlane.f32.xlu0 %v4311
    %v4350 = vpop.xlane.xlu0 %4349
    %4351 = vadd.xlane.f32.xlu0 %v4316
    %v4352 = vpop.xlane.xlu0 %4351
    %4353 = vadd.xlane.f32.xlu0 %v4321
    %v4354 = vpop.xlane.xlu0 %4353
    %4355 = vadd.xlane.f32.xlu0 %v4326
    %v4356 = vpop.xlane.xlu0 %4355
    %4357 = vadd.xlane.f32.xlu0 %v4331
    %v4358 = vpop.xlane.xlu0 %4357
    %4359 = vadd.xlane.f32.xlu0 %v4336
    %v4360 = vpop.xlane.xlu0 %4359
    %4361 = vadd.xlane.f32.xlu0 %v4341
    %v4362 = vpop.xlane.xlu0 %4361
    %4363 = vadd.xlane.f32.xlu0 %v4346
    %v4364 = vpop.xlane.xlu0 %4363
    %v4365 = vmul.f32 %v4350, 0.03125
    %v4366 = vmul.f32 %v4352, 0.03125
    %v4367 = vmul.f32 %v4354, 0.03125
    %v4368 = vmul.f32 %v4356, 0.03125
    %v4369 = vmul.f32 %v4358, 0.03125
    %v4370 = vmul.f32 %v4360, 0.03125
    %v4371 = vmul.f32 %v4362, 0.03125
    %v4372 = vmul.f32 %v4364, 0.03125
    %v4373 = vsub.f32 %v4311, %v4365
    %v4374 = vsub.f32 %v4316, %v4366
    %v4375 = vsub.f32 %v4321, %v4367
    %v4376 = vsub.f32 %v4326, %v4368
    %v4377 = vsub.f32 %v4331, %v4369
    %v4378 = vsub.f32 %v4336, %v4370
    %v4379 = vsub.f32 %v4341, %v4371
    %v4380 = vsub.f32 %v4346, %v4372
    %v4381 = vsel %vm564, %v4373, 0.0
    %v4382 = vsel %vm564, %v4374, 0.0
    %v4383 = vsel %vm564, %v4375, 0.0
    %v4384 = vsel %vm564, %v4376, 0.0
    %v4385 = vsel %vm564, %v4377, 0.0
    %v4386 = vsel %vm564, %v4378, 0.0
    %v4387 = vsel %vm564, %v4379, 0.0
    %v4388 = vsel %vm564, %v4380, 0.0
    %v4389 = vmul.f32 %v4381, %v4381
    %v4390 = vmul.f32 %v4382, %v4382
    %v4391 = vmul.f32 %v4383, %v4383
    %v4392 = vmul.f32 %v4384, %v4384
    %v4393 = vmul.f32 %v4385, %v4385
    %v4394 = vmul.f32 %v4386, %v4386
    %v4395 = vmul.f32 %v4387, %v4387
    %v4396 = vmul.f32 %v4388, %v4388
    %4397 = vadd.xlane.f32.xlu0 %v4389
    %v4398 = vpop.xlane.xlu0 %4397
    %4399 = vadd.xlane.f32.xlu0 %v4390
    %v4400 = vpop.xlane.xlu0 %4399
    %4401 = vadd.xlane.f32.xlu0 %v4391
    %v4402 = vpop.xlane.xlu0 %4401
    %4403 = vadd.xlane.f32.xlu0 %v4392
    %v4404 = vpop.xlane.xlu0 %4403
    %4405 = vadd.xlane.f32.xlu0 %v4393
    %v4406 = vpop.xlane.xlu0 %4405
    %4407 = vadd.xlane.f32.xlu0 %v4394
    %v4408 = vpop.xlane.xlu0 %4407
    %4409 = vadd.xlane.f32.xlu0 %v4395
    %v4410 = vpop.xlane.xlu0 %4409
    %4411 = vadd.xlane.f32.xlu0 %v4396
    %v4412 = vpop.xlane.xlu0 %4411
    %v4413 = vmul.f32 %v4398, 0.03125
    %v4414 = vmul.f32 %v4400, 0.03125
    %v4415 = vmul.f32 %v4402, 0.03125
    %v4416 = vmul.f32 %v4404, 0.03125
    %v4417 = vmul.f32 %v4406, 0.03125
    %v4418 = vmul.f32 %v4408, 0.03125
    %v4419 = vmul.f32 %v4410, 0.03125
    %v4420 = vmul.f32 %v4412, 0.03125
    %v4421 = vadd.f32 %v4413, 1e-05
    %v4422 = vadd.f32 %v4414, 1e-05
    %v4423 = vadd.f32 %v4415, 1e-05
    %v4424 = vadd.f32 %v4416, 1e-05
    %v4425 = vadd.f32 %v4417, 1e-05
    %v4426 = vadd.f32 %v4418, 1e-05
    %v4427 = vadd.f32 %v4419, 1e-05
    %v4428 = vadd.f32 %v4420, 1e-05
    %v4429 = vrsqrt.pop %v4421
    %v4430 = vrsqrt.pop %v4422
    %v4431 = vrsqrt.pop %v4423
    %v4432 = vrsqrt.pop %v4424
    %v4433 = vrsqrt.pop %v4425
    %v4434 = vrsqrt.pop %v4426
    %v4435 = vrsqrt.pop %v4427
    %v4436 = vrsqrt.pop %v4428
    %v4437 = vmul.f32 %v4381, %v4429
    %v4438 = vmul.f32 %v4382, %v4430
    %v4439 = vmul.f32 %v4383, %v4431
    %v4440 = vmul.f32 %v4384, %v4432
    %v4441 = vmul.f32 %v4385, %v4433
    %v4442 = vmul.f32 %v4386, %v4434
    %v4443 = vmul.f32 %v4387, %v4435
    %v4444 = vmul.f32 %v4388, %v4436
    %v4445 = vld [vmem:[%s1196] sm:$0x1]
    %v4447 = vlaneseq
    %v4448 = vshrl.u32 %v4447, 7
    %v4449 = vsub.s32 0, %v4448
    %v4450 = vrot.slane %v4445, %v4449
    %v4452 = vmul.f32 %v4437, %v4450
    %v4453 = vmul.f32 %v4438, %v4450
    %v4454 = vmul.f32 %v4439, %v4450
    %v4455 = vmul.f32 %v4440, %v4450
    %v4456 = vmul.f32 %v4441, %v4450
    %v4457 = vmul.f32 %v4442, %v4450
    %v4458 = vmul.f32 %v4443, %v4450
    %v4459 = vmul.f32 %v4444, %v4450
    %v4460 = vld [vmem:[%s1212] sm:$0x1]
    %v4462 = vlaneseq
    %v4463 = vshrl.u32 %v4462, 7
    %v4464 = vsub.s32 0, %v4463
    %v4465 = vrot.slane %v4460, %v4464
    %v4467 = vadd.f32 %v4452, %v4465
    %v4468 = vadd.f32 %v4453, %v4465
    %v4469 = vadd.f32 %v4454, %v4465
    %v4470 = vadd.f32 %v4455, %v4465
    %v4471 = vadd.f32 %v4456, %v4465
    %v4472 = vadd.f32 %v4457, %v4465
    %v4473 = vadd.f32 %v4458, %v4465
    %v4474 = vadd.f32 %v4459, %v4465
    %v4475 = vtanh.pop %v4467
    %v4476 = vtanh.pop %v4468
    %v4477 = vtanh.pop %v4469
    %v4478 = vtanh.pop %v4470
    %v4479 = vtanh.pop %v4471
    %v4480 = vtanh.pop %v4472
    %v4481 = vtanh.pop %v4473
    %v4482 = vtanh.pop %v4474
    %v4483 = vld [vmem:[%s1236] sm:$0xff]
    %v4484 = vld [vmem:[%s1236 + $0x8] sm:$0xff]
    %v4485 = vld [vmem:[%s1236 + $0x10] sm:$0xff]
    %v4486 = vld [vmem:[%s1236 + $0x18] sm:$0xff]
    %v4487 = vld [vmem:[%s1236 + $0x20] sm:$0xff]
    %v4488 = vld [vmem:[%s1236 + $0x28] sm:$0xff]
    %v4489 = vld [vmem:[%s1236 + $0x30] sm:$0xff]
    %v4490 = vld [vmem:[%s1236 + $0x38] sm:$0xff]
    %v4491 = vld [vmem:[%s1236 + $0x40] sm:$0xff]
    %v4492 = vld [vmem:[%s1236 + $0x48] sm:$0xff]
    %v4493 = vld [vmem:[%s1236 + $0x50] sm:$0xff]
    %v4494 = vld [vmem:[%s1236 + $0x58] sm:$0xff]
    %v4495 = vld [vmem:[%s1236 + $0x60] sm:$0xff]
    %v4496 = vld [vmem:[%s1236 + $0x68] sm:$0xff]
    %v4497 = vld [vmem:[%s1236 + $0x70] sm:$0xff]
    %v4498 = vld [vmem:[%s1236 + $0x78] sm:$0xff]
    %4499 = vmatprep.subr.mxu0 0.0
    %4500 = vmatpush1.msra.mxu0 %v4483
    %4501 = vmatprep.subr.mxu0 0.0
    %4502 = vmatpush1.msra.mxu0 %v4484
    %4503 = vmatprep.subr.mxu0 0.0
    %4504 = vmatpush1.msra.mxu0 %v4485
    %4505 = vmatprep.subr.mxu0 0.0
    %4506 = vmatpush1.msra.mxu0 %v4486
    %4507 = vmatprep.subr.mxu0 0.0
    %4508 = vmatpush1.msra.mxu0 %v4487
    %4509 = vmatprep.subr.mxu0 0.0
    %4510 = vmatpush1.msra.mxu0 %v4488
    %4511 = vmatprep.subr.mxu0 0.0
    %4512 = vmatpush1.msra.mxu0 %v4489
    %4513 = vmatprep.subr.mxu0 0.0
    %4514 = vmatpush1.msra.mxu0 %v4490
    %4515 = vmatprep.subr.mxu0 0.0
    %4516 = vmatpush1.msra.mxu0 %v4491
    %4517 = vmatprep.subr.mxu0 0.0
    %4518 = vmatpush1.msra.mxu0 %v4492
    %4519 = vmatprep.subr.mxu0 0.0
    %4520 = vmatpush1.msra.mxu0 %v4493
    %4521 = vmatprep.subr.mxu0 0.0
    %4522 = vmatpush1.msra.mxu0 %v4494
    %4523 = vmatprep.subr.mxu0 0.0
    %4524 = vmatpush1.msra.mxu0 %v4495
    %4525 = vmatprep.subr.mxu0 0.0
    %4526 = vmatpush1.msra.mxu0 %v4496
    %4527 = vmatprep.subr.mxu0 0.0
    %4528 = vmatpush1.msra.mxu0 %v4497
    %4529 = vmatprep.subr.mxu0 0.0
    %4530 = vmatpush1.msra.mxu0 %v4498
    %4531 = vmatprep.subr.mxu0 0.0
    %4532 = vmatpush1.msra.mxu0 0.0
    %4533 = vmatprep.subr.mxu0 0.0
    %4534 = vmatpush1.msra.mxu0 0.0
    %4535 = vmatprep.subr.mxu0 0.0
    %4536 = vmatpush1.msra.mxu0 0.0
    %4537 = vmatprep.subr.mxu0 0.0
    %4538 = vmatpush1.msra.mxu0 0.0
    %4539 = vmatprep.subr.mxu0 0.0
    %4540 = vmatpush1.msra.mxu0 0.0
    %4541 = vmatprep.subr.mxu0 0.0
    %4542 = vmatpush1.msra.mxu0 0.0
    %4543 = vmatprep.subr.mxu0 0.0
    %4544 = vmatpush1.msra.mxu0 0.0
    %4545 = vmatprep.subr.mxu0 0.0
    %4546 = vmatpush1.msra.mxu0 0.0
    %4547 = vmatprep.subr.mxu0 0.0
    %4548 = vmatpush1.msra.mxu0 0.0
    %4549 = vmatprep.subr.mxu0 0.0
    %4550 = vmatpush1.msra.mxu0 0.0
    %4551 = vmatprep.subr.mxu0 0.0
    %4552 = vmatpush1.msra.mxu0 0.0
    %4553 = vmatprep.subr.mxu0 0.0
    %4554 = vmatpush1.msra.mxu0 0.0
    %4555 = vmatprep.subr.mxu0 0.0
    %4556 = vmatpush1.msra.mxu0 0.0
    %4557 = vmatprep.subr.mxu0 0.0
    %4558 = vmatpush1.msra.mxu0 0.0
    %4559 = vmatprep.subr.mxu0 0.0
    %4560 = vmatpush1.msra.mxu0 0.0
    %4561 = vmatprep.subr.mxu0 0.0
    %4562 = vmatpush1.msra.mxu0 0.0
    %4563 = vmatprep.mubr.f32.mxu0 0.0
    %4564 = vmatmul.mubr.f32.gmra.mrb[0].mxu0 %v4475
    %v4565 = vpop.f32.mrb[0].mxu0
    %v4566 = vadd.f32 0.0, %v4565
    %v4567 = vpop.f32.mrb[0].mxu0
    %4568 = vmatprep.mubr.f32.mxu0 0.0
    %4569 = vmatmul.mubr.f32.gmra.mrb[0].mxu0 %v4476
    %v4570 = vpop.f32.mrb[0].mxu0
    %v4571 = vadd.f32 0.0, %v4570
    %v4572 = vpop.f32.mrb[0].mxu0
    %4573 = vmatprep.mubr.f32.mxu0 0.0
    %4574 = vmatmul.mubr.f32.gmra.mrb[0].mxu0 %v4477
    %v4575 = vpop.f32.mrb[0].mxu0
    %v4576 = vadd.f32 0.0, %v4575
    %v4577 = vpop.f32.mrb[0].mxu0
    %4578 = vmatprep.mubr.f32.mxu0 0.0
    %4579 = vmatmul.mubr.f32.gmra.mrb[0].mxu0 %v4478
    %v4580 = vpop.f32.mrb[0].mxu0
    %v4581 = vadd.f32 0.0, %v4580
    %v4582 = vpop.f32.mrb[0].mxu0
    %4583 = vmatprep.mubr.f32.mxu0 0.0
    %4584 = vmatmul.mubr.f32.gmra.mrb[0].mxu0 %v4479
    %v4585 = vpop.f32.mrb[0].mxu0
    %v4586 = vadd.f32 0.0, %v4585
    %v4587 = vpop.f32.mrb[0].mxu0
    %4588 = vmatprep.mubr.f32.mxu0 0.0
    %4589 = vmatmul.mubr.f32.gmra.mrb[0].mxu0 %v4480
    %v4590 = vpop.f32.mrb[0].mxu0
    %v4591 = vadd.f32 0.0, %v4590
    %v4592 = vpop.f32.mrb[0].mxu0
    %4593 = vmatprep.mubr.f32.mxu0 0.0
    %4594 = vmatmul.mubr.f32.gmra.mrb[0].mxu0 %v4481
    %v4595 = vpop.f32.mrb[0].mxu0
    %v4596 = vadd.f32 0.0, %v4595
    %v4597 = vpop.f32.mrb[0].mxu0
    %4598 = vmatprep.mubr.f32.mxu0 0.0
    %4599 = vmatmul.mubr.f32.gmra.mrb[0].mxu0 %v4482
    %v4600 = vpop.f32.mrb[0].mxu0
    %v4601 = vadd.f32 0.0, %v4600
    %v4602 = vpop.f32.mrb[0].mxu0
    %4603 = vdwg.mxu0
    %v4604 = vmul.f32 %v791, %v4566
    %v4605 = vmul.f32 %v796, %v4571
    %v4606 = vmul.f32 %v801, %v4576
    %v4607 = vmul.f32 %v806, %v4581
    %v4608 = vmul.f32 %v811, %v4586
    %v4609 = vmul.f32 %v816, %v4591
    %v4610 = vmul.f32 %v821, %v4596
    %v4611 = vmul.f32 %v826, %v4601
    %v4612 = vpack.c.bf16 %v4605, %v4604
    %v4613 = vpack.c.bf16 %v4607, %v4606
    %v4614 = vpack.c.bf16 %v4609, %v4608
    %v4615 = vpack.c.bf16 %v4611, %v4610
    %v4616 = vld [vmem:[%s2] sm:$0xf]
    %v4617 = vld [vmem:[%s2 + $0x4] sm:$0xf]
    %v4618 = vld [vmem:[%s2 + $0x8] sm:$0xf]
    %v4619 = vld [vmem:[%s2 + $0xc] sm:$0xf]
    %v4620 = vld [vmem:[%s2 + $0x10] sm:$0xf]
    %v4621 = vld [vmem:[%s2 + $0x14] sm:$0xf]
    %v4622 = vld [vmem:[%s2 + $0x18] sm:$0xf]
    %v4623 = vld [vmem:[%s2 + $0x1c] sm:$0xf]
    %v4632 = vunpack.c.l.b16 %v4616
    %v4633 = vunpack.c.l.b16 %v4617
    %v4634 = vunpack.c.l.b16 %v4618
    %v4635 = vunpack.c.l.b16 %v4619
    %v4636 = vunpack.c.l.b16 %v4620
    %v4637 = vunpack.c.l.b16 %v4621
    %v4638 = vunpack.c.l.b16 %v4622
    %v4639 = vunpack.c.l.b16 %v4623
    %v4640 = vpack.c.b16 %v4633, %v4632
    %v4641 = vpack.c.b16 %v4635, %v4634
    %v4642 = vpack.c.b16 %v4637, %v4636
    %v4643 = vpack.c.b16 %v4639, %v4638
    %v4645 = vsel %vm868, %v4640, 0
    %v4648 = vsel %vm868, %v4641, 0
    %v4651 = vsel %vm868, %v4642, 0
    %v4654 = vsel %vm868, %v4643, 0
    %4656 = vmatprep.subr.bf16.mxu0 0
    %4657 = vmatpush1.bf16.msra.mxu0 %v4612
    %4658 = vmatprep.subr.bf16.mxu0 0
    %4659 = vmatpush1.bf16.msra.mxu0 %v4613
    %4660 = vmatprep.subr.bf16.mxu0 0
    %4661 = vmatpush1.bf16.msra.mxu0 %v4614
    %4662 = vmatprep.subr.bf16.mxu0 0
    %4663 = vmatpush1.bf16.msra.mxu0 %v4615
    %4664 = vmatprep.subr.bf16.mxu0 0
    %4665 = vmatpush1.bf16.msra.mxu0 0
    %4666 = vmatprep.subr.bf16.mxu0 0
    %4667 = vmatpush1.bf16.msra.mxu0 0
    %4668 = vmatprep.subr.bf16.mxu0 0
    %4669 = vmatpush1.bf16.msra.mxu0 0
    %4670 = vmatprep.subr.bf16.mxu0 0
    %4671 = vmatpush1.bf16.msra.mxu0 0
    %4672 = vmatprep.subr.bf16.mxu0 0
    %4673 = vmatpush1.bf16.msra.mxu0 0
    %4674 = vmatprep.subr.bf16.mxu0 0
    %4675 = vmatpush1.bf16.msra.mxu0 0
    %4676 = vmatprep.subr.bf16.mxu0 0
    %4677 = vmatpush1.bf16.msra.mxu0 0
    %4678 = vmatprep.subr.bf16.mxu0 0
    %4679 = vmatpush1.bf16.msra.mxu0 0
    %4680 = vmatprep.subr.bf16.mxu0 0
    %4681 = vmatpush1.bf16.msra.mxu0 0
    %4682 = vmatprep.subr.bf16.mxu0 0
    %4683 = vmatpush1.bf16.msra.mxu0 0
    %4684 = vmatprep.subr.bf16.mxu0 0
    %4685 = vmatpush1.bf16.msra.mxu0 0
    %4686 = vmatprep.subr.bf16.mxu0 0
    %4687 = vmatpush1.bf16.msra.mxu0 0
    %4688 = vmatprep.mubr.bf16.mxu0 0
    %4689 = vmatmul.mubr.bf16.gmra.mrb[0].mxu0 %v4645
    %v4690 = vpop.f32.mrb[0].mxu0
    %v4691 = vadd.f32 0.0, %v4690
    %v4692 = vpop.f32.mrb[0].mxu0
    %v4693 = vpop.f32.mrb[0].mxu0
    %v4694 = vadd.f32 0.0, %v4693
    %v4695 = vpop.f32.mrb[0].mxu0
    %4696 = vmatprep.mubr.bf16.mxu0 0
    %4697 = vmatmul.mubr.bf16.gmra.mrb[0].mxu0 %v4648
    %v4698 = vpop.f32.mrb[0].mxu0
    %v4699 = vadd.f32 0.0, %v4698
    %v4700 = vpop.f32.mrb[0].mxu0
    %v4701 = vpop.f32.mrb[0].mxu0
    %v4702 = vadd.f32 0.0, %v4701
    %v4703 = vpop.f32.mrb[0].mxu0
    %4704 = vmatprep.mubr.bf16.mxu0 0
    %4705 = vmatmul.mubr.bf16.gmra.mrb[0].mxu0 %v4651
    %v4706 = vpop.f32.mrb[0].mxu0
    %v4707 = vadd.f32 0.0, %v4706
    %v4708 = vpop.f32.mrb[0].mxu0
    %v4709 = vpop.f32.mrb[0].mxu0
    %v4710 = vadd.f32 0.0, %v4709
    %v4711 = vpop.f32.mrb[0].mxu0
    %4712 = vmatprep.mubr.bf16.mxu0 0
    %4713 = vmatmul.mubr.bf16.gmra.mrb[0].mxu0 %v4654
    %v4714 = vpop.f32.mrb[0].mxu0
    %v4715 = vadd.f32 0.0, %v4714
    %v4716 = vpop.f32.mrb[0].mxu0
    %v4717 = vpop.f32.mrb[0].mxu0
    %v4718 = vadd.f32 0.0, %v4717
    %v4719 = vpop.f32.mrb[0].mxu0
    %4720 = vdwg.mxu0
    %v4721 = vmul.f32 %v4212, 0.5
    %v4722 = vmul.f32 %v4213, 0.5
    %v4723 = vmul.f32 %v4214, 0.5
    %v4724 = vmul.f32 %v4215, 0.5
    %v4725 = vmul.f32 %v4216, 0.5
    %v4726 = vmul.f32 %v4217, 0.5
    %v4727 = vmul.f32 %v4218, 0.5
    %v4728 = vmul.f32 %v4219, 0.5
    %v4729 = vmul.f32 %v4691, 0.5
    %v4730 = vmul.f32 %v4694, 0.5
    %v4731 = vmul.f32 %v4699, 0.5
    %v4732 = vmul.f32 %v4702, 0.5
    %v4733 = vmul.f32 %v4707, 0.5
    %v4734 = vmul.f32 %v4710, 0.5
    %v4735 = vmul.f32 %v4715, 0.5
    %v4736 = vmul.f32 %v4718, 0.5
    %v4737 = vadd.f32 %v4721, %v4729
    %v4738 = vadd.f32 %v4722, %v4730
    %v4739 = vadd.f32 %v4723, %v4731
    %v4740 = vadd.f32 %v4724, %v4732
    %v4741 = vadd.f32 %v4725, %v4733
    %v4742 = vadd.f32 %v4726, %v4734
    %v4743 = vadd.f32 %v4727, %v4735
    %v4744 = vadd.f32 %v4728, %v4736
    %4745 = vst [vmem:[#allocation8] sm:$0xff] %v4737
    %4746 = vst [vmem:[#allocation8 + $0x8] sm:$0xff] %v4738
    %4747 = vst [vmem:[#allocation8 + $0x10] sm:$0xff] %v4739
    %4748 = vst [vmem:[#allocation8 + $0x18] sm:$0xff] %v4740
    %4749 = vst [vmem:[#allocation8 + $0x20] sm:$0xff] %v4741
    %4750 = vst [vmem:[#allocation8 + $0x28] sm:$0xff] %v4742
    %4751 = vst [vmem:[#allocation8 + $0x30] sm:$0xff] %v4743
    %4752 = vst [vmem:[#allocation8 + $0x38] sm:$0xff] %v4744
    %v4753 = vld [vmem:[#allocation8] sm:$0xff]
    %v4754 = vld [vmem:[#allocation8 + $0x8] sm:$0xff]
    %v4755 = vld [vmem:[#allocation8 + $0x10] sm:$0xff]
    %v4756 = vld [vmem:[#allocation8 + $0x18] sm:$0xff]
    %v4757 = vld [vmem:[#allocation8 + $0x20] sm:$0xff]
    %v4758 = vld [vmem:[#allocation8 + $0x28] sm:$0xff]
    %v4759 = vld [vmem:[#allocation8 + $0x30] sm:$0xff]
    %v4760 = vld [vmem:[#allocation8 + $0x38] sm:$0xff]
    %v4761 = vmul.f32 %v791, %v4753
    %v4762 = vmul.f32 %v796, %v4754
    %v4763 = vmul.f32 %v801, %v4755
    %v4764 = vmul.f32 %v806, %v4756
    %v4765 = vmul.f32 %v811, %v4757
    %v4766 = vmul.f32 %v816, %v4758
    %v4767 = vmul.f32 %v821, %v4759
    %v4768 = vmul.f32 %v826, %v4760
    %v4769 = vadd.f32 %v4761, %v201
    %v4770 = vadd.f32 %v4762, %v206
    %v4771 = vadd.f32 %v4763, %v211
    %v4772 = vadd.f32 %v4764, %v216
    %v4773 = vadd.f32 %v4765, %v221
    %v4774 = vadd.f32 %v4766, %v226
    %v4775 = vadd.f32 %v4767, %v231
    %v4776 = vadd.f32 %v4768, %v236
    %4777 = vst [vmem:[#allocation8] sm:$0xff] %v4769
    %4778 = vst [vmem:[#allocation8 + $0x8] sm:$0xff] %v4770
    %4779 = vst [vmem:[#allocation8 + $0x10] sm:$0xff] %v4771
    %4780 = vst [vmem:[#allocation8 + $0x18] sm:$0xff] %v4772
    %4781 = vst [vmem:[#allocation8 + $0x20] sm:$0xff] %v4773
    %4782 = vst [vmem:[#allocation8 + $0x28] sm:$0xff] %v4774
    %4783 = vst [vmem:[#allocation8 + $0x30] sm:$0xff] %v4775
    %4784 = vst [vmem:[#allocation8 + $0x38] sm:$0xff] %v4776
    // Predicated region
    $region62: #{tpu_custom_call.1} parent=1 // pred_check
      _
    $region63: #{tpu_custom_call.1} parent=1 // pred_check_branch
      %4786 = sbr.rel (0) target = $region65
    $region64: #{tpu_custom_call.1} parent=1 // pred_region
      %s4788 = ssub.s32 1024, 1024
      %4789 = vsyncadd [#allocation4], %s4788
      %s4790 = sshll.u32 [#allocation8], 4
      %s4791 = int_to_ptr.vmem [resolvable:$true] %s4790
      %4796 = dma.vmem_to_hbm [thread:$0]  %s4791, 1024, %s12, [#allocation4], 128, 128, 8
    $region65: #{tpu_custom_call.1} parent=1 // pred_fallthru
      _
    // Predicated region
    $region66: #{tpu_custom_call.1} parent=1 // pred_check
      _
    $region67: #{tpu_custom_call.1} parent=1 // pred_check_branch
      %4798 = sbr.rel (0) target = $region69
    $region68: #{tpu_custom_call.1} parent=1 // pred_region
      %4799 = dma.done [#allocation4], 1024
    $region69: #{tpu_custom_call.1} parent=1 // pred_fallthru
      _
    %4800 = vsyncpa [#allocation3], 1
    %4801 = vsyncpa [#allocation6], 1
    %4802 = vsyncpa [#allocation4], 1

</llo_original>
